<compile_context>
chip_gen: v7x
topology: tpu7x:2x2x1
jax: 0.10.0
libtpu: 0.0.40
codegen_flags: <defaults>
</compile_context>

<pallas_src>
import functools

import jax
import jax.numpy as jnp
from jax.experimental import pallas as pl
from jax.experimental.pallas import tpu as pltpu

EPS = 1e-3
NB2_DILATIONS = (2, 4, 8, 16, 2, 4, 8, 16)  # block2 non_bottleneck dilations

# --------------------------- tiling configuration ----------------------------

VMEM_LIMIT_BYTES = 32 * 1024 * 1024


def _default_tile_m():
    # Bigger tiles on 128-MiB-VMEM parts (v5e/v6e); conservative 512 for v7x (64 MiB).
    try:
        info = pltpu.get_tpu_info()
        vmem = getattr(info, "vmem_capacity_bytes", None)
        if vmem is not None and vmem >= 100 * 1024 * 1024:
            return 1024
    except Exception:
        pass
    return 512


TILE_M = _default_tile_m()


def _probe_kernel(x_ref, o_ref):
    o_ref[...] = x_ref[...]


def _buffered3_supported():
    """Probe whether pipeline_mode=pl.Buffered(3) works in this JAX build."""
    if not hasattr(pl, "Buffered"):
        return False
    try:
        spec = pl.BlockSpec((8, 128), lambda i: (i, 0), pipeline_mode=pl.Buffered(3))
        fn = pl.pallas_call(
            _probe_kernel,
            out_shape=jax.ShapeDtypeStruct((16, 128), jnp.float32),
            grid_spec=pltpu.PrefetchScalarGridSpec(
                num_scalar_prefetch=0,
                grid=(2,),
                in_specs=[spec],
                out_specs=pl.BlockSpec((8, 128), lambda i: (i, 0)),
            ),
        )
        jax.block_until_ready(fn(jnp.zeros((16, 128), jnp.float32)))
        return True
    except Exception:
        return False


_BUFFERED3 = _buffered3_supported()


def _tiled_in_spec(tm, ncols):
    if _BUFFERED3:
        return pl.BlockSpec((tm, ncols), lambda i: (i, 0),
                            pipeline_mode=pl.Buffered(3))
    return pl.BlockSpec((tm, ncols), lambda i: (i, 0))


def _pinned_spec(shape):
    return pl.BlockSpec(shape, lambda i: (0, 0))


# ------------------------------ Pallas kernels --------------------------------

def _mm_affine_kernel(x_ref, w_ref, s_ref, b_ref, o_ref, *, relu):
    y = jnp.dot(x_ref[...], w_ref[...], preferred_element_type=jnp.float32)
    y = y * s_ref[...] + b_ref[...]
    if relu:
        y = jnp.maximum(y, 0.0)
    o_ref[...] = y.astype(o_ref.dtype)


def _mm_affine_res_kernel(x_ref, w_ref, s_ref, b_ref, r_ref, o_ref, *, relu):
    y = jnp.dot(x_ref[...], w_ref[...], preferred_element_type=jnp.float32)
    y = y * s_ref[...] + b_ref[...] + r_ref[...].astype(jnp.float32)
    if relu:
        y = jnp.maximum(y, 0.0)
    o_ref[...] = y.astype(o_ref.dtype)


def _ladder_out_kernel(x_ref, w_ref, s_ref, b_ref, wo_ref, bo_ref, o_ref):
    # LadderBlock2 (conv3x3+BN+ReLU) fused with the final ConvTranspose2d(16,1,2,s2)
    # (phase-decomposed into a (16, 4) matmul); the 16-ch intermediate never
    # leaves VMEM, only the 4 phase lanes are written back.
    t = jnp.dot(x_ref[...], w_ref[...], preferred_element_type=jnp.float32)
    t = jnp.maximum(t * s_ref[...] + b_ref[...], 0.0)
    y = jnp.dot(t.astype(jnp.bfloat16), wo_ref[...],
                preferred_element_type=jnp.float32) + bo_ref[...]
    o_ref[...] = y.astype(o_ref.dtype)


# --------------------------- tiled pallas_call helper -------------------------

def _run_rowwise(kernel, args, row_tiled, out_cols, out_dtype, *, flops):
    """Launch `kernel` on 2-D operands; operands with row_tiled[i]=True are tiled
    along rows (axis 0 == M) with a real 1-D grid, the rest are pinned."""
    M = args[0].shape[0]
    tm = M if M <= TILE_M else TILE_M          # full block, or 8-aligned tiles
    grid = (pl.cdiv(M, tm),)
    in_specs = []
    bytes_accessed = M * out_cols * jnp.dtype(out_dtype).itemsize
    for a, tiled in zip(args, row_tiled):
        bytes_accessed += a.size * a.dtype.itemsize
        if tiled:
            in_specs.append(_tiled_in_spec(tm, a.shape[1]))
        else:
            in_specs.append(_pinned_spec(a.shape))
    return pl.pallas_call(
        kernel,
        out_shape=jax.ShapeDtypeStruct((M, out_cols), out_dtype),
        grid_spec=pltpu.PrefetchScalarGridSpec(
            num_scalar_prefetch=0,
            grid=grid,
            in_specs=in_specs,
            out_specs=pl.BlockSpec((tm, out_cols), lambda i: (i, 0)),
        ),
        compiler_params=pltpu.CompilerParams(
            dimension_semantics=("parallel",),   # rows independent -> megacore
            vmem_limit_bytes=VMEM_LIMIT_BYTES,
        ),
        cost_estimate=pl.CostEstimate(
            flops=int(flops), transcendentals=0,
            bytes_accessed=int(bytes_accessed)),
    )(*args)


# --------------------------------- conv glue ----------------------------------

def _extract_patches(x, kh, kw, stride, dil, pad, extra=None):
    """NHWC -> (N, oh, ow, kh*kw*C [+ extra]) im2col; patch order (kh, kw, C)."""
    N, H, W, C = x.shape
    ph, pw = pad
    dh, dw = dil
    xp = jnp.pad(x, ((0, 0), (ph, ph), (pw, pw), (0, 0)))
    Hp, Wp = H + 2 * ph, W + 2 * pw
    oh = (Hp - (dh * (kh - 1) + 1)) // stride + 1
    ow = (Wp - (dw * (kw - 1) + 1)) // stride + 1
    cols = []
    for i in range(kh):
        for j in range(kw):
            cols.append(xp[:, i * dh: i * dh + (oh - 1) * stride + 1: stride,
                              j * dw: j * dw + (ow - 1) * stride + 1: stride, :])
    if extra is not None:
        cols.append(extra)
    return jnp.concatenate(cols, axis=-1), oh, ow


def conv2d(x, wm, scale, bias, *, kh, kw, stride=1, dil=(1, 1), pad=(0, 0),
           relu=True, residual=None):
    """y = act((im2col(x) @ wm) * scale + bias [+ residual]); matmul/BN/ReLU fused
    in one M-tiled Pallas kernel.  wm is pre-transposed (kh*kw*Cin, O) bf16."""
    N = x.shape[0]
    O = wm.shape[1]
    patches, oh, ow = _extract_patches(x, kh, kw, stride, dil, pad)
    M = N * oh * ow
    K = patches.shape[-1]
    xm = patches.reshape(M, K)
    args = [xm, wm, scale, bias]
    row_tiled = [True, False, False, False]
    if residual is not None:
        args.append(residual.reshape(M, O))
        row_tiled.append(True)
        kernel = functools.partial(_mm_affine_res_kernel, relu=relu)
    else:
        kernel = functools.partial(_mm_affine_kernel, relu=relu)
    y = _run_rowwise(kernel, args, row_tiled, O, jnp.bfloat16,
                     flops=2 * M * K * O)
    return y.reshape(N, oh, ow, O)


def maxpool2x2(x):
    N, H, W, C = x.shape
    return x.reshape(N, H // 2, 2, W // 2, 2, C).max(axis=(2, 4))


def _depth_to_space2(y, N, H, W, O):
    # y: (N*H*W, 4*O), columns ordered (py, px, o) -> (N, 2H, 2W, O)
    y = y.reshape(N, H, W, 2, 2, O)
    y = jnp.transpose(y, (0, 1, 3, 2, 4, 5))
    return y.reshape(N, 2 * H, 2 * W, O)


# ----------------------------- parameter creation -----------------------------

def _normal(key, shape, scale):
    return scale * jax.random.normal(key, shape, jnp.float32)


def _bn(key, c):
    k1, k2, k3 = jax.random.split(key, 3)
    gamma = 1.0 + _normal(k1, (c,), 0.1)
    beta = _normal(k2, (c,), 0.01)
    mean = _normal(k3, (c,), 0.01)
    var = jnp.ones((c,), jnp.float32)
    return gamma, beta, mean, var


def _fold(gamma, beta, mean, var, conv_bias):
    s = gamma / jnp.sqrt(var + EPS)
    return s, beta + s * (conv_bias - mean)


def _row(v):
    return jnp.asarray(v, jnp.float32).reshape(1, -1)


def _conv_weight(w_oihw):
    # PyTorch OIHW -> (kh*kw*Cin, O), patch order (kh, kw, C), bf16 for the MXU.
    O, C, kh, kw = w_oihw.shape
    return jnp.transpose(w_oihw, (2, 3, 1, 0)).reshape(kh * kw * C, O).astype(jnp.bfloat16)


def init_downsampler(key, nin, nout):
    k1, k2, k3 = jax.random.split(key, 3)
    nc = nout - nin
    w = _normal(k1, (nc, nin, 3, 3), 0.1)                    # conv weight OIHW
    cb = _normal(k2, (nc,), 0.01)                            # conv bias
    gamma, beta, mean, var = _bn(k3, nout)                   # BN over the concat
    s = gamma / jnp.sqrt(var + EPS)
    b = jnp.concatenate([beta[:nc] + s[:nc] * (cb - mean[:nc]),   # conv half
                         beta[nc:] - s[nc:] * mean[nc:]])         # pool half
    wm = _conv_weight(w)                                     # (9*nin, nc)
    K = wm.shape[0]
    # Identity-augmented weight: pooled channels ride through the same matmul.
    w_aug = jnp.zeros((K + nin, nout), jnp.float32)
    w_aug = w_aug.at[:K, :nc].set(wm.astype(jnp.float32))
    w_aug = w_aug.at[K:, nc:].set(jnp.eye(nin, dtype=jnp.float32))
    return dict(w=w_aug.astype(jnp.bfloat16), s=_row(s), b=_row(b))


def init_non_bottleneck(key, c):
    ks = jax.random.split(key, 10)
    w1 = _normal(ks[0], (c, c, 3, 1), 0.1); b1 = _normal(ks[1], (c,), 0.01)
    w2 = _normal(ks[2], (c, c, 1, 3), 0.1); cb2 = _normal(ks[3], (c,), 0.01)
    w3 = _normal(ks[4], (c, c, 3, 1), 0.1); b3 = _normal(ks[5], (c,), 0.01)
    w4 = _normal(ks[6], (c, c, 1, 3), 0.1); cb4 = _normal(ks[7], (c,), 0.01)
    s2, bb2 = _fold(*_bn(ks[8], c), cb2)
    s4, bb4 = _fold(*_bn(ks[9], c), cb4)
    ones = jnp.ones((c,), jnp.float32)
    return dict(w1=_conv_weight(w1), s1=_row(ones), b1=_row(b1),
                w2=_conv_weight(w2), s2=_row(s2), b2=_row(bb2),
                w3=_conv_weight(w3), s3=_row(ones), b3=_row(b3),
                w4=_conv_weight(w4), s4=_row(s4), b4=_row(bb4))


def _phase_weight_convT3x3_s2(w_iohw):
    # ConvTranspose2d(k=3, s=2, p=1, op=1) as a (4*Cin, 4*O) matmul over 2x2
    # patches of the right/bottom-padded input; output columns ordered (py,px,o).
    Cin, O = w_iohw.shape[0], w_iohw.shape[1]
    wp = jnp.zeros((2, 2, Cin, 2, 2, O), jnp.float32)   # (dy, dx, c, py, px, o)
    for dy in range(2):
        for dx in range(2):
            for py in range(2):
                for px in range(2):
                    ky = py + 1 - 2 * dy
                    kx = px + 1 - 2 * dx
                    if 0 <= ky <= 2 and 0 <= kx <= 2:
                        wp = wp.at[dy, dx, :, py, px, :].set(w_iohw[:, :, ky, kx])
    return wp.reshape(4 * Cin, 4 * O)


def init_decoder_block(key, nin, nout):
    k1, k2, k3 = jax.random.split(key, 3)
    w = _normal(k1, (nin, nout, 3, 3), 0.1)                  # ConvTranspose2d IOHW
    cb = _normal(k2, (nout,), 0.01)
    s, b = _fold(*_bn(k3, nout), cb)
    return dict(w=_phase_weight_convT3x3_s2(w).astype(jnp.bfloat16),
                s=_row(jnp.tile(s, 4)), b=_row(jnp.tile(b, 4)))


def init_ladder_block(key, c):
    k1, k2, k3 = jax.random.split(key, 3)
    w = _normal(k1, (c, c, 3, 3), 0.1)
    cb = _normal(k2, (c,), 0.01)
    s, b = _fold(*_bn(k3, c), cb)
    return dict(w=_conv_weight(w), s=_row(s), b=_row(b))


def init_output_conv(key, nin, nout):
    k1, k2 = jax.random.split(key)
    w = _normal(k1, (nin, nout, 2, 2), 0.1)                  # ConvTranspose2d IOHW
    b = _normal(k2, (nout,), 0.01)
    # k=2/s=2/p=0: disjoint 2x2 output blocks -> exact (Cin, 4*O) matmul +
    # depth-to-space; columns ordered (py, px, o).
    wm = jnp.transpose(w, (0, 2, 3, 1)).reshape(nin, 4 * nout)
    return dict(w=wm.astype(jnp.bfloat16), b=_row(jnp.tile(b, 4)))


def init_net(key):
    ks = jax.random.split(key, 24)
    p = {}
    p['initial'] = init_downsampler(ks[0], 3, 16)
    p['down1'] = init_downsampler(ks[1], 16, 64)
    p['nb1'] = [init_non_bottleneck(ks[2 + i], 64) for i in range(5)]
    p['down2'] = init_downsampler(ks[7], 64, 128)
    p['nb2'] = [init_non_bottleneck(ks[8 + i], 128) for i in range(8)]
    p['dec1'] = init_decoder_block(ks[16], 128, 64)
    p['lad1'] = init_ladder_block(ks[17], 64)
    p['dec2'] = init_decoder_block(ks[18], 64, 16)
    p['lad2'] = init_ladder_block(ks[19], 16)
    p['out'] = init_output_conv(ks[20], 16, 1)
    # NOTE: encoder.output_conv exists in __init__ but is unused in forward.
    return p


# -------------------------------- model blocks --------------------------------

def downsampler_block(p, x):
    # Conv3x3/s2 branch + BN(maxpool) branch + concat fused into ONE matmul via
    # the identity-augmented weight (pool channels appended as im2col columns).
    N, H, W, Cin = x.shape
    pool = maxpool2x2(x)
    patches, oh, ow = _extract_patches(x, 3, 3, 2, (1, 1), (1, 1), extra=pool)
    M = N * oh * ow
    xm = patches.reshape(M, -1)
    O = p['w'].shape[1]
    y = _run_rowwise(functools.partial(_mm_affine_kernel, relu=True),
                     [xm, p['w'], p['s'], p['b']], [True, False, False, False],
                     O, jnp.bfloat16, flops=2 * M * xm.shape[1] * O)
    return y.reshape(N, oh, ow, O)


def non_bottleneck_1d(p, x, d):
    out = conv2d(x, p['w1'], p['s1'], p['b1'], kh=3, kw=1, pad=(1, 0), relu=True)
    out = conv2d(out, p['w2'], p['s2'], p['b2'], kh=1, kw=3, pad=(0, 1), relu=True)
    out = conv2d(out, p['w3'], p['s3'], p['b3'], kh=3, kw=1, pad=(d, 0),
                 dil=(d, 1), relu=True)
    out = conv2d(out, p['w4'], p['s4'], p['b4'], kh=1, kw=3, pad=(0, d),
                 dil=(1, d), relu=True, residual=x)
    return out


def decoder_block(p, x):
    # ConvTranspose2d(3, s2, p1, op1)+BN+ReLU, phase-decomposed: one (4C -> 4O)
    # matmul over 2x2 patches at the ORIGINAL resolution + depth-to-space.
    N, H, W, C = x.shape
    xp = jnp.pad(x, ((0, 0), (0, 1), (0, 1), (0, 0)))
    patches, oh, ow = _extract_patches(xp, 2, 2, 1, (1, 1), (0, 0))
    M = N * oh * ow
    xm = patches.reshape(M, 4 * C)
    O4 = p['w'].shape[1]
    y = _run_rowwise(functools.partial(_mm_affine_kernel, relu=True),
                     [xm, p['w'], p['s'], p['b']], [True, False, False, False],
                     O4, jnp.bfloat16, flops=2 * M * 4 * C * O4)
    return _depth_to_space2(y, N, oh, ow, O4 // 4)


def ladder_block(p, x, skip):
    # TODO(synk): LadderBlock source not provided; inferred Conv3x3+BN+ReLU on x+skip.
    return conv2d(x + skip, p['w'], p['s'], p['b'], kh=3, kw=3, pad=(1, 1),
                  relu=True)


def ladder_block_with_output_conv(p, p_out, x, skip):
    # LadderBlock2 fused with the final ConvTranspose2d(16,1,2,s2).
    z = x + skip
    N, H, W, C = z.shape
    patches, oh, ow = _extract_patches(z, 3, 3, 1, (1, 1), (1, 1))
    M = N * oh * ow
    xm = patches.reshape(M, -1)
    O4 = p_out['w'].shape[1]                       # 4 * out_channels (= 4)
    flops = 2 * M * xm.shape[1] * C + 2 * M * C * O4
    y = _run_rowwise(_ladder_out_kernel,
                     [xm, p['w'], p['s'], p['b'], p_out['w'], p_out['b']],
                     [True, False, False, False, False, False],
                     O4, jnp.float32, flops=flops)
    return _depth_to_space2(y, N, oh, ow, O4 // 4)


def net_forward(params, x_nchw):
    x = jnp.transpose(x_nchw, (0, 2, 3, 1)).astype(jnp.bfloat16)   # NCHW -> NHWC
    # ---- Encoder ----
    enc1 = downsampler_block(params['initial'], x)                 # (N, H/2, W/2, 16)
    out2 = downsampler_block(params['down1'], enc1)                # (N, H/4, W/4, 64)
    for pb in params['nb1']:
        out2 = non_bottleneck_1d(pb, out2, 1)
    enc2 = out2
    out3 = downsampler_block(params['down2'], enc2)                # (N, H/8, W/8, 128)
    for pb, d in zip(params['nb2'], NB2_DILATIONS):
        out3 = non_bottleneck_1d(pb, out3, d)
    enc3 = out3
    # ---- Decoder ----
    y = decoder_block(params['dec1'], enc3)                        # (N, H/4, W/4, 64)
    y = ladder_block(params['lad1'], y, enc2)
    y = decoder_block(params['dec2'], y)                           # (N, H/2, W/2, 16)
    y = ladder_block_with_output_conv(params['lad2'], params['out'], y, enc1)
    return jnp.transpose(y, (0, 3, 1, 2)).astype(jnp.float32)      # NHWC -> NCHW


if __name__ == "__main__":
    key = jax.random.PRNGKey(0)
    kp, kx = jax.random.split(key)
    params = init_net(kp)
    x = jax.random.normal(kx, (2, 3, 16, 16), jnp.float32)         # NCHW, like PyTorch
    out = jax.jit(net_forward)(params, x)
    out = jax.block_until_ready(out)
    assert out.shape == (2, 1, 16, 16), out.shape
    assert bool(jnp.all(jnp.isfinite(out)))
    print("KERNEL_OK")
</pallas_src>

<mosaic_0001>
module attributes {stable_mosaic.version = 11 : i64} {
  func.func @_mm_affine_kernel(%arg0: i32, %arg1: memref<128x30xbf16, #tpu.memory_space<vmem>>, %arg2: memref<30x16xbf16, #tpu.memory_space<vmem>>, %arg3: memref<1x16xf32, #tpu.memory_space<vmem>>, %arg4: memref<1x16xf32, #tpu.memory_space<vmem>>, %arg5: memref<128x16xbf16, #tpu.memory_space<vmem>>) attributes {dimension_semantics = [#tpu.dimension_semantics<parallel>], iteration_bounds = array<i64: 1>, scalar_prefetch = 0 : i64, scratch_operands = 0 : i64, tpu.core_type = #tpu.core_type<tc>, window_params = [{transform_indices = @transform_0, window_bounds = array<i64: 128, 30>}, {pipeline_mode = #tpu.pipeline_mode<synchronous>, transform_indices = @transform_1, window_bounds = array<i64: 30, 16>}, {pipeline_mode = #tpu.pipeline_mode<synchronous>, transform_indices = @transform_2, window_bounds = array<i64: 1, 16>}, {pipeline_mode = #tpu.pipeline_mode<synchronous>, transform_indices = @transform_3, window_bounds = array<i64: 1, 16>}, {transform_indices = @transform_4, window_bounds = array<i64: 128, 16>}]} {
    %c0 = arith.constant 0 : index
    %c0_0 = arith.constant 0 : index
    %0 = vector.load %arg1[%c0, %c0_0] : memref<128x30xbf16, #tpu.memory_space<vmem>>, vector<128x30xbf16>
    %c0_1 = arith.constant 0 : index
    %c0_2 = arith.constant 0 : index
    %1 = vector.load %arg2[%c0_1, %c0_2] : memref<30x16xbf16, #tpu.memory_space<vmem>>, vector<30x16xbf16>
    %cst = arith.constant dense<0.000000e+00> : vector<128x16xf32>
    %2 = tpu.matmul %0, %1, %cst {dimension_numbers = #tpu.dot_dimension_numbers<[1], [0], [0], [1], [0, 0, 1, 1], [], []>} : vector<128x30xbf16>, vector<30x16xbf16>, vector<128x16xf32> -> vector<128x16xf32>
    %c0_3 = arith.constant 0 : index
    %c0_4 = arith.constant 0 : index
    %3 = vector.load %arg3[%c0_3, %c0_4] : memref<1x16xf32, #tpu.memory_space<vmem>>, vector<1x16xf32>
    %4 = vector.broadcast %3 : vector<1x16xf32> to vector<128x16xf32>
    %5 = arith.mulf %2, %4 : vector<128x16xf32>
    %c0_5 = arith.constant 0 : index
    %c0_6 = arith.constant 0 : index
    %6 = vector.load %arg4[%c0_5, %c0_6] : memref<1x16xf32, #tpu.memory_space<vmem>>, vector<1x16xf32>
    %7 = vector.broadcast %6 : vector<1x16xf32> to vector<128x16xf32>
    %8 = arith.addf %5, %7 : vector<128x16xf32>
    %cst_7 = arith.constant 0.000000e+00 : f32
    %9 = vector.broadcast %cst_7 : f32 to vector<128x16xf32>
    %10 = arith.maximumf %8, %9 : vector<128x16xf32>
    %11 = arith.truncf %10 : vector<128x16xf32> to vector<128x16xbf16>
    %c0_8 = arith.constant 0 : index
    %c0_9 = arith.constant 0 : index
    %12 = vector.load %arg5[%c0_8, %c0_9] : memref<128x16xbf16, #tpu.memory_space<vmem>>, vector<128x16xbf16>
    tpu.vector_store %arg5[%c0_8, %c0_9], %11 {strides = array<i32>} : memref<128x16xbf16, #tpu.memory_space<vmem>>, vector<128x16xbf16>,
    return
  }
  func.func @transform_0(%arg0: i32) -> (i32, i32) {
    %c0_i32 = arith.constant 0 : i32
    %c0_i32_0 = arith.constant 0 : i32
    return %arg0, %c0_i32 : i32, i32
  }
  func.func @transform_1(%arg0: i32) -> (i32, i32) {
    %c0_i32 = arith.constant 0 : i32
    %c0_i32_0 = arith.constant 0 : i32
    %c0_i32_1 = arith.constant 0 : i32
    return %c0_i32, %c0_i32_0 : i32, i32
  }
  func.func @transform_2(%arg0: i32) -> (i32, i32) {
    %c0_i32 = arith.constant 0 : i32
    %c0_i32_0 = arith.constant 0 : i32
    %c0_i32_1 = arith.constant 0 : i32
    return %c0_i32, %c0_i32_0 : i32, i32
  }
  func.func @transform_3(%arg0: i32) -> (i32, i32) {
    %c0_i32 = arith.constant 0 : i32
    %c0_i32_0 = arith.constant 0 : i32
    %c0_i32_1 = arith.constant 0 : i32
    return %c0_i32, %c0_i32_0 : i32, i32
  }
  func.func @transform_4(%arg0: i32) -> (i32, i32) {
    %c0_i32 = arith.constant 0 : i32
    %c0_i32_0 = arith.constant 0 : i32
    return %arg0, %c0_i32 : i32, i32
  }
}

module attributes {stable_mosaic.version = 11 : i64} {
  func.func @_mm_affine_kernel(%arg0: i32, %arg1: memref<32x160xbf16, #tpu.memory_space<vmem>>, %arg2: memref<160x64xbf16, #tpu.memory_space<vmem>>, %arg3: memref<1x64xf32, #tpu.memory_space<vmem>>, %arg4: memref<1x64xf32, #tpu.memory_space<vmem>>, %arg5: memref<32x64xbf16, #tpu.memory_space<vmem>>) attributes {dimension_semantics = [#tpu.dimension_semantics<parallel>], iteration_bounds = array<i64: 1>, scalar_prefetch = 0 : i64, scratch_operands = 0 : i64, tpu.core_type = #tpu.core_type<tc>, window_params = [{transform_indices = @transform_0, window_bounds = array<i64: 32, 160>}, {pipeline_mode = #tpu.pipeline_mode<synchronous>, transform_indices = @transform_1, window_bounds = array<i64: 160, 64>}, {pipeline_mode = #tpu.pipeline_mode<synchronous>, transform_indices = @transform_2, window_bounds = array<i64: 1, 64>}, {pipeline_mode = #tpu.pipeline_mode<synchronous>, transform_indices = @transform_3, window_bounds = array<i64: 1, 64>}, {transform_indices = @transform_4, window_bounds = array<i64: 32, 64>}]} {
    %c0 = arith.constant 0 : index
    %c0_0 = arith.constant 0 : index
    %0 = vector.load %arg1[%c0, %c0_0] : memref<32x160xbf16, #tpu.memory_space<vmem>>, vector<32x160xbf16>
    %c0_1 = arith.constant 0 : index
    %c0_2 = arith.constant 0 : index
    %1 = vector.load %arg2[%c0_1, %c0_2] : memref<160x64xbf16, #tpu.memory_space<vmem>>, vector<160x64xbf16>
    %cst = arith.constant dense<0.000000e+00> : vector<32x64xf32>
    %2 = tpu.matmul %0, %1, %cst {dimension_numbers = #tpu.dot_dimension_numbers<[1], [0], [0], [1], [0, 0, 1, 1], [], []>} : vector<32x160xbf16>, vector<160x64xbf16>, vector<32x64xf32> -> vector<32x64xf32>
    %c0_3 = arith.constant 0 : index
    %c0_4 = arith.constant 0 : index
    %3 = vector.load %arg3[%c0_3, %c0_4] : memref<1x64xf32, #tpu.memory_space<vmem>>, vector<1x64xf32>
    %4 = vector.broadcast %3 : vector<1x64xf32> to vector<32x64xf32>
    %5 = arith.mulf %2, %4 : vector<32x64xf32>
    %c0_5 = arith.constant 0 : index
    %c0_6 = arith.constant 0 : index
    %6 = vector.load %arg4[%c0_5, %c0_6] : memref<1x64xf32, #tpu.memory_space<vmem>>, vector<1x64xf32>
    %7 = vector.broadcast %6 : vector<1x64xf32> to vector<32x64xf32>
    %8 = arith.addf %5, %7 : vector<32x64xf32>
    %cst_7 = arith.constant 0.000000e+00 : f32
    %9 = vector.broadcast %cst_7 : f32 to vector<32x64xf32>
    %10 = arith.maximumf %8, %9 : vector<32x64xf32>
    %11 = arith.truncf %10 : vector<32x64xf32> to vector<32x64xbf16>
    %c0_8 = arith.constant 0 : index
    %c0_9 = arith.constant 0 : index
    %12 = vector.load %arg5[%c0_8, %c0_9] : memref<32x64xbf16, #tpu.memory_space<vmem>>, vector<32x64xbf16>
    tpu.vector_store %arg5[%c0_8, %c0_9], %11 {strides = array<i32>} : memref<32x64xbf16, #tpu.memory_space<vmem>>, vector<32x64xbf16>,
    return
  }
  func.func @transform_0(%arg0: i32) -> (i32, i32) {
    %c0_i32 = arith.constant 0 : i32
    %c0_i32_0 = arith.constant 0 : i32
    return %arg0, %c0_i32 : i32, i32
  }
  func.func @transform_1(%arg0: i32) -> (i32, i32) {
    %c0_i32 = arith.constant 0 : i32
    %c0_i32_0 = arith.constant 0 : i32
    %c0_i32_1 = arith.constant 0 : i32
    return %c0_i32, %c0_i32_0 : i32, i32
  }
  func.func @transform_2(%arg0: i32) -> (i32, i32) {
    %c0_i32 = arith.constant 0 : i32
    %c0_i32_0 = arith.constant 0 : i32
    %c0_i32_1 = arith.constant 0 : i32
    return %c0_i32, %c0_i32_0 : i32, i32
  }
  func.func @transform_3(%arg0: i32) -> (i32, i32) {
    %c0_i32 = arith.constant 0 : i32
    %c0_i32_0 = arith.constant 0 : i32
    %c0_i32_1 = arith.constant 0 : i32
    return %c0_i32, %c0_i32_0 : i32, i32
  }
  func.func @transform_4(%arg0: i32) -> (i32, i32) {
    %c0_i32 = arith.constant 0 : i32
    %c0_i32_0 = arith.constant 0 : i32
    return %arg0, %c0_i32 : i32, i32
  }
}

module attributes {stable_mosaic.version = 11 : i64} {
  func.func @_mm_affine_kernel(%arg0: i32, %arg1: memref<32x192xbf16, #tpu.memory_space<vmem>>, %arg2: memref<192x64xbf16, #tpu.memory_space<vmem>>, %arg3: memref<1x64xf32, #tpu.memory_space<vmem>>, %arg4: memref<1x64xf32, #tpu.memory_space<vmem>>, %arg5: memref<32x64xbf16, #tpu.memory_space<vmem>>) attributes {dimension_semantics = [#tpu.dimension_semantics<parallel>], iteration_bounds = array<i64: 1>, scalar_prefetch = 0 : i64, scratch_operands = 0 : i64, tpu.core_type = #tpu.core_type<tc>, window_params = [{transform_indices = @transform_0, window_bounds = array<i64: 32, 192>}, {pipeline_mode = #tpu.pipeline_mode<synchronous>, transform_indices = @transform_1, window_bounds = array<i64: 192, 64>}, {pipeline_mode = #tpu.pipeline_mode<synchronous>, transform_indices = @transform_2, window_bounds = array<i64: 1, 64>}, {pipeline_mode = #tpu.pipeline_mode<synchronous>, transform_indices = @transform_3, window_bounds = array<i64: 1, 64>}, {transform_indices = @transform_4, window_bounds = array<i64: 32, 64>}]} {
    %c0 = arith.constant 0 : index
    %c0_0 = arith.constant 0 : index
    %0 = vector.load %arg1[%c0, %c0_0] : memref<32x192xbf16, #tpu.memory_space<vmem>>, vector<32x192xbf16>
    %c0_1 = arith.constant 0 : index
    %c0_2 = arith.constant 0 : index
    %1 = vector.load %arg2[%c0_1, %c0_2] : memref<192x64xbf16, #tpu.memory_space<vmem>>, vector<192x64xbf16>
    %cst = arith.constant dense<0.000000e+00> : vector<32x64xf32>
    %2 = tpu.matmul %0, %1, %cst {dimension_numbers = #tpu.dot_dimension_numbers<[1], [0], [0], [1], [0, 0, 1, 1], [], []>} : vector<32x192xbf16>, vector<192x64xbf16>, vector<32x64xf32> -> vector<32x64xf32>
    %c0_3 = arith.constant 0 : index
    %c0_4 = arith.constant 0 : index
    %3 = vector.load %arg3[%c0_3, %c0_4] : memref<1x64xf32, #tpu.memory_space<vmem>>, vector<1x64xf32>
    %4 = vector.broadcast %3 : vector<1x64xf32> to vector<32x64xf32>
    %5 = arith.mulf %2, %4 : vector<32x64xf32>
    %c0_5 = arith.constant 0 : index
    %c0_6 = arith.constant 0 : index
    %6 = vector.load %arg4[%c0_5, %c0_6] : memref<1x64xf32, #tpu.memory_space<vmem>>, vector<1x64xf32>
    %7 = vector.broadcast %6 : vector<1x64xf32> to vector<32x64xf32>
    %8 = arith.addf %5, %7 : vector<32x64xf32>
    %cst_7 = arith.constant 0.000000e+00 : f32
    %9 = vector.broadcast %cst_7 : f32 to vector<32x64xf32>
    %10 = arith.maximumf %8, %9 : vector<32x64xf32>
    %11 = arith.truncf %10 : vector<32x64xf32> to vector<32x64xbf16>
    %c0_8 = arith.constant 0 : index
    %c0_9 = arith.constant 0 : index
    %12 = vector.load %arg5[%c0_8, %c0_9] : memref<32x64xbf16, #tpu.memory_space<vmem>>, vector<32x64xbf16>
    tpu.vector_store %arg5[%c0_8, %c0_9], %11 {strides = array<i32>} : memref<32x64xbf16, #tpu.memory_space<vmem>>, vector<32x64xbf16>,
    return
  }
  func.func @transform_0(%arg0: i32) -> (i32, i32) {
    %c0_i32 = arith.constant 0 : i32
    %c0_i32_0 = arith.constant 0 : i32
    return %arg0, %c0_i32 : i32, i32
  }
  func.func @transform_1(%arg0: i32) -> (i32, i32) {
    %c0_i32 = arith.constant 0 : i32
    %c0_i32_0 = arith.constant 0 : i32
    %c0_i32_1 = arith.constant 0 : i32
    return %c0_i32, %c0_i32_0 : i32, i32
  }
  func.func @transform_2(%arg0: i32) -> (i32, i32) {
    %c0_i32 = arith.constant 0 : i32
    %c0_i32_0 = arith.constant 0 : i32
    %c0_i32_1 = arith.constant 0 : i32
    return %c0_i32, %c0_i32_0 : i32, i32
  }
  func.func @transform_3(%arg0: i32) -> (i32, i32) {
    %c0_i32 = arith.constant 0 : i32
    %c0_i32_0 = arith.constant 0 : i32
    %c0_i32_1 = arith.constant 0 : i32
    return %c0_i32, %c0_i32_0 : i32, i32
  }
  func.func @transform_4(%arg0: i32) -> (i32, i32) {
    %c0_i32 = arith.constant 0 : i32
    %c0_i32_0 = arith.constant 0 : i32
    return %arg0, %c0_i32 : i32, i32
  }
}

module attributes {stable_mosaic.version = 11 : i64} {
  func.func @_mm_affine_res_kernel(%arg0: i32, %arg1: memref<32x192xbf16, #tpu.memory_space<vmem>>, %arg2: memref<192x64xbf16, #tpu.memory_space<vmem>>, %arg3: memref<1x64xf32, #tpu.memory_space<vmem>>, %arg4: memref<1x64xf32, #tpu.memory_space<vmem>>, %arg5: memref<32x64xbf16, #tpu.memory_space<vmem>>, %arg6: memref<32x64xbf16, #tpu.memory_space<vmem>>) attributes {dimension_semantics = [#tpu.dimension_semantics<parallel>], iteration_bounds = array<i64: 1>, scalar_prefetch = 0 : i64, scratch_operands = 0 : i64, tpu.core_type = #tpu.core_type<tc>, window_params = [{transform_indices = @transform_0, window_bounds = array<i64: 32, 192>}, {pipeline_mode = #tpu.pipeline_mode<synchronous>, transform_indices = @transform_1, window_bounds = array<i64: 192, 64>}, {pipeline_mode = #tpu.pipeline_mode<synchronous>, transform_indices = @transform_2, window_bounds = array<i64: 1, 64>}, {pipeline_mode = #tpu.pipeline_mode<synchronous>, transform_indices = @transform_3, window_bounds = array<i64: 1, 64>}, {transform_indices = @transform_4, window_bounds = array<i64: 32, 64>}, {transform_indices = @transform_5, window_bounds = array<i64: 32, 64>}]} {
    %c0 = arith.constant 0 : index
    %c0_0 = arith.constant 0 : index
    %0 = vector.load %arg1[%c0, %c0_0] : memref<32x192xbf16, #tpu.memory_space<vmem>>, vector<32x192xbf16>
    %c0_1 = arith.constant 0 : index
    %c0_2 = arith.constant 0 : index
    %1 = vector.load %arg2[%c0_1, %c0_2] : memref<192x64xbf16, #tpu.memory_space<vmem>>, vector<192x64xbf16>
    %cst = arith.constant dense<0.000000e+00> : vector<32x64xf32>
    %2 = tpu.matmul %0, %1, %cst {dimension_numbers = #tpu.dot_dimension_numbers<[1], [0], [0], [1], [0, 0, 1, 1], [], []>} : vector<32x192xbf16>, vector<192x64xbf16>, vector<32x64xf32> -> vector<32x64xf32>
    %c0_3 = arith.constant 0 : index
    %c0_4 = arith.constant 0 : index
    %3 = vector.load %arg3[%c0_3, %c0_4] : memref<1x64xf32, #tpu.memory_space<vmem>>, vector<1x64xf32>
    %4 = vector.broadcast %3 : vector<1x64xf32> to vector<32x64xf32>
    %5 = arith.mulf %2, %4 : vector<32x64xf32>
    %c0_5 = arith.constant 0 : index
    %c0_6 = arith.constant 0 : index
    %6 = vector.load %arg4[%c0_5, %c0_6] : memref<1x64xf32, #tpu.memory_space<vmem>>, vector<1x64xf32>
    %7 = vector.broadcast %6 : vector<1x64xf32> to vector<32x64xf32>
    %8 = arith.addf %5, %7 : vector<32x64xf32>
    %c0_7 = arith.constant 0 : index
    %c0_8 = arith.constant 0 : index
    %9 = vector.load %arg5[%c0_7, %c0_8] : memref<32x64xbf16, #tpu.memory_space<vmem>>, vector<32x64xbf16>
    %10 = arith.extf %9 : vector<32x64xbf16> to vector<32x64xf32>
    %11 = arith.addf %8, %10 : vector<32x64xf32>
    %cst_9 = arith.constant 0.000000e+00 : f32
    %12 = vector.broadcast %cst_9 : f32 to vector<32x64xf32>
    %13 = arith.maximumf %11, %12 : vector<32x64xf32>
    %14 = arith.truncf %13 : vector<32x64xf32> to vector<32x64xbf16>
    %c0_10 = arith.constant 0 : index
    %c0_11 = arith.constant 0 : index
    %15 = vector.load %arg6[%c0_10, %c0_11] : memref<32x64xbf16, #tpu.memory_space<vmem>>, vector<32x64xbf16>
    tpu.vector_store %arg6[%c0_10, %c0_11], %14 {strides = array<i32>} : memref<32x64xbf16, #tpu.memory_space<vmem>>, vector<32x64xbf16>,
    return
  }
  func.func @transform_0(%arg0: i32) -> (i32, i32) {
    %c0_i32 = arith.constant 0 : i32
    %c0_i32_0 = arith.constant 0 : i32
    return %arg0, %c0_i32 : i32, i32
  }
  func.func @transform_1(%arg0: i32) -> (i32, i32) {
    %c0_i32 = arith.constant 0 : i32
    %c0_i32_0 = arith.constant 0 : i32
    %c0_i32_1 = arith.constant 0 : i32
    return %c0_i32, %c0_i32_0 : i32, i32
  }
  func.func @transform_2(%arg0: i32) -> (i32, i32) {
    %c0_i32 = arith.constant 0 : i32
    %c0_i32_0 = arith.constant 0 : i32
    %c0_i32_1 = arith.constant 0 : i32
    return %c0_i32, %c0_i32_0 : i32, i32
  }
  func.func @transform_3(%arg0: i32) -> (i32, i32) {
    %c0_i32 = arith.constant 0 : i32
    %c0_i32_0 = arith.constant 0 : i32
    %c0_i32_1 = arith.constant 0 : i32
    return %c0_i32, %c0_i32_0 : i32, i32
  }
  func.func @transform_4(%arg0: i32) -> (i32, i32) {
    %c0_i32 = arith.constant 0 : i32
    %c0_i32_0 = arith.constant 0 : i32
    return %arg0, %c0_i32 : i32, i32
  }
  func.func @transform_5(%arg0: i32) -> (i32, i32) {
    %c0_i32 = arith.constant 0 : i32
    %c0_i32_0 = arith.constant 0 : i32
    return %arg0, %c0_i32 : i32, i32
  }
}

module attributes {stable_mosaic.version = 11 : i64} {
  func.func @_mm_affine_kernel(%arg0: i32, %arg1: memref<8x384xbf16, #tpu.memory_space<vmem>>, %arg2: memref<384x128xbf16, #tpu.memory_space<vmem>>, %arg3: memref<1x128xf32, #tpu.memory_space<vmem>>, %arg4: memref<1x128xf32, #tpu.memory_space<vmem>>, %arg5: memref<8x128xbf16, #tpu.memory_space<vmem>>) attributes {dimension_semantics = [#tpu.dimension_semantics<parallel>], iteration_bounds = array<i64: 1>, scalar_prefetch = 0 : i64, scratch_operands = 0 : i64, tpu.core_type = #tpu.core_type<tc>, window_params = [{transform_indices = @transform_0, window_bounds = array<i64: 8, 384>}, {pipeline_mode = #tpu.pipeline_mode<synchronous>, transform_indices = @transform_1, window_bounds = array<i64: 384, 128>}, {pipeline_mode = #tpu.pipeline_mode<synchronous>, transform_indices = @transform_2, window_bounds = array<i64: 1, 128>}, {pipeline_mode = #tpu.pipeline_mode<synchronous>, transform_indices = @transform_3, window_bounds = array<i64: 1, 128>}, {transform_indices = @transform_4, window_bounds = array<i64: 8, 128>}]} {
    %c0 = arith.constant 0 : index
    %c0_0 = arith.constant 0 : index
    %0 = vector.load %arg1[%c0, %c0_0] : memref<8x384xbf16, #tpu.memory_space<vmem>>, vector<8x384xbf16>
    %c0_1 = arith.constant 0 : index
    %c0_2 = arith.constant 0 : index
    %1 = vector.load %arg2[%c0_1, %c0_2] : memref<384x128xbf16, #tpu.memory_space<vmem>>, vector<384x128xbf16>
    %cst = arith.constant dense<0.000000e+00> : vector<8x128xf32>
    %2 = tpu.matmul %0, %1, %cst {dimension_numbers = #tpu.dot_dimension_numbers<[1], [0], [0], [1], [0, 0, 1, 1], [], []>} : vector<8x384xbf16>, vector<384x128xbf16>, vector<8x128xf32> -> vector<8x128xf32>
    %c0_3 = arith.constant 0 : index
    %c0_4 = arith.constant 0 : index
    %3 = vector.load %arg3[%c0_3, %c0_4] : memref<1x128xf32, #tpu.memory_space<vmem>>, vector<1x128xf32>
    %4 = vector.broadcast %3 : vector<1x128xf32> to vector<8x128xf32>
    %5 = arith.mulf %2, %4 : vector<8x128xf32>
    %c0_5 = arith.constant 0 : index
    %c0_6 = arith.constant 0 : index
    %6 = vector.load %arg4[%c0_5, %c0_6] : memref<1x128xf32, #tpu.memory_space<vmem>>, vector<1x128xf32>
    %7 = vector.broadcast %6 : vector<1x128xf32> to vector<8x128xf32>
    %8 = arith.addf %5, %7 : vector<8x128xf32>
    %cst_7 = arith.constant 0.000000e+00 : f32
    %9 = vector.broadcast %cst_7 : f32 to vector<8x128xf32>
    %10 = arith.maximumf %8, %9 : vector<8x128xf32>
    %11 = arith.truncf %10 : vector<8x128xf32> to vector<8x128xbf16>
    %c0_8 = arith.constant 0 : index
    %c0_9 = arith.constant 0 : index
    %12 = vector.load %arg5[%c0_8, %c0_9] : memref<8x128xbf16, #tpu.memory_space<vmem>>, vector<8x128xbf16>
    tpu.vector_store %arg5[%c0_8, %c0_9], %11 {strides = array<i32>} : memref<8x128xbf16, #tpu.memory_space<vmem>>, vector<8x128xbf16>,
    return
  }
  func.func @transform_0(%arg0: i32) -> (i32, i32) {
    %c0_i32 = arith.constant 0 : i32
    %c0_i32_0 = arith.constant 0 : i32
    return %arg0, %c0_i32 : i32, i32
  }
  func.func @transform_1(%arg0: i32) -> (i32, i32) {
    %c0_i32 = arith.constant 0 : i32
    %c0_i32_0 = arith.constant 0 : i32
    %c0_i32_1 = arith.constant 0 : i32
    return %c0_i32, %c0_i32_0 : i32, i32
  }
  func.func @transform_2(%arg0: i32) -> (i32, i32) {
    %c0_i32 = arith.constant 0 : i32
    %c0_i32_0 = arith.constant 0 : i32
    %c0_i32_1 = arith.constant 0 : i32
    return %c0_i32, %c0_i32_0 : i32, i32
  }
  func.func @transform_3(%arg0: i32) -> (i32, i32) {
    %c0_i32 = arith.constant 0 : i32
    %c0_i32_0 = arith.constant 0 : i32
    %c0_i32_1 = arith.constant 0 : i32
    return %c0_i32, %c0_i32_0 : i32, i32
  }
  func.func @transform_4(%arg0: i32) -> (i32, i32) {
    %c0_i32 = arith.constant 0 : i32
    %c0_i32_0 = arith.constant 0 : i32
    return %arg0, %c0_i32 : i32, i32
  }
}

module attributes {stable_mosaic.version = 11 : i64} {
  func.func @_mm_affine_kernel(%arg0: i32, %arg1: memref<8x640xbf16, #tpu.memory_space<vmem>>, %arg2: memref<640x128xbf16, #tpu.memory_space<vmem>>, %arg3: memref<1x128xf32, #tpu.memory_space<vmem>>, %arg4: memref<1x128xf32, #tpu.memory_space<vmem>>, %arg5: memref<8x128xbf16, #tpu.memory_space<vmem>>) attributes {dimension_semantics = [#tpu.dimension_semantics<parallel>], iteration_bounds = array<i64: 1>, scalar_prefetch = 0 : i64, scratch_operands = 0 : i64, tpu.core_type = #tpu.core_type<tc>, window_params = [{transform_indices = @transform_0, window_bounds = array<i64: 8, 640>}, {pipeline_mode = #tpu.pipeline_mode<synchronous>, transform_indices = @transform_1, window_bounds = array<i64: 640, 128>}, {pipeline_mode = #tpu.pipeline_mode<synchronous>, transform_indices = @transform_2, window_bounds = array<i64: 1, 128>}, {pipeline_mode = #tpu.pipeline_mode<synchronous>, transform_indices = @transform_3, window_bounds = array<i64: 1, 128>}, {transform_indices = @transform_4, window_bounds = array<i64: 8, 128>}]} {
    %c0 = arith.constant 0 : index
    %c0_0 = arith.constant 0 : index
    %0 = vector.load %arg1[%c0, %c0_0] : memref<8x640xbf16, #tpu.memory_space<vmem>>, vector<8x640xbf16>
    %c0_1 = arith.constant 0 : index
    %c0_2 = arith.constant 0 : index
    %1 = vector.load %arg2[%c0_1, %c0_2] : memref<640x128xbf16, #tpu.memory_space<vmem>>, vector<640x128xbf16>
    %cst = arith.constant dense<0.000000e+00> : vector<8x128xf32>
    %2 = tpu.matmul %0, %1, %cst {dimension_numbers = #tpu.dot_dimension_numbers<[1], [0], [0], [1], [0, 0, 1, 1], [], []>} : vector<8x640xbf16>, vector<640x128xbf16>, vector<8x128xf32> -> vector<8x128xf32>
    %c0_3 = arith.constant 0 : index
    %c0_4 = arith.constant 0 : index
    %3 = vector.load %arg3[%c0_3, %c0_4] : memref<1x128xf32, #tpu.memory_space<vmem>>, vector<1x128xf32>
    %4 = vector.broadcast %3 : vector<1x128xf32> to vector<8x128xf32>
    %5 = arith.mulf %2, %4 : vector<8x128xf32>
    %c0_5 = arith.constant 0 : index
    %c0_6 = arith.constant 0 : index
    %6 = vector.load %arg4[%c0_5, %c0_6] : memref<1x128xf32, #tpu.memory_space<vmem>>, vector<1x128xf32>
    %7 = vector.broadcast %6 : vector<1x128xf32> to vector<8x128xf32>
    %8 = arith.addf %5, %7 : vector<8x128xf32>
    %cst_7 = arith.constant 0.000000e+00 : f32
    %9 = vector.broadcast %cst_7 : f32 to vector<8x128xf32>
    %10 = arith.maximumf %8, %9 : vector<8x128xf32>
    %11 = arith.truncf %10 : vector<8x128xf32> to vector<8x128xbf16>
    %c0_8 = arith.constant 0 : index
    %c0_9 = arith.constant 0 : index
    %12 = vector.load %arg5[%c0_8, %c0_9] : memref<8x128xbf16, #tpu.memory_space<vmem>>, vector<8x128xbf16>
    tpu.vector_store %arg5[%c0_8, %c0_9], %11 {strides = array<i32>} : memref<8x128xbf16, #tpu.memory_space<vmem>>, vector<8x128xbf16>,
    return
  }
  func.func @transform_0(%arg0: i32) -> (i32, i32) {
    %c0_i32 = arith.constant 0 : i32
    %c0_i32_0 = arith.constant 0 : i32
    return %arg0, %c0_i32 : i32, i32
  }
  func.func @transform_1(%arg0: i32) -> (i32, i32) {
    %c0_i32 = arith.constant 0 : i32
    %c0_i32_0 = arith.constant 0 : i32
    %c0_i32_1 = arith.constant 0 : i32
    return %c0_i32, %c0_i32_0 : i32, i32
  }
  func.func @transform_2(%arg0: i32) -> (i32, i32) {
    %c0_i32 = arith.constant 0 : i32
    %c0_i32_0 = arith.constant 0 : i32
    %c0_i32_1 = arith.constant 0 : i32
    return %c0_i32, %c0_i32_0 : i32, i32
  }
  func.func @transform_3(%arg0: i32) -> (i32, i32) {
    %c0_i32 = arith.constant 0 : i32
    %c0_i32_0 = arith.constant 0 : i32
    %c0_i32_1 = arith.constant 0 : i32
    return %c0_i32, %c0_i32_0 : i32, i32
  }
  func.func @transform_4(%arg0: i32) -> (i32, i32) {
    %c0_i32 = arith.constant 0 : i32
    %c0_i32_0 = arith.constant 0 : i32
    return %arg0, %c0_i32 : i32, i32
  }
}

module attributes {stable_mosaic.version = 11 : i64} {
  func.func @_mm_affine_res_kernel(%arg0: i32, %arg1: memref<8x384xbf16, #tpu.memory_space<vmem>>, %arg2: memref<384x128xbf16, #tpu.memory_space<vmem>>, %arg3: memref<1x128xf32, #tpu.memory_space<vmem>>, %arg4: memref<1x128xf32, #tpu.memory_space<vmem>>, %arg5: memref<8x128xbf16, #tpu.memory_space<vmem>>, %arg6: memref<8x128xbf16, #tpu.memory_space<vmem>>) attributes {dimension_semantics = [#tpu.dimension_semantics<parallel>], iteration_bounds = array<i64: 1>, scalar_prefetch = 0 : i64, scratch_operands = 0 : i64, tpu.core_type = #tpu.core_type<tc>, window_params = [{transform_indices = @transform_0, window_bounds = array<i64: 8, 384>}, {pipeline_mode = #tpu.pipeline_mode<synchronous>, transform_indices = @transform_1, window_bounds = array<i64: 384, 128>}, {pipeline_mode = #tpu.pipeline_mode<synchronous>, transform_indices = @transform_2, window_bounds = array<i64: 1, 128>}, {pipeline_mode = #tpu.pipeline_mode<synchronous>, transform_indices = @transform_3, window_bounds = array<i64: 1, 128>}, {transform_indices = @transform_4, window_bounds = array<i64: 8, 128>}, {transform_indices = @transform_5, window_bounds = array<i64: 8, 128>}]} {
    %c0 = arith.constant 0 : index
    %c0_0 = arith.constant 0 : index
    %0 = vector.load %arg1[%c0, %c0_0] : memref<8x384xbf16, #tpu.memory_space<vmem>>, vector<8x384xbf16>
    %c0_1 = arith.constant 0 : index
    %c0_2 = arith.constant 0 : index
    %1 = vector.load %arg2[%c0_1, %c0_2] : memref<384x128xbf16, #tpu.memory_space<vmem>>, vector<384x128xbf16>
    %cst = arith.constant dense<0.000000e+00> : vector<8x128xf32>
    %2 = tpu.matmul %0, %1, %cst {dimension_numbers = #tpu.dot_dimension_numbers<[1], [0], [0], [1], [0, 0, 1, 1], [], []>} : vector<8x384xbf16>, vector<384x128xbf16>, vector<8x128xf32> -> vector<8x128xf32>
    %c0_3 = arith.constant 0 : index
    %c0_4 = arith.constant 0 : index
    %3 = vector.load %arg3[%c0_3, %c0_4] : memref<1x128xf32, #tpu.memory_space<vmem>>, vector<1x128xf32>
    %4 = vector.broadcast %3 : vector<1x128xf32> to vector<8x128xf32>
    %5 = arith.mulf %2, %4 : vector<8x128xf32>
    %c0_5 = arith.constant 0 : index
    %c0_6 = arith.constant 0 : index
    %6 = vector.load %arg4[%c0_5, %c0_6] : memref<1x128xf32, #tpu.memory_space<vmem>>, vector<1x128xf32>
    %7 = vector.broadcast %6 : vector<1x128xf32> to vector<8x128xf32>
    %8 = arith.addf %5, %7 : vector<8x128xf32>
    %c0_7 = arith.constant 0 : index
    %c0_8 = arith.constant 0 : index
    %9 = vector.load %arg5[%c0_7, %c0_8] : memref<8x128xbf16, #tpu.memory_space<vmem>>, vector<8x128xbf16>
    %10 = arith.extf %9 : vector<8x128xbf16> to vector<8x128xf32>
    %11 = arith.addf %8, %10 : vector<8x128xf32>
    %cst_9 = arith.constant 0.000000e+00 : f32
    %12 = vector.broadcast %cst_9 : f32 to vector<8x128xf32>
    %13 = arith.maximumf %11, %12 : vector<8x128xf32>
    %14 = arith.truncf %13 : vector<8x128xf32> to vector<8x128xbf16>
    %c0_10 = arith.constant 0 : index
    %c0_11 = arith.constant 0 : index
    %15 = vector.load %arg6[%c0_10, %c0_11] : memref<8x128xbf16, #tpu.memory_space<vmem>>, vector<8x128xbf16>
    tpu.vector_store %arg6[%c0_10, %c0_11], %14 {strides = array<i32>} : memref<8x128xbf16, #tpu.memory_space<vmem>>, vector<8x128xbf16>,
    return
  }
  func.func @transform_0(%arg0: i32) -> (i32, i32) {
    %c0_i32 = arith.constant 0 : i32
    %c0_i32_0 = arith.constant 0 : i32
    return %arg0, %c0_i32 : i32, i32
  }
  func.func @transform_1(%arg0: i32) -> (i32, i32) {
    %c0_i32 = arith.constant 0 : i32
    %c0_i32_0 = arith.constant 0 : i32
    %c0_i32_1 = arith.constant 0 : i32
    return %c0_i32, %c0_i32_0 : i32, i32
  }
  func.func @transform_2(%arg0: i32) -> (i32, i32) {
    %c0_i32 = arith.constant 0 : i32
    %c0_i32_0 = arith.constant 0 : i32
    %c0_i32_1 = arith.constant 0 : i32
    return %c0_i32, %c0_i32_0 : i32, i32
  }
  func.func @transform_3(%arg0: i32) -> (i32, i32) {
    %c0_i32 = arith.constant 0 : i32
    %c0_i32_0 = arith.constant 0 : i32
    %c0_i32_1 = arith.constant 0 : i32
    return %c0_i32, %c0_i32_0 : i32, i32
  }
  func.func @transform_4(%arg0: i32) -> (i32, i32) {
    %c0_i32 = arith.constant 0 : i32
    %c0_i32_0 = arith.constant 0 : i32
    return %arg0, %c0_i32 : i32, i32
  }
  func.func @transform_5(%arg0: i32) -> (i32, i32) {
    %c0_i32 = arith.constant 0 : i32
    %c0_i32_0 = arith.constant 0 : i32
    return %arg0, %c0_i32 : i32, i32
  }
}

module attributes {stable_mosaic.version = 11 : i64} {
  func.func @_mm_affine_kernel(%arg0: i32, %arg1: memref<8x512xbf16, #tpu.memory_space<vmem>>, %arg2: memref<512x256xbf16, #tpu.memory_space<vmem>>, %arg3: memref<1x256xf32, #tpu.memory_space<vmem>>, %arg4: memref<1x256xf32, #tpu.memory_space<vmem>>, %arg5: memref<8x256xbf16, #tpu.memory_space<vmem>>) attributes {dimension_semantics = [#tpu.dimension_semantics<parallel>], iteration_bounds = array<i64: 1>, scalar_prefetch = 0 : i64, scratch_operands = 0 : i64, tpu.core_type = #tpu.core_type<tc>, window_params = [{transform_indices = @transform_0, window_bounds = array<i64: 8, 512>}, {pipeline_mode = #tpu.pipeline_mode<synchronous>, transform_indices = @transform_1, window_bounds = array<i64: 512, 256>}, {pipeline_mode = #tpu.pipeline_mode<synchronous>, transform_indices = @transform_2, window_bounds = array<i64: 1, 256>}, {pipeline_mode = #tpu.pipeline_mode<synchronous>, transform_indices = @transform_3, window_bounds = array<i64: 1, 256>}, {transform_indices = @transform_4, window_bounds = array<i64: 8, 256>}]} {
    %c0 = arith.constant 0 : index
    %c0_0 = arith.constant 0 : index
    %0 = vector.load %arg1[%c0, %c0_0] : memref<8x512xbf16, #tpu.memory_space<vmem>>, vector<8x512xbf16>
    %c0_1 = arith.constant 0 : index
    %c0_2 = arith.constant 0 : index
    %1 = vector.load %arg2[%c0_1, %c0_2] : memref<512x256xbf16, #tpu.memory_space<vmem>>, vector<512x256xbf16>
    %cst = arith.constant dense<0.000000e+00> : vector<8x256xf32>
    %2 = tpu.matmul %0, %1, %cst {dimension_numbers = #tpu.dot_dimension_numbers<[1], [0], [0], [1], [0, 0, 1, 1], [], []>} : vector<8x512xbf16>, vector<512x256xbf16>, vector<8x256xf32> -> vector<8x256xf32>
    %c0_3 = arith.constant 0 : index
    %c0_4 = arith.constant 0 : index
    %3 = vector.load %arg3[%c0_3, %c0_4] : memref<1x256xf32, #tpu.memory_space<vmem>>, vector<1x256xf32>
    %4 = vector.broadcast %3 : vector<1x256xf32> to vector<8x256xf32>
    %5 = arith.mulf %2, %4 : vector<8x256xf32>
    %c0_5 = arith.constant 0 : index
    %c0_6 = arith.constant 0 : index
    %6 = vector.load %arg4[%c0_5, %c0_6] : memref<1x256xf32, #tpu.memory_space<vmem>>, vector<1x256xf32>
    %7 = vector.broadcast %6 : vector<1x256xf32> to vector<8x256xf32>
    %8 = arith.addf %5, %7 : vector<8x256xf32>
    %cst_7 = arith.constant 0.000000e+00 : f32
    %9 = vector.broadcast %cst_7 : f32 to vector<8x256xf32>
    %10 = arith.maximumf %8, %9 : vector<8x256xf32>
    %11 = arith.truncf %10 : vector<8x256xf32> to vector<8x256xbf16>
    %c0_8 = arith.constant 0 : index
    %c0_9 = arith.constant 0 : index
    %12 = vector.load %arg5[%c0_8, %c0_9] : memref<8x256xbf16, #tpu.memory_space<vmem>>, vector<8x256xbf16>
    tpu.vector_store %arg5[%c0_8, %c0_9], %11 {strides = array<i32>} : memref<8x256xbf16, #tpu.memory_space<vmem>>, vector<8x256xbf16>,
    return
  }
  func.func @transform_0(%arg0: i32) -> (i32, i32) {
    %c0_i32 = arith.constant 0 : i32
    %c0_i32_0 = arith.constant 0 : i32
    return %arg0, %c0_i32 : i32, i32
  }
  func.func @transform_1(%arg0: i32) -> (i32, i32) {
    %c0_i32 = arith.constant 0 : i32
    %c0_i32_0 = arith.constant 0 : i32
    %c0_i32_1 = arith.constant 0 : i32
    return %c0_i32, %c0_i32_0 : i32, i32
  }
  func.func @transform_2(%arg0: i32) -> (i32, i32) {
    %c0_i32 = arith.constant 0 : i32
    %c0_i32_0 = arith.constant 0 : i32
    %c0_i32_1 = arith.constant 0 : i32
    return %c0_i32, %c0_i32_0 : i32, i32
  }
  func.func @transform_3(%arg0: i32) -> (i32, i32) {
    %c0_i32 = arith.constant 0 : i32
    %c0_i32_0 = arith.constant 0 : i32
    %c0_i32_1 = arith.constant 0 : i32
    return %c0_i32, %c0_i32_0 : i32, i32
  }
  func.func @transform_4(%arg0: i32) -> (i32, i32) {
    %c0_i32 = arith.constant 0 : i32
    %c0_i32_0 = arith.constant 0 : i32
    return %arg0, %c0_i32 : i32, i32
  }
}

module attributes {stable_mosaic.version = 11 : i64} {
  func.func @_mm_affine_kernel(%arg0: i32, %arg1: memref<32x576xbf16, #tpu.memory_space<vmem>>, %arg2: memref<576x64xbf16, #tpu.memory_space<vmem>>, %arg3: memref<1x64xf32, #tpu.memory_space<vmem>>, %arg4: memref<1x64xf32, #tpu.memory_space<vmem>>, %arg5: memref<32x64xbf16, #tpu.memory_space<vmem>>) attributes {dimension_semantics = [#tpu.dimension_semantics<parallel>], iteration_bounds = array<i64: 1>, scalar_prefetch = 0 : i64, scratch_operands = 0 : i64, tpu.core_type = #tpu.core_type<tc>, window_params = [{transform_indices = @transform_0, window_bounds = array<i64: 32, 576>}, {pipeline_mode = #tpu.pipeline_mode<synchronous>, transform_indices = @transform_1, window_bounds = array<i64: 576, 64>}, {pipeline_mode = #tpu.pipeline_mode<synchronous>, transform_indices = @transform_2, window_bounds = array<i64: 1, 64>}, {pipeline_mode = #tpu.pipeline_mode<synchronous>, transform_indices = @transform_3, window_bounds = array<i64: 1, 64>}, {transform_indices = @transform_4, window_bounds = array<i64: 32, 64>}]} {
    %c0 = arith.constant 0 : index
    %c0_0 = arith.constant 0 : index
    %0 = vector.load %arg1[%c0, %c0_0] : memref<32x576xbf16, #tpu.memory_space<vmem>>, vector<32x576xbf16>
    %c0_1 = arith.constant 0 : index
    %c0_2 = arith.constant 0 : index
    %1 = vector.load %arg2[%c0_1, %c0_2] : memref<576x64xbf16, #tpu.memory_space<vmem>>, vector<576x64xbf16>
    %cst = arith.constant dense<0.000000e+00> : vector<32x64xf32>
    %2 = tpu.matmul %0, %1, %cst {dimension_numbers = #tpu.dot_dimension_numbers<[1], [0], [0], [1], [0, 0, 1, 1], [], []>} : vector<32x576xbf16>, vector<576x64xbf16>, vector<32x64xf32> -> vector<32x64xf32>
    %c0_3 = arith.constant 0 : index
    %c0_4 = arith.constant 0 : index
    %3 = vector.load %arg3[%c0_3, %c0_4] : memref<1x64xf32, #tpu.memory_space<vmem>>, vector<1x64xf32>
    %4 = vector.broadcast %3 : vector<1x64xf32> to vector<32x64xf32>
    %5 = arith.mulf %2, %4 : vector<32x64xf32>
    %c0_5 = arith.constant 0 : index
    %c0_6 = arith.constant 0 : index
    %6 = vector.load %arg4[%c0_5, %c0_6] : memref<1x64xf32, #tpu.memory_space<vmem>>, vector<1x64xf32>
    %7 = vector.broadcast %6 : vector<1x64xf32> to vector<32x64xf32>
    %8 = arith.addf %5, %7 : vector<32x64xf32>
    %cst_7 = arith.constant 0.000000e+00 : f32
    %9 = vector.broadcast %cst_7 : f32 to vector<32x64xf32>
    %10 = arith.maximumf %8, %9 : vector<32x64xf32>
    %11 = arith.truncf %10 : vector<32x64xf32> to vector<32x64xbf16>
    %c0_8 = arith.constant 0 : index
    %c0_9 = arith.constant 0 : index
    %12 = vector.load %arg5[%c0_8, %c0_9] : memref<32x64xbf16, #tpu.memory_space<vmem>>, vector<32x64xbf16>
    tpu.vector_store %arg5[%c0_8, %c0_9], %11 {strides = array<i32>} : memref<32x64xbf16, #tpu.memory_space<vmem>>, vector<32x64xbf16>,
    return
  }
  func.func @transform_0(%arg0: i32) -> (i32, i32) {
    %c0_i32 = arith.constant 0 : i32
    %c0_i32_0 = arith.constant 0 : i32
    return %arg0, %c0_i32 : i32, i32
  }
  func.func @transform_1(%arg0: i32) -> (i32, i32) {
    %c0_i32 = arith.constant 0 : i32
    %c0_i32_0 = arith.constant 0 : i32
    %c0_i32_1 = arith.constant 0 : i32
    return %c0_i32, %c0_i32_0 : i32, i32
  }
  func.func @transform_2(%arg0: i32) -> (i32, i32) {
    %c0_i32 = arith.constant 0 : i32
    %c0_i32_0 = arith.constant 0 : i32
    %c0_i32_1 = arith.constant 0 : i32
    return %c0_i32, %c0_i32_0 : i32, i32
  }
  func.func @transform_3(%arg0: i32) -> (i32, i32) {
    %c0_i32 = arith.constant 0 : i32
    %c0_i32_0 = arith.constant 0 : i32
    %c0_i32_1 = arith.constant 0 : i32
    return %c0_i32, %c0_i32_0 : i32, i32
  }
  func.func @transform_4(%arg0: i32) -> (i32, i32) {
    %c0_i32 = arith.constant 0 : i32
    %c0_i32_0 = arith.constant 0 : i32
    return %arg0, %c0_i32 : i32, i32
  }
}

module attributes {stable_mosaic.version = 11 : i64} {
  func.func @_mm_affine_kernel(%arg0: i32, %arg1: memref<32x256xbf16, #tpu.memory_space<vmem>>, %arg2: memref<256x64xbf16, #tpu.memory_space<vmem>>, %arg3: memref<1x64xf32, #tpu.memory_space<vmem>>, %arg4: memref<1x64xf32, #tpu.memory_space<vmem>>, %arg5: memref<32x64xbf16, #tpu.memory_space<vmem>>) attributes {dimension_semantics = [#tpu.dimension_semantics<parallel>], iteration_bounds = array<i64: 1>, scalar_prefetch = 0 : i64, scratch_operands = 0 : i64, tpu.core_type = #tpu.core_type<tc>, window_params = [{transform_indices = @transform_0, window_bounds = array<i64: 32, 256>}, {pipeline_mode = #tpu.pipeline_mode<synchronous>, transform_indices = @transform_1, window_bounds = array<i64: 256, 64>}, {pipeline_mode = #tpu.pipeline_mode<synchronous>, transform_indices = @transform_2, window_bounds = array<i64: 1, 64>}, {pipeline_mode = #tpu.pipeline_mode<synchronous>, transform_indices = @transform_3, window_bounds = array<i64: 1, 64>}, {transform_indices = @transform_4, window_bounds = array<i64: 32, 64>}]} {
    %c0 = arith.constant 0 : index
    %c0_0 = arith.constant 0 : index
    %0 = vector.load %arg1[%c0, %c0_0] : memref<32x256xbf16, #tpu.memory_space<vmem>>, vector<32x256xbf16>
    %c0_1 = arith.constant 0 : index
    %c0_2 = arith.constant 0 : index
    %1 = vector.load %arg2[%c0_1, %c0_2] : memref<256x64xbf16, #tpu.memory_space<vmem>>, vector<256x64xbf16>
    %cst = arith.constant dense<0.000000e+00> : vector<32x64xf32>
    %2 = tpu.matmul %0, %1, %cst {dimension_numbers = #tpu.dot_dimension_numbers<[1], [0], [0], [1], [0, 0, 1, 1], [], []>} : vector<32x256xbf16>, vector<256x64xbf16>, vector<32x64xf32> -> vector<32x64xf32>
    %c0_3 = arith.constant 0 : index
    %c0_4 = arith.constant 0 : index
    %3 = vector.load %arg3[%c0_3, %c0_4] : memref<1x64xf32, #tpu.memory_space<vmem>>, vector<1x64xf32>
    %4 = vector.broadcast %3 : vector<1x64xf32> to vector<32x64xf32>
    %5 = arith.mulf %2, %4 : vector<32x64xf32>
    %c0_5 = arith.constant 0 : index
    %c0_6 = arith.constant 0 : index
    %6 = vector.load %arg4[%c0_5, %c0_6] : memref<1x64xf32, #tpu.memory_space<vmem>>, vector<1x64xf32>
    %7 = vector.broadcast %6 : vector<1x64xf32> to vector<32x64xf32>
    %8 = arith.addf %5, %7 : vector<32x64xf32>
    %cst_7 = arith.constant 0.000000e+00 : f32
    %9 = vector.broadcast %cst_7 : f32 to vector<32x64xf32>
    %10 = arith.maximumf %8, %9 : vector<32x64xf32>
    %11 = arith.truncf %10 : vector<32x64xf32> to vector<32x64xbf16>
    %c0_8 = arith.constant 0 : index
    %c0_9 = arith.constant 0 : index
    %12 = vector.load %arg5[%c0_8, %c0_9] : memref<32x64xbf16, #tpu.memory_space<vmem>>, vector<32x64xbf16>
    tpu.vector_store %arg5[%c0_8, %c0_9], %11 {strides = array<i32>} : memref<32x64xbf16, #tpu.memory_space<vmem>>, vector<32x64xbf16>,
    return
  }
  func.func @transform_0(%arg0: i32) -> (i32, i32) {
    %c0_i32 = arith.constant 0 : i32
    %c0_i32_0 = arith.constant 0 : i32
    return %arg0, %c0_i32 : i32, i32
  }
  func.func @transform_1(%arg0: i32) -> (i32, i32) {
    %c0_i32 = arith.constant 0 : i32
    %c0_i32_0 = arith.constant 0 : i32
    %c0_i32_1 = arith.constant 0 : i32
    return %c0_i32, %c0_i32_0 : i32, i32
  }
  func.func @transform_2(%arg0: i32) -> (i32, i32) {
    %c0_i32 = arith.constant 0 : i32
    %c0_i32_0 = arith.constant 0 : i32
    %c0_i32_1 = arith.constant 0 : i32
    return %c0_i32, %c0_i32_0 : i32, i32
  }
  func.func @transform_3(%arg0: i32) -> (i32, i32) {
    %c0_i32 = arith.constant 0 : i32
    %c0_i32_0 = arith.constant 0 : i32
    %c0_i32_1 = arith.constant 0 : i32
    return %c0_i32, %c0_i32_0 : i32, i32
  }
  func.func @transform_4(%arg0: i32) -> (i32, i32) {
    %c0_i32 = arith.constant 0 : i32
    %c0_i32_0 = arith.constant 0 : i32
    return %arg0, %c0_i32 : i32, i32
  }
}

module attributes {stable_mosaic.version = 11 : i64} {
  func.func @_ladder_out_kernel(%arg0: i32, %arg1: memref<128x144xbf16, #tpu.memory_space<vmem>>, %arg2: memref<144x16xbf16, #tpu.memory_space<vmem>>, %arg3: memref<1x16xf32, #tpu.memory_space<vmem>>, %arg4: memref<1x16xf32, #tpu.memory_space<vmem>>, %arg5: memref<16x4xbf16, #tpu.memory_space<vmem>>, %arg6: memref<1x4xf32, #tpu.memory_space<vmem>>, %arg7: memref<128x4xf32, #tpu.memory_space<vmem>>) attributes {dimension_semantics = [#tpu.dimension_semantics<parallel>], iteration_bounds = array<i64: 1>, scalar_prefetch = 0 : i64, scratch_operands = 0 : i64, tpu.core_type = #tpu.core_type<tc>, window_params = [{transform_indices = @transform_0, window_bounds = array<i64: 128, 144>}, {pipeline_mode = #tpu.pipeline_mode<synchronous>, transform_indices = @transform_1, window_bounds = array<i64: 144, 16>}, {pipeline_mode = #tpu.pipeline_mode<synchronous>, transform_indices = @transform_2, window_bounds = array<i64: 1, 16>}, {pipeline_mode = #tpu.pipeline_mode<synchronous>, transform_indices = @transform_3, window_bounds = array<i64: 1, 16>}, {pipeline_mode = #tpu.pipeline_mode<synchronous>, transform_indices = @transform_4, window_bounds = array<i64: 16, 4>}, {pipeline_mode = #tpu.pipeline_mode<synchronous>, transform_indices = @transform_5, window_bounds = array<i64: 1, 4>}, {transform_indices = @transform_6, window_bounds = array<i64: 128, 4>}]} {
    %c0 = arith.constant 0 : index
    %c0_0 = arith.constant 0 : index
    %0 = vector.load %arg1[%c0, %c0_0] : memref<128x144xbf16, #tpu.memory_space<vmem>>, vector<128x144xbf16>
    %c0_1 = arith.constant 0 : index
    %c0_2 = arith.constant 0 : index
    %1 = vector.load %arg2[%c0_1, %c0_2] : memref<144x16xbf16, #tpu.memory_space<vmem>>, vector<144x16xbf16>
    %cst = arith.constant dense<0.000000e+00> : vector<128x16xf32>
    %2 = tpu.matmul %0, %1, %cst {dimension_numbers = #tpu.dot_dimension_numbers<[1], [0], [0], [1], [0, 0, 1, 1], [], []>} : vector<128x144xbf16>, vector<144x16xbf16>, vector<128x16xf32> -> vector<128x16xf32>
    %c0_3 = arith.constant 0 : index
    %c0_4 = arith.constant 0 : index
    %3 = vector.load %arg3[%c0_3, %c0_4] : memref<1x16xf32, #tpu.memory_space<vmem>>, vector<1x16xf32>
    %4 = vector.broadcast %3 : vector<1x16xf32> to vector<128x16xf32>
    %5 = arith.mulf %2, %4 : vector<128x16xf32>
    %c0_5 = arith.constant 0 : index
    %c0_6 = arith.constant 0 : index
    %6 = vector.load %arg4[%c0_5, %c0_6] : memref<1x16xf32, #tpu.memory_space<vmem>>, vector<1x16xf32>
    %7 = vector.broadcast %6 : vector<1x16xf32> to vector<128x16xf32>
    %8 = arith.addf %5, %7 : vector<128x16xf32>
    %cst_7 = arith.constant 0.000000e+00 : f32
    %9 = vector.broadcast %cst_7 : f32 to vector<128x16xf32>
    %10 = arith.maximumf %8, %9 : vector<128x16xf32>
    %11 = arith.truncf %10 : vector<128x16xf32> to vector<128x16xbf16>
    %c0_8 = arith.constant 0 : index
    %c0_9 = arith.constant 0 : index
    %12 = vector.load %arg5[%c0_8, %c0_9] : memref<16x4xbf16, #tpu.memory_space<vmem>>, vector<16x4xbf16>
    %cst_10 = arith.constant dense<0.000000e+00> : vector<128x4xf32>
    %13 = tpu.matmul %11, %12, %cst_10 {dimension_numbers = #tpu.dot_dimension_numbers<[1], [0], [0], [1], [0, 0, 1, 1], [], []>} : vector<128x16xbf16>, vector<16x4xbf16>, vector<128x4xf32> -> vector<128x4xf32>
    %c0_11 = arith.constant 0 : index
    %c0_12 = arith.constant 0 : index
    %14 = vector.load %arg6[%c0_11, %c0_12] : memref<1x4xf32, #tpu.memory_space<vmem>>, vector<1x4xf32>
    %15 = vector.broadcast %14 : vector<1x4xf32> to vector<128x4xf32>
    %16 = arith.addf %13, %15 : vector<128x4xf32>
    %c0_13 = arith.constant 0 : index
    %c0_14 = arith.constant 0 : index
    %17 = vector.load %arg7[%c0_13, %c0_14] : memref<128x4xf32, #tpu.memory_space<vmem>>, vector<128x4xf32>
    tpu.vector_store %arg7[%c0_13, %c0_14], %16 {strides = array<i32>} : memref<128x4xf32, #tpu.memory_space<vmem>>, vector<128x4xf32>,
    return
  }
  func.func @transform_0(%arg0: i32) -> (i32, i32) {
    %c0_i32 = arith.constant 0 : i32
    %c0_i32_0 = arith.constant 0 : i32
    return %arg0, %c0_i32 : i32, i32
  }
  func.func @transform_1(%arg0: i32) -> (i32, i32) {
    %c0_i32 = arith.constant 0 : i32
    %c0_i32_0 = arith.constant 0 : i32
    %c0_i32_1 = arith.constant 0 : i32
    return %c0_i32, %c0_i32_0 : i32, i32
  }
  func.func @transform_2(%arg0: i32) -> (i32, i32) {
    %c0_i32 = arith.constant 0 : i32
    %c0_i32_0 = arith.constant 0 : i32
    %c0_i32_1 = arith.constant 0 : i32
    return %c0_i32, %c0_i32_0 : i32, i32
  }
  func.func @transform_3(%arg0: i32) -> (i32, i32) {
    %c0_i32 = arith.constant 0 : i32
    %c0_i32_0 = arith.constant 0 : i32
    %c0_i32_1 = arith.constant 0 : i32
    return %c0_i32, %c0_i32_0 : i32, i32
  }
  func.func @transform_4(%arg0: i32) -> (i32, i32) {
    %c0_i32 = arith.constant 0 : i32
    %c0_i32_0 = arith.constant 0 : i32
    %c0_i32_1 = arith.constant 0 : i32
    return %c0_i32, %c0_i32_0 : i32, i32
  }
  func.func @transform_5(%arg0: i32) -> (i32, i32) {
    %c0_i32 = arith.constant 0 : i32
    %c0_i32_0 = arith.constant 0 : i32
    %c0_i32_1 = arith.constant 0 : i32
    return %c0_i32, %c0_i32_0 : i32, i32
  }
  func.func @transform_6(%arg0: i32) -> (i32, i32) {
    %c0_i32 = arith.constant 0 : i32
    %c0_i32_0 = arith.constant 0 : i32
    return %arg0, %c0_i32 : i32, i32
  }
}

</mosaic_0001>

<llo_original>
// kernel: net_forward.59
$region0: #{net_forward.59}
  #allocation0 [shape = 'u32[]', space=smem, size = 0x4, offset = 0x4, fixed_abs, tag = 'smem constant byte address 0x4 - core index']
  #allocation1 [shape = 'u32[144,128]{1,0:T(1,128)}', space=vmem, size = 0x12000, scoped, tag = 'internal scratch']
  %s0 = inlined_call_operand.vmem [shape: bf16[128,30], index: 0, kind: input, shape index: {}]
  %s1 = inlined_call_operand.vmem [shape: bf16[30,16], index: 1, kind: input, shape index: {}]
  %s2 = inlined_call_operand.vmem [shape: f32[1,16], index: 2, kind: input, shape index: {}]
  %s3 = inlined_call_operand.vmem [shape: f32[1,16], index: 3, kind: input, shape index: {}]
  %s4 = inlined_call_operand.vmem [shape: bf16[128,16], index: 4, kind: output, shape index: {}]
  %s5 = sld [smem:[#allocation0]]
  $region26: #{net_forward.59} parent=0
    _
  %s7 = ssub.s32 1, %s5
  %s8 = scalar_select 0, %s7, %s5
  // Predicated region
  $region2: #{net_forward.59} parent=0 // pred_check
    _
  $region3: #{net_forward.59} parent=0 // pred_check_branch
    %10 = sbr.rel (0) target = $region5
  $region4: #{net_forward.59} parent=0 // pred_region
    _
  $region5: #{net_forward.59} parent=0 // pred_fallthru
    _
  // Predicated region
  $region6: #{net_forward.59} parent=0 // pred_check
    _
  $region7: #{net_forward.59} parent=0 // pred_check_branch
    %12 = sbr.rel (0) target = $region9
  $region8: #{net_forward.59} parent=0 // pred_region
    _
  $region9: #{net_forward.59} parent=0 // pred_fallthru
    _
  // Predicated region
  $region10: #{net_forward.59} parent=0 // pred_check
    _
  $region11: #{net_forward.59} parent=0 // pred_check_branch
    %14 = sbr.rel (0) target = $region13
  $region12: #{net_forward.59} parent=0 // pred_region
    _
  $region13: #{net_forward.59} parent=0 // pred_fallthru
    _
  // Predicated region
  $region14: #{net_forward.59} parent=0 // pred_check
    _
  $region15: #{net_forward.59} parent=0 // pred_check_branch
    %16 = sbr.rel (0) target = $region17
  $region16: #{net_forward.59} parent=0 // pred_region
    _
  $region17: #{net_forward.59} parent=0 // pred_fallthru
    _
  %v18 = vld [vmem:[%s0] sm:$0xf]
  %v19 = vld [vmem:[%s0 + $0x4] sm:$0xf]
  %v20 = vld [vmem:[%s0 + $0x8] sm:$0xf]
  %v21 = vld [vmem:[%s0 + $0xc] sm:$0xf]
  %v22 = vld [vmem:[%s0 + $0x10] sm:$0xf]
  %v23 = vld [vmem:[%s0 + $0x14] sm:$0xf]
  %v24 = vld [vmem:[%s0 + $0x18] sm:$0xf]
  %v25 = vld [vmem:[%s0 + $0x1c] sm:$0xf]
  %v26 = vld [vmem:[%s0 + $0x20] sm:$0xf]
  %v27 = vld [vmem:[%s0 + $0x24] sm:$0xf]
  %v28 = vld [vmem:[%s0 + $0x28] sm:$0xf]
  %v29 = vld [vmem:[%s0 + $0x2c] sm:$0xf]
  %v30 = vld [vmem:[%s0 + $0x30] sm:$0xf]
  %v31 = vld [vmem:[%s0 + $0x34] sm:$0xf]
  %v32 = vld [vmem:[%s0 + $0x38] sm:$0xf]
  %v33 = vld [vmem:[%s0 + $0x3c] sm:$0xf]
  %v34 = vld [vmem:[%s1] sm:$0xf]
  %v35 = vld [vmem:[%s1 + $0x4] sm:$0xf]
  %v36 = vld [vmem:[%s1 + $0x8] sm:$0xf]
  %v37 = vld [vmem:[%s1 + $0xc] sm:$0x7]
  %v54 = vunpack.c.l.b16 %v18
  %v55 = vunpack.c.l.b16 %v19
  %v56 = vunpack.c.l.b16 %v20
  %v57 = vunpack.c.l.b16 %v21
  %v58 = vunpack.c.l.b16 %v22
  %v59 = vunpack.c.l.b16 %v23
  %v60 = vunpack.c.l.b16 %v24
  %v61 = vunpack.c.l.b16 %v25
  %v62 = vunpack.c.l.b16 %v26
  %v63 = vunpack.c.l.b16 %v27
  %v64 = vunpack.c.l.b16 %v28
  %v65 = vunpack.c.l.b16 %v29
  %v66 = vunpack.c.l.b16 %v30
  %v67 = vunpack.c.l.b16 %v31
  %v68 = vunpack.c.l.b16 %v32
  %v69 = vunpack.c.l.b16 %v33
  %v70 = vpack.c.b16 %v55, %v54
  %v71 = vpack.c.b16 %v57, %v56
  %v72 = vpack.c.b16 %v59, %v58
  %v73 = vpack.c.b16 %v61, %v60
  %v74 = vpack.c.b16 %v63, %v62
  %v75 = vpack.c.b16 %v65, %v64
  %v76 = vpack.c.b16 %v67, %v66
  %v77 = vpack.c.b16 %v69, %v68
  %v82 = vunpack.c.l.b16 %v34
  %v83 = vunpack.c.l.b16 %v35
  %v84 = vunpack.c.l.b16 %v36
  %v85 = vunpack.c.l.b16 %v37
  %v86 = vpack.c.b16 %v83, %v82
  %v87 = vpack.c.b16 %v85, %v84
  %vm89 = vcmask 244736
  %v91 = vsel %vm89, %v70, 0
  %v94 = vsel %vm89, %v71, 0
  %v97 = vsel %vm89, %v72, 0
  %v100 = vsel %vm89, %v73, 0
  %v103 = vsel %vm89, %v74, 0
  %v106 = vsel %vm89, %v75, 0
  %v109 = vsel %vm89, %v76, 0
  %v112 = vsel %vm89, %v77, 0
  %vm114 = vcmask 1046528
  %v116 = vsel %vm114, %v87, 0
  %118 = vmatprep.subr.bf16.mxu0 0
  %119 = vmatpush1.bf16.msra.mxu0 %v86
  %120 = vmatprep.subr.bf16.mxu0 0
  %121 = vmatpush1.bf16.msra.mxu0 %v116
  %122 = vmatprep.subr.bf16.mxu0 0
  %123 = vmatpush1.bf16.msra.mxu0 0
  %124 = vmatprep.subr.bf16.mxu0 0
  %125 = vmatpush1.bf16.msra.mxu0 0
  %126 = vmatprep.subr.bf16.mxu0 0
  %127 = vmatpush1.bf16.msra.mxu0 0
  %128 = vmatprep.subr.bf16.mxu0 0
  %129 = vmatpush1.bf16.msra.mxu0 0
  %130 = vmatprep.subr.bf16.mxu0 0
  %131 = vmatpush1.bf16.msra.mxu0 0
  %132 = vmatprep.subr.bf16.mxu0 0
  %133 = vmatpush1.bf16.msra.mxu0 0
  %134 = vmatprep.subr.bf16.mxu0 0
  %135 = vmatpush1.bf16.msra.mxu0 0
  %136 = vmatprep.subr.bf16.mxu0 0
  %137 = vmatpush1.bf16.msra.mxu0 0
  %138 = vmatprep.subr.bf16.mxu0 0
  %139 = vmatpush1.bf16.msra.mxu0 0
  %140 = vmatprep.subr.bf16.mxu0 0
  %141 = vmatpush1.bf16.msra.mxu0 0
  %142 = vmatprep.subr.bf16.mxu0 0
  %143 = vmatpush1.bf16.msra.mxu0 0
  %144 = vmatprep.subr.bf16.mxu0 0
  %145 = vmatpush1.bf16.msra.mxu0 0
  %146 = vmatprep.subr.bf16.mxu0 0
  %147 = vmatpush1.bf16.msra.mxu0 0
  %148 = vmatprep.subr.bf16.mxu0 0
  %149 = vmatpush1.bf16.msra.mxu0 0
  %150 = vmatprep.mubr.bf16.mxu0 0
  %151 = vmatmul.mubr.bf16.gmra.mrb[0].mxu0 %v91
  %v152 = vpop.f32.mrb[0].mxu0
  %v153 = vadd.f32 0.0, %v152
  %v154 = vpop.f32.mrb[0].mxu0
  %v155 = vpop.f32.mrb[0].mxu0
  %v156 = vadd.f32 0.0, %v155
  %v157 = vpop.f32.mrb[0].mxu0
  %158 = vmatprep.mubr.bf16.mxu0 0
  %159 = vmatmul.mubr.bf16.gmra.mrb[0].mxu0 %v94
  %v160 = vpop.f32.mrb[0].mxu0
  %v161 = vadd.f32 0.0, %v160
  %v162 = vpop.f32.mrb[0].mxu0
  %v163 = vpop.f32.mrb[0].mxu0
  %v164 = vadd.f32 0.0, %v163
  %v165 = vpop.f32.mrb[0].mxu0
  %166 = vmatprep.mubr.bf16.mxu0 0
  %167 = vmatmul.mubr.bf16.gmra.mrb[0].mxu0 %v97
  %v168 = vpop.f32.mrb[0].mxu0
  %v169 = vadd.f32 0.0, %v168
  %v170 = vpop.f32.mrb[0].mxu0
  %v171 = vpop.f32.mrb[0].mxu0
  %v172 = vadd.f32 0.0, %v171
  %v173 = vpop.f32.mrb[0].mxu0
  %174 = vmatprep.mubr.bf16.mxu0 0
  %175 = vmatmul.mubr.bf16.gmra.mrb[0].mxu0 %v100
  %v176 = vpop.f32.mrb[0].mxu0
  %v177 = vadd.f32 0.0, %v176
  %v178 = vpop.f32.mrb[0].mxu0
  %v179 = vpop.f32.mrb[0].mxu0
  %v180 = vadd.f32 0.0, %v179
  %v181 = vpop.f32.mrb[0].mxu0
  %182 = vmatprep.mubr.bf16.mxu0 0
  %183 = vmatmul.mubr.bf16.gmra.mrb[0].mxu0 %v103
  %v184 = vpop.f32.mrb[0].mxu0
  %v185 = vadd.f32 0.0, %v184
  %v186 = vpop.f32.mrb[0].mxu0
  %v187 = vpop.f32.mrb[0].mxu0
  %v188 = vadd.f32 0.0, %v187
  %v189 = vpop.f32.mrb[0].mxu0
  %190 = vmatprep.mubr.bf16.mxu0 0
  %191 = vmatmul.mubr.bf16.gmra.mrb[0].mxu0 %v106
  %v192 = vpop.f32.mrb[0].mxu0
  %v193 = vadd.f32 0.0, %v192
  %v194 = vpop.f32.mrb[0].mxu0
  %v195 = vpop.f32.mrb[0].mxu0
  %v196 = vadd.f32 0.0, %v195
  %v197 = vpop.f32.mrb[0].mxu0
  %198 = vmatprep.mubr.bf16.mxu0 0
  %199 = vmatmul.mubr.bf16.gmra.mrb[0].mxu0 %v109
  %v200 = vpop.f32.mrb[0].mxu0
  %v201 = vadd.f32 0.0, %v200
  %v202 = vpop.f32.mrb[0].mxu0
  %v203 = vpop.f32.mrb[0].mxu0
  %v204 = vadd.f32 0.0, %v203
  %v205 = vpop.f32.mrb[0].mxu0
  %206 = vmatprep.mubr.bf16.mxu0 0
  %207 = vmatmul.mubr.bf16.gmra.mrb[0].mxu0 %v112
  %v208 = vpop.f32.mrb[0].mxu0
  %v209 = vadd.f32 0.0, %v208
  %v210 = vpop.f32.mrb[0].mxu0
  %v211 = vpop.f32.mrb[0].mxu0
  %v212 = vadd.f32 0.0, %v211
  %v213 = vpop.f32.mrb[0].mxu0
  %214 = vdwg.mxu0
  %v215 = vld [vmem:[%s2] sm:$0x1]
  %v217 = vlaneseq
  %v218 = vshrl.u32 %v217, 7
  %v219 = vsub.s32 0, %v218
  %v220 = vrot.slane %v215, %v219
  %v222 = vmul.f32 %v153, %v220
  %v223 = vmul.f32 %v156, %v220
  %v224 = vmul.f32 %v161, %v220
  %v225 = vmul.f32 %v164, %v220
  %v226 = vmul.f32 %v169, %v220
  %v227 = vmul.f32 %v172, %v220
  %v228 = vmul.f32 %v177, %v220
  %v229 = vmul.f32 %v180, %v220
  %v230 = vmul.f32 %v185, %v220
  %v231 = vmul.f32 %v188, %v220
  %v232 = vmul.f32 %v193, %v220
  %v233 = vmul.f32 %v196, %v220
  %v234 = vmul.f32 %v201, %v220
  %v235 = vmul.f32 %v204, %v220
  %v236 = vmul.f32 %v209, %v220
  %v237 = vmul.f32 %v212, %v220
  %v238 = vld [vmem:[%s3] sm:$0x1]
  %v240 = vlaneseq
  %v241 = vshrl.u32 %v240, 7
  %v242 = vsub.s32 0, %v241
  %v243 = vrot.slane %v238, %v242
  %v245 = vadd.f32 %v222, %v243
  %v246 = vadd.f32 %v223, %v243
  %v247 = vadd.f32 %v224, %v243
  %v248 = vadd.f32 %v225, %v243
  %v249 = vadd.f32 %v226, %v243
  %v250 = vadd.f32 %v227, %v243
  %v251 = vadd.f32 %v228, %v243
  %v252 = vadd.f32 %v229, %v243
  %v253 = vadd.f32 %v230, %v243
  %v254 = vadd.f32 %v231, %v243
  %v255 = vadd.f32 %v232, %v243
  %v256 = vadd.f32 %v233, %v243
  %v257 = vadd.f32 %v234, %v243
  %v258 = vadd.f32 %v235, %v243
  %v259 = vadd.f32 %v236, %v243
  %v260 = vadd.f32 %v237, %v243
  %v261 = vmax.f32 %v245, 0.0
  %v262 = vmax.f32 %v246, 0.0
  %v263 = vmax.f32 %v247, 0.0
  %v264 = vmax.f32 %v248, 0.0
  %v265 = vmax.f32 %v249, 0.0
  %v266 = vmax.f32 %v250, 0.0
  %v267 = vmax.f32 %v251, 0.0
  %v268 = vmax.f32 %v252, 0.0
  %v269 = vmax.f32 %v253, 0.0
  %v270 = vmax.f32 %v254, 0.0
  %v271 = vmax.f32 %v255, 0.0
  %v272 = vmax.f32 %v256, 0.0
  %v273 = vmax.f32 %v257, 0.0
  %v274 = vmax.f32 %v258, 0.0
  %v275 = vmax.f32 %v259, 0.0
  %v276 = vmax.f32 %v260, 0.0
  %v277 = vpack.c.bf16 %v262, %v261
  %v278 = vpack.c.bf16 %v264, %v263
  %v279 = vpack.c.bf16 %v266, %v265
  %v280 = vpack.c.bf16 %v268, %v267
  %v281 = vpack.c.bf16 %v270, %v269
  %v282 = vpack.c.bf16 %v272, %v271
  %v283 = vpack.c.bf16 %v274, %v273
  %v284 = vpack.c.bf16 %v276, %v275
  %v293 = vunpack.c.l.b16 %v277
  %v294 = vunpack.c.h.b16 %v277
  %v295 = vunpack.c.l.b16 %v278
  %v296 = vunpack.c.h.b16 %v278
  %v297 = vunpack.c.l.b16 %v279
  %v298 = vunpack.c.h.b16 %v279
  %v299 = vunpack.c.l.b16 %v280
  %v300 = vunpack.c.h.b16 %v280
  %v301 = vunpack.c.l.b16 %v281
  %v302 = vunpack.c.h.b16 %v281
  %v303 = vunpack.c.l.b16 %v282
  %v304 = vunpack.c.h.b16 %v282
  %v305 = vunpack.c.l.b16 %v283
  %v306 = vunpack.c.h.b16 %v283
  %v307 = vunpack.c.l.b16 %v284
  %v308 = vunpack.c.h.b16 %v284
  %v309 = vpack.c.b16 %v293, %v293
  %v310 = vpack.c.b16 %v294, %v294
  %v311 = vpack.c.b16 %v295, %v295
  %v312 = vpack.c.b16 %v296, %v296
  %v313 = vpack.c.b16 %v297, %v297
  %v314 = vpack.c.b16 %v298, %v298
  %v315 = vpack.c.b16 %v299, %v299
  %v316 = vpack.c.b16 %v300, %v300
  %v317 = vpack.c.b16 %v301, %v301
  %v318 = vpack.c.b16 %v302, %v302
  %v319 = vpack.c.b16 %v303, %v303
  %v320 = vpack.c.b16 %v304, %v304
  %v321 = vpack.c.b16 %v305, %v305
  %v322 = vpack.c.b16 %v306, %v306
  %v323 = vpack.c.b16 %v307, %v307
  %v324 = vpack.c.b16 %v308, %v308
  %vm341 = vcmask 125952
  %342 = vst.msk [vmem:[%s4] sm:$0xf] %vm341, %v309
  %343 = vst.msk [vmem:[%s4 + $0x4] sm:$0xf] %vm341, %v310
  %344 = vst.msk [vmem:[%s4 + $0x8] sm:$0xf] %vm341, %v311
  %345 = vst.msk [vmem:[%s4 + $0xc] sm:$0xf] %vm341, %v312
  %346 = vst.msk [vmem:[%s4 + $0x10] sm:$0xf] %vm341, %v313
  %347 = vst.msk [vmem:[%s4 + $0x14] sm:$0xf] %vm341, %v314
  %348 = vst.msk [vmem:[%s4 + $0x18] sm:$0xf] %vm341, %v315
  %349 = vst.msk [vmem:[%s4 + $0x1c] sm:$0xf] %vm341, %v316
  %350 = vst.msk [vmem:[%s4 + $0x20] sm:$0xf] %vm341, %v317
  %351 = vst.msk [vmem:[%s4 + $0x24] sm:$0xf] %vm341, %v318
  %352 = vst.msk [vmem:[%s4 + $0x28] sm:$0xf] %vm341, %v319
  %353 = vst.msk [vmem:[%s4 + $0x2c] sm:$0xf] %vm341, %v320
  %354 = vst.msk [vmem:[%s4 + $0x30] sm:$0xf] %vm341, %v321
  %355 = vst.msk [vmem:[%s4 + $0x34] sm:$0xf] %vm341, %v322
  %356 = vst.msk [vmem:[%s4 + $0x38] sm:$0xf] %vm341, %v323
  %357 = vst.msk [vmem:[%s4 + $0x3c] sm:$0xf] %vm341, %v324
  // Predicated region
  $region18: #{net_forward.59} parent=0 // pred_check
    _
  $region19: #{net_forward.59} parent=0 // pred_check_branch
    %359 = sbr.rel (0) target = $region21
  $region20: #{net_forward.59} parent=0 // pred_region
    _
  $region21: #{net_forward.59} parent=0 // pred_fallthru
    _
  // Predicated region
  $region22: #{net_forward.59} parent=0 // pred_check
    _
  $region23: #{net_forward.59} parent=0 // pred_check_branch
    %361 = sbr.rel (0) target = $region25
  $region24: #{net_forward.59} parent=0 // pred_region
    _
  $region25: #{net_forward.59} parent=0 // pred_fallthru
    _

// kernel: net_forward.60
$region0: #{net_forward.60}
  #allocation0 [shape = 'u32[]', space=smem, size = 0x4, offset = 0x4, fixed_abs, tag = 'smem constant byte address 0x4 - core index']
  #allocation1 [shape = 'u32[144,128]{1,0:T(1,128)}', space=vmem, size = 0x12000, scoped, tag = 'internal scratch']
  %s0 = inlined_call_operand.vmem [shape: bf16[32,160], index: 0, kind: input, shape index: {}]
  %s1 = inlined_call_operand.vmem [shape: bf16[160,64], index: 1, kind: input, shape index: {}]
  %s2 = inlined_call_operand.vmem [shape: f32[1,64], index: 2, kind: input, shape index: {}]
  %s3 = inlined_call_operand.vmem [shape: f32[1,64], index: 3, kind: input, shape index: {}]
  %s4 = inlined_call_operand.vmem [shape: bf16[32,64], index: 4, kind: output, shape index: {}]
  %s5 = sld [smem:[#allocation0]]
  $region26: #{net_forward.60} parent=0
    _
  %s7 = ssub.s32 1, %s5
  %s8 = scalar_select 0, %s7, %s5
  // Predicated region
  $region2: #{net_forward.60} parent=0 // pred_check
    _
  $region3: #{net_forward.60} parent=0 // pred_check_branch
    %10 = sbr.rel (0) target = $region5
  $region4: #{net_forward.60} parent=0 // pred_region
    _
  $region5: #{net_forward.60} parent=0 // pred_fallthru
    _
  // Predicated region
  $region6: #{net_forward.60} parent=0 // pred_check
    _
  $region7: #{net_forward.60} parent=0 // pred_check_branch
    %12 = sbr.rel (0) target = $region9
  $region8: #{net_forward.60} parent=0 // pred_region
    _
  $region9: #{net_forward.60} parent=0 // pred_fallthru
    _
  // Predicated region
  $region10: #{net_forward.60} parent=0 // pred_check
    _
  $region11: #{net_forward.60} parent=0 // pred_check_branch
    %14 = sbr.rel (0) target = $region13
  $region12: #{net_forward.60} parent=0 // pred_region
    _
  $region13: #{net_forward.60} parent=0 // pred_fallthru
    _
  // Predicated region
  $region14: #{net_forward.60} parent=0 // pred_check
    _
  $region15: #{net_forward.60} parent=0 // pred_check_branch
    %16 = sbr.rel (0) target = $region17
  $region16: #{net_forward.60} parent=0 // pred_region
    _
  $region17: #{net_forward.60} parent=0 // pred_fallthru
    _
  %v18 = vld [vmem:[%s0] sm:$0xff]
  %v19 = vld [vmem:[%s0 + $0x8] sm:$0xff]
  %v20 = vld [vmem:[%s0 + $0x10] sm:$0xff]
  %v21 = vld [vmem:[%s0 + $0x18] sm:$0xff]
  %v22 = vld [vmem:[%s1] sm:$0xf]
  %v23 = vld [vmem:[%s1 + $0x4] sm:$0xf]
  %v24 = vld [vmem:[%s1 + $0x8] sm:$0xf]
  %v25 = vld [vmem:[%s1 + $0xc] sm:$0xf]
  %v26 = vld [vmem:[%s1 + $0x10] sm:$0xf]
  %v27 = vld [vmem:[%s1 + $0x14] sm:$0xf]
  %v28 = vld [vmem:[%s1 + $0x18] sm:$0xf]
  %v29 = vld [vmem:[%s1 + $0x1c] sm:$0xf]
  %v30 = vld [vmem:[%s1 + $0x20] sm:$0xf]
  %v31 = vld [vmem:[%s1 + $0x24] sm:$0xf]
  %v32 = vld [vmem:[%s1 + $0x28] sm:$0xf]
  %v33 = vld [vmem:[%s1 + $0x2c] sm:$0xf]
  %v34 = vld [vmem:[%s1 + $0x30] sm:$0xf]
  %v35 = vld [vmem:[%s1 + $0x34] sm:$0xf]
  %v36 = vld [vmem:[%s1 + $0x38] sm:$0xf]
  %v37 = vld [vmem:[%s1 + $0x3c] sm:$0xf]
  %v38 = vld [vmem:[%s1 + $0x40] sm:$0xf]
  %v39 = vld [vmem:[%s1 + $0x44] sm:$0xf]
  %v40 = vld [vmem:[%s1 + $0x48] sm:$0xf]
  %v41 = vld [vmem:[%s1 + $0x4c] sm:$0xf]
  %v46 = vunpack.c.l.b16 %v18
  %v47 = vunpack.c.h.b16 %v18
  %v48 = vunpack.c.l.b16 %v19
  %v49 = vunpack.c.h.b16 %v19
  %v50 = vunpack.c.l.b16 %v20
  %v51 = vunpack.c.h.b16 %v20
  %v52 = vunpack.c.l.b16 %v21
  %v53 = vunpack.c.h.b16 %v21
  %v54 = vpack.c.b16 %v48, %v46
  %v55 = vpack.c.b16 %v49, %v47
  %v56 = vpack.c.b16 %v52, %v50
  %v57 = vpack.c.b16 %v53, %v51
  %v80 = vunpack.c.l.b16 %v22
  %v81 = vunpack.c.l.b16 %v23
  %v82 = vunpack.c.l.b16 %v24
  %v83 = vunpack.c.l.b16 %v25
  %v84 = vunpack.c.l.b16 %v26
  %v85 = vunpack.c.l.b16 %v27
  %v86 = vunpack.c.l.b16 %v28
  %v87 = vunpack.c.l.b16 %v29
  %v88 = vunpack.c.l.b16 %v30
  %v89 = vunpack.c.l.b16 %v31
  %v90 = vunpack.c.l.b16 %v32
  %v91 = vunpack.c.l.b16 %v33
  %v92 = vunpack.c.l.b16 %v34
  %v93 = vunpack.c.l.b16 %v35
  %v94 = vunpack.c.l.b16 %v36
  %v95 = vunpack.c.l.b16 %v37
  %v96 = vunpack.c.l.b16 %v38
  %v97 = vunpack.c.l.b16 %v39
  %v98 = vunpack.c.l.b16 %v40
  %v99 = vunpack.c.l.b16 %v41
  %v100 = vpack.c.b16 %v81, %v80
  %v101 = vpack.c.b16 %v83, %v82
  %v102 = vpack.c.b16 %v85, %v84
  %v103 = vpack.c.b16 %v87, %v86
  %v104 = vpack.c.b16 %v89, %v88
  %v105 = vpack.c.b16 %v91, %v90
  %v106 = vpack.c.b16 %v93, %v92
  %v107 = vpack.c.b16 %v95, %v94
  %v108 = vpack.c.b16 %v97, %v96
  %v109 = vpack.c.b16 %v99, %v98
  %vm120 = vcmask 261120
  %v122 = vsel %vm120, %v55, 0
  %v125 = vsel %vm120, %v57, 0
  %127 = vmatprep.subr.bf16.mxu0 0
  %128 = vmatpush1.bf16.msra.mxu0 %v100
  %129 = vmatprep.subr.bf16.mxu0 0
  %130 = vmatpush1.bf16.msra.mxu0 %v101
  %131 = vmatprep.subr.bf16.mxu0 0
  %132 = vmatpush1.bf16.msra.mxu0 %v102
  %133 = vmatprep.subr.bf16.mxu0 0
  %134 = vmatpush1.bf16.msra.mxu0 %v103
  %135 = vmatprep.subr.bf16.mxu0 0
  %136 = vmatpush1.bf16.msra.mxu0 %v104
  %137 = vmatprep.subr.bf16.mxu0 0
  %138 = vmatpush1.bf16.msra.mxu0 %v105
  %139 = vmatprep.subr.bf16.mxu0 0
  %140 = vmatpush1.bf16.msra.mxu0 %v106
  %141 = vmatprep.subr.bf16.mxu0 0
  %142 = vmatpush1.bf16.msra.mxu0 %v107
  %143 = vmatprep.subr.bf16.mxu0 0
  %144 = vmatpush1.bf16.msra.mxu0 %v108
  %145 = vmatprep.subr.bf16.mxu0 0
  %146 = vmatpush1.bf16.msra.mxu0 %v109
  %147 = vmatprep.subr.bf16.mxu0 0
  %148 = vmatpush1.bf16.msra.mxu0 0
  %149 = vmatprep.subr.bf16.mxu0 0
  %150 = vmatpush1.bf16.msra.mxu0 0
  %151 = vmatprep.subr.bf16.mxu0 0
  %152 = vmatpush1.bf16.msra.mxu0 0
  %153 = vmatprep.subr.bf16.mxu0 0
  %154 = vmatpush1.bf16.msra.mxu0 0
  %155 = vmatprep.subr.bf16.mxu0 0
  %156 = vmatpush1.bf16.msra.mxu0 0
  %157 = vmatprep.subr.bf16.mxu0 0
  %158 = vmatpush1.bf16.msra.mxu0 0
  %159 = vmatprep.mubr.bf16.mxu0 %v122
  %160 = vmatmul.mubr.bf16.gmra.mrb[0].mxu0 %v54
  %v161 = vpop.f32.mrb[0].mxu0
  %v162 = vadd.f32 0.0, %v161
  %v163 = vpop.f32.mrb[0].mxu0
  %v164 = vpop.f32.mrb[0].mxu0
  %v165 = vadd.f32 0.0, %v164
  %v166 = vpop.f32.mrb[0].mxu0
  %167 = vmatprep.mubr.bf16.mxu0 %v125
  %168 = vmatmul.mubr.bf16.gmra.mrb[0].mxu0 %v56
  %v169 = vpop.f32.mrb[0].mxu0
  %v170 = vadd.f32 0.0, %v169
  %v171 = vpop.f32.mrb[0].mxu0
  %v172 = vpop.f32.mrb[0].mxu0
  %v173 = vadd.f32 0.0, %v172
  %v174 = vpop.f32.mrb[0].mxu0
  %175 = vdwg.mxu0
  %v176 = vld [vmem:[%s2] sm:$0x1]
  %v178 = vlaneseq
  %v179 = vshrl.u32 %v178, 7
  %v180 = vsub.s32 0, %v179
  %v181 = vrot.slane %v176, %v180
  %v183 = vmul.f32 %v162, %v181
  %v184 = vmul.f32 %v165, %v181
  %v185 = vmul.f32 %v170, %v181
  %v186 = vmul.f32 %v173, %v181
  %v187 = vld [vmem:[%s3] sm:$0x1]
  %v189 = vlaneseq
  %v190 = vshrl.u32 %v189, 7
  %v191 = vsub.s32 0, %v190
  %v192 = vrot.slane %v187, %v191
  %v194 = vadd.f32 %v183, %v192
  %v195 = vadd.f32 %v184, %v192
  %v196 = vadd.f32 %v185, %v192
  %v197 = vadd.f32 %v186, %v192
  %v198 = vmax.f32 %v194, 0.0
  %v199 = vmax.f32 %v195, 0.0
  %v200 = vmax.f32 %v196, 0.0
  %v201 = vmax.f32 %v197, 0.0
  %v202 = vpack.c.bf16 %v199, %v198
  %v203 = vpack.c.bf16 %v201, %v200
  %v206 = vunpack.c.l.b16 %v202
  %v207 = vunpack.c.h.b16 %v202
  %v208 = vunpack.c.l.b16 %v203
  %v209 = vunpack.c.h.b16 %v203
  %v210 = vpack.c.b16 %v206, %v206
  %v211 = vpack.c.b16 %v207, %v207
  %v212 = vpack.c.b16 %v208, %v208
  %v213 = vpack.c.b16 %v209, %v209
  %vm218 = vcmask 519168
  %219 = vst.msk [vmem:[%s4] sm:$0xf] %vm218, %v210
  %220 = vst.msk [vmem:[%s4 + $0x4] sm:$0xf] %vm218, %v211
  %221 = vst.msk [vmem:[%s4 + $0x8] sm:$0xf] %vm218, %v212
  %222 = vst.msk [vmem:[%s4 + $0xc] sm:$0xf] %vm218, %v213
  // Predicated region
  $region18: #{net_forward.60} parent=0 // pred_check
    _
  $region19: #{net_forward.60} parent=0 // pred_check_branch
    %224 = sbr.rel (0) target = $region21
  $region20: #{net_forward.60} parent=0 // pred_region
    _
  $region21: #{net_forward.60} parent=0 // pred_fallthru
    _
  // Predicated region
  $region22: #{net_forward.60} parent=0 // pred_check
    _
  $region23: #{net_forward.60} parent=0 // pred_check_branch
    %226 = sbr.rel (0) target = $region25
  $region24: #{net_forward.60} parent=0 // pred_region
    _
  $region25: #{net_forward.60} parent=0 // pred_fallthru
    _

// kernel: net_forward.61
$region0: #{net_forward.61}
  #allocation0 [shape = 'u32[]', space=smem, size = 0x4, offset = 0x4, fixed_abs, tag = 'smem constant byte address 0x4 - core index']
  #allocation1 [shape = 'u32[144,128]{1,0:T(1,128)}', space=vmem, size = 0x12000, scoped, tag = 'internal scratch']
  %s0 = inlined_call_operand.vmem [shape: bf16[32,192], index: 0, kind: input, shape index: {}]
  %s1 = inlined_call_operand.vmem [shape: bf16[192,64], index: 1, kind: input, shape index: {}]
  %s2 = inlined_call_operand.vmem [shape: f32[1,64], index: 2, kind: input, shape index: {}]
  %s3 = inlined_call_operand.vmem [shape: f32[1,64], index: 3, kind: input, shape index: {}]
  %s4 = inlined_call_operand.vmem [shape: bf16[32,64], index: 4, kind: output, shape index: {}]
  %s5 = sld [smem:[#allocation0]]
  $region26: #{net_forward.61} parent=0
    _
  %s7 = ssub.s32 1, %s5
  %s8 = scalar_select 0, %s7, %s5
  // Predicated region
  $region2: #{net_forward.61} parent=0 // pred_check
    _
  $region3: #{net_forward.61} parent=0 // pred_check_branch
    %10 = sbr.rel (0) target = $region5
  $region4: #{net_forward.61} parent=0 // pred_region
    _
  $region5: #{net_forward.61} parent=0 // pred_fallthru
    _
  // Predicated region
  $region6: #{net_forward.61} parent=0 // pred_check
    _
  $region7: #{net_forward.61} parent=0 // pred_check_branch
    %12 = sbr.rel (0) target = $region9
  $region8: #{net_forward.61} parent=0 // pred_region
    _
  $region9: #{net_forward.61} parent=0 // pred_fallthru
    _
  // Predicated region
  $region10: #{net_forward.61} parent=0 // pred_check
    _
  $region11: #{net_forward.61} parent=0 // pred_check_branch
    %14 = sbr.rel (0) target = $region13
  $region12: #{net_forward.61} parent=0 // pred_region
    _
  $region13: #{net_forward.61} parent=0 // pred_fallthru
    _
  // Predicated region
  $region14: #{net_forward.61} parent=0 // pred_check
    _
  $region15: #{net_forward.61} parent=0 // pred_check_branch
    %16 = sbr.rel (0) target = $region17
  $region16: #{net_forward.61} parent=0 // pred_region
    _
  $region17: #{net_forward.61} parent=0 // pred_fallthru
    _
  %v18 = vld [vmem:[%s0] sm:$0xff]
  %v19 = vld [vmem:[%s0 + $0x8] sm:$0xff]
  %v20 = vld [vmem:[%s0 + $0x10] sm:$0xff]
  %v21 = vld [vmem:[%s0 + $0x18] sm:$0xff]
  %v22 = vld [vmem:[%s1] sm:$0xf]
  %v23 = vld [vmem:[%s1 + $0x4] sm:$0xf]
  %v24 = vld [vmem:[%s1 + $0x8] sm:$0xf]
  %v25 = vld [vmem:[%s1 + $0xc] sm:$0xf]
  %v26 = vld [vmem:[%s1 + $0x10] sm:$0xf]
  %v27 = vld [vmem:[%s1 + $0x14] sm:$0xf]
  %v28 = vld [vmem:[%s1 + $0x18] sm:$0xf]
  %v29 = vld [vmem:[%s1 + $0x1c] sm:$0xf]
  %v30 = vld [vmem:[%s1 + $0x20] sm:$0xf]
  %v31 = vld [vmem:[%s1 + $0x24] sm:$0xf]
  %v32 = vld [vmem:[%s1 + $0x28] sm:$0xf]
  %v33 = vld [vmem:[%s1 + $0x2c] sm:$0xf]
  %v34 = vld [vmem:[%s1 + $0x30] sm:$0xf]
  %v35 = vld [vmem:[%s1 + $0x34] sm:$0xf]
  %v36 = vld [vmem:[%s1 + $0x38] sm:$0xf]
  %v37 = vld [vmem:[%s1 + $0x3c] sm:$0xf]
  %v38 = vld [vmem:[%s1 + $0x40] sm:$0xf]
  %v39 = vld [vmem:[%s1 + $0x44] sm:$0xf]
  %v40 = vld [vmem:[%s1 + $0x48] sm:$0xf]
  %v41 = vld [vmem:[%s1 + $0x4c] sm:$0xf]
  %v42 = vld [vmem:[%s1 + $0x50] sm:$0xf]
  %v43 = vld [vmem:[%s1 + $0x54] sm:$0xf]
  %v44 = vld [vmem:[%s1 + $0x58] sm:$0xf]
  %v45 = vld [vmem:[%s1 + $0x5c] sm:$0xf]
  %v50 = vunpack.c.l.b16 %v18
  %v51 = vunpack.c.h.b16 %v18
  %v52 = vunpack.c.l.b16 %v19
  %v53 = vunpack.c.h.b16 %v19
  %v54 = vunpack.c.l.b16 %v20
  %v55 = vunpack.c.h.b16 %v20
  %v56 = vunpack.c.l.b16 %v21
  %v57 = vunpack.c.h.b16 %v21
  %v58 = vpack.c.b16 %v52, %v50
  %v59 = vpack.c.b16 %v53, %v51
  %v60 = vpack.c.b16 %v56, %v54
  %v61 = vpack.c.b16 %v57, %v55
  %v88 = vunpack.c.l.b16 %v22
  %v89 = vunpack.c.l.b16 %v23
  %v90 = vunpack.c.l.b16 %v24
  %v91 = vunpack.c.l.b16 %v25
  %v92 = vunpack.c.l.b16 %v26
  %v93 = vunpack.c.l.b16 %v27
  %v94 = vunpack.c.l.b16 %v28
  %v95 = vunpack.c.l.b16 %v29
  %v96 = vunpack.c.l.b16 %v30
  %v97 = vunpack.c.l.b16 %v31
  %v98 = vunpack.c.l.b16 %v32
  %v99 = vunpack.c.l.b16 %v33
  %v100 = vunpack.c.l.b16 %v34
  %v101 = vunpack.c.l.b16 %v35
  %v102 = vunpack.c.l.b16 %v36
  %v103 = vunpack.c.l.b16 %v37
  %v104 = vunpack.c.l.b16 %v38
  %v105 = vunpack.c.l.b16 %v39
  %v106 = vunpack.c.l.b16 %v40
  %v107 = vunpack.c.l.b16 %v41
  %v108 = vunpack.c.l.b16 %v42
  %v109 = vunpack.c.l.b16 %v43
  %v110 = vunpack.c.l.b16 %v44
  %v111 = vunpack.c.l.b16 %v45
  %v112 = vpack.c.b16 %v89, %v88
  %v113 = vpack.c.b16 %v91, %v90
  %v114 = vpack.c.b16 %v93, %v92
  %v115 = vpack.c.b16 %v95, %v94
  %v116 = vpack.c.b16 %v97, %v96
  %v117 = vpack.c.b16 %v99, %v98
  %v118 = vpack.c.b16 %v101, %v100
  %v119 = vpack.c.b16 %v103, %v102
  %v120 = vpack.c.b16 %v105, %v104
  %v121 = vpack.c.b16 %v107, %v106
  %v122 = vpack.c.b16 %v109, %v108
  %v123 = vpack.c.b16 %v111, %v110
  %vm136 = vcmask 523264
  %v138 = vsel %vm136, %v59, 0
  %v141 = vsel %vm136, %v61, 0
  %143 = vmatprep.subr.bf16.mxu0 0
  %144 = vmatpush1.bf16.msra.mxu0 %v112
  %145 = vmatprep.subr.bf16.mxu0 0
  %146 = vmatpush1.bf16.msra.mxu0 %v113
  %147 = vmatprep.subr.bf16.mxu0 0
  %148 = vmatpush1.bf16.msra.mxu0 %v114
  %149 = vmatprep.subr.bf16.mxu0 0
  %150 = vmatpush1.bf16.msra.mxu0 %v115
  %151 = vmatprep.subr.bf16.mxu0 0
  %152 = vmatpush1.bf16.msra.mxu0 %v116
  %153 = vmatprep.subr.bf16.mxu0 0
  %154 = vmatpush1.bf16.msra.mxu0 %v117
  %155 = vmatprep.subr.bf16.mxu0 0
  %156 = vmatpush1.bf16.msra.mxu0 %v118
  %157 = vmatprep.subr.bf16.mxu0 0
  %158 = vmatpush1.bf16.msra.mxu0 %v119
  %159 = vmatprep.subr.bf16.mxu0 0
  %160 = vmatpush1.bf16.msra.mxu0 %v120
  %161 = vmatprep.subr.bf16.mxu0 0
  %162 = vmatpush1.bf16.msra.mxu0 %v121
  %163 = vmatprep.subr.bf16.mxu0 0
  %164 = vmatpush1.bf16.msra.mxu0 %v122
  %165 = vmatprep.subr.bf16.mxu0 0
  %166 = vmatpush1.bf16.msra.mxu0 %v123
  %167 = vmatprep.subr.bf16.mxu0 0
  %168 = vmatpush1.bf16.msra.mxu0 0
  %169 = vmatprep.subr.bf16.mxu0 0
  %170 = vmatpush1.bf16.msra.mxu0 0
  %171 = vmatprep.subr.bf16.mxu0 0
  %172 = vmatpush1.bf16.msra.mxu0 0
  %173 = vmatprep.subr.bf16.mxu0 0
  %174 = vmatpush1.bf16.msra.mxu0 0
  %175 = vmatprep.mubr.bf16.mxu0 %v138
  %176 = vmatmul.mubr.bf16.gmra.mrb[0].mxu0 %v58
  %v177 = vpop.f32.mrb[0].mxu0
  %v178 = vadd.f32 0.0, %v177
  %v179 = vpop.f32.mrb[0].mxu0
  %v180 = vpop.f32.mrb[0].mxu0
  %v181 = vadd.f32 0.0, %v180
  %v182 = vpop.f32.mrb[0].mxu0
  %183 = vmatprep.mubr.bf16.mxu0 %v141
  %184 = vmatmul.mubr.bf16.gmra.mrb[0].mxu0 %v60
  %v185 = vpop.f32.mrb[0].mxu0
  %v186 = vadd.f32 0.0, %v185
  %v187 = vpop.f32.mrb[0].mxu0
  %v188 = vpop.f32.mrb[0].mxu0
  %v189 = vadd.f32 0.0, %v188
  %v190 = vpop.f32.mrb[0].mxu0
  %191 = vdwg.mxu0
  %v192 = vld [vmem:[%s2] sm:$0x1]
  %v194 = vlaneseq
  %v195 = vshrl.u32 %v194, 7
  %v196 = vsub.s32 0, %v195
  %v197 = vrot.slane %v192, %v196
  %v199 = vmul.f32 %v178, %v197
  %v200 = vmul.f32 %v181, %v197
  %v201 = vmul.f32 %v186, %v197
  %v202 = vmul.f32 %v189, %v197
  %v203 = vld [vmem:[%s3] sm:$0x1]
  %v205 = vlaneseq
  %v206 = vshrl.u32 %v205, 7
  %v207 = vsub.s32 0, %v206
  %v208 = vrot.slane %v203, %v207
  %v210 = vadd.f32 %v199, %v208
  %v211 = vadd.f32 %v200, %v208
  %v212 = vadd.f32 %v201, %v208
  %v213 = vadd.f32 %v202, %v208
  %v214 = vmax.f32 %v210, 0.0
  %v215 = vmax.f32 %v211, 0.0
  %v216 = vmax.f32 %v212, 0.0
  %v217 = vmax.f32 %v213, 0.0
  %v218 = vpack.c.bf16 %v215, %v214
  %v219 = vpack.c.bf16 %v217, %v216
  %v222 = vunpack.c.l.b16 %v218
  %v223 = vunpack.c.h.b16 %v218
  %v224 = vunpack.c.l.b16 %v219
  %v225 = vunpack.c.h.b16 %v219
  %v226 = vpack.c.b16 %v222, %v222
  %v227 = vpack.c.b16 %v223, %v223
  %v228 = vpack.c.b16 %v224, %v224
  %v229 = vpack.c.b16 %v225, %v225
  %vm234 = vcmask 519168
  %235 = vst.msk [vmem:[%s4] sm:$0xf] %vm234, %v226
  %236 = vst.msk [vmem:[%s4 + $0x4] sm:$0xf] %vm234, %v227
  %237 = vst.msk [vmem:[%s4 + $0x8] sm:$0xf] %vm234, %v228
  %238 = vst.msk [vmem:[%s4 + $0xc] sm:$0xf] %vm234, %v229
  // Predicated region
  $region18: #{net_forward.61} parent=0 // pred_check
    _
  $region19: #{net_forward.61} parent=0 // pred_check_branch
    %240 = sbr.rel (0) target = $region21
  $region20: #{net_forward.61} parent=0 // pred_region
    _
  $region21: #{net_forward.61} parent=0 // pred_fallthru
    _
  // Predicated region
  $region22: #{net_forward.61} parent=0 // pred_check
    _
  $region23: #{net_forward.61} parent=0 // pred_check_branch
    %242 = sbr.rel (0) target = $region25
  $region24: #{net_forward.61} parent=0 // pred_region
    _
  $region25: #{net_forward.61} parent=0 // pred_fallthru
    _

// kernel: net_forward.64
$region0: #{net_forward.64}
  #allocation0 [shape = 'u32[]', space=smem, size = 0x4, offset = 0x4, fixed_abs, tag = 'smem constant byte address 0x4 - core index']
  #allocation1 [shape = 'u32[144,128]{1,0:T(1,128)}', space=vmem, size = 0x12000, scoped, tag = 'internal scratch']
  %s0 = inlined_call_operand.vmem [shape: bf16[32,192], index: 0, kind: input, shape index: {}]
  %s1 = inlined_call_operand.vmem [shape: bf16[192,64], index: 1, kind: input, shape index: {}]
  %s2 = inlined_call_operand.vmem [shape: f32[1,64], index: 2, kind: input, shape index: {}]
  %s3 = inlined_call_operand.vmem [shape: f32[1,64], index: 3, kind: input, shape index: {}]
  %s4 = inlined_call_operand.vmem [shape: bf16[32,64], index: 4, kind: input, shape index: {}]
  %s5 = inlined_call_operand.vmem [shape: bf16[32,64], index: 5, kind: output, shape index: {}]
  %s6 = sld [smem:[#allocation0]]
  $region30: #{net_forward.64} parent=0
    _
  %s8 = ssub.s32 1, %s6
  %s9 = scalar_select 0, %s8, %s6
  // Predicated region
  $region2: #{net_forward.64} parent=0 // pred_check
    _
  $region3: #{net_forward.64} parent=0 // pred_check_branch
    %11 = sbr.rel (0) target = $region5
  $region4: #{net_forward.64} parent=0 // pred_region
    _
  $region5: #{net_forward.64} parent=0 // pred_fallthru
    _
  // Predicated region
  $region6: #{net_forward.64} parent=0 // pred_check
    _
  $region7: #{net_forward.64} parent=0 // pred_check_branch
    %13 = sbr.rel (0) target = $region9
  $region8: #{net_forward.64} parent=0 // pred_region
    _
  $region9: #{net_forward.64} parent=0 // pred_fallthru
    _
  // Predicated region
  $region10: #{net_forward.64} parent=0 // pred_check
    _
  $region11: #{net_forward.64} parent=0 // pred_check_branch
    %15 = sbr.rel (0) target = $region13
  $region12: #{net_forward.64} parent=0 // pred_region
    _
  $region13: #{net_forward.64} parent=0 // pred_fallthru
    _
  // Predicated region
  $region14: #{net_forward.64} parent=0 // pred_check
    _
  $region15: #{net_forward.64} parent=0 // pred_check_branch
    %17 = sbr.rel (0) target = $region17
  $region16: #{net_forward.64} parent=0 // pred_region
    _
  $region17: #{net_forward.64} parent=0 // pred_fallthru
    _
  // Predicated region
  $region18: #{net_forward.64} parent=0 // pred_check
    _
  $region19: #{net_forward.64} parent=0 // pred_check_branch
    %19 = sbr.rel (0) target = $region21
  $region20: #{net_forward.64} parent=0 // pred_region
    _
  $region21: #{net_forward.64} parent=0 // pred_fallthru
    _
  %v21 = vld [vmem:[%s0] sm:$0xff]
  %v22 = vld [vmem:[%s0 + $0x8] sm:$0xff]
  %v23 = vld [vmem:[%s0 + $0x10] sm:$0xff]
  %v24 = vld [vmem:[%s0 + $0x18] sm:$0xff]
  %v25 = vld [vmem:[%s1] sm:$0xf]
  %v26 = vld [vmem:[%s1 + $0x4] sm:$0xf]
  %v27 = vld [vmem:[%s1 + $0x8] sm:$0xf]
  %v28 = vld [vmem:[%s1 + $0xc] sm:$0xf]
  %v29 = vld [vmem:[%s1 + $0x10] sm:$0xf]
  %v30 = vld [vmem:[%s1 + $0x14] sm:$0xf]
  %v31 = vld [vmem:[%s1 + $0x18] sm:$0xf]
  %v32 = vld [vmem:[%s1 + $0x1c] sm:$0xf]
  %v33 = vld [vmem:[%s1 + $0x20] sm:$0xf]
  %v34 = vld [vmem:[%s1 + $0x24] sm:$0xf]
  %v35 = vld [vmem:[%s1 + $0x28] sm:$0xf]
  %v36 = vld [vmem:[%s1 + $0x2c] sm:$0xf]
  %v37 = vld [vmem:[%s1 + $0x30] sm:$0xf]
  %v38 = vld [vmem:[%s1 + $0x34] sm:$0xf]
  %v39 = vld [vmem:[%s1 + $0x38] sm:$0xf]
  %v40 = vld [vmem:[%s1 + $0x3c] sm:$0xf]
  %v41 = vld [vmem:[%s1 + $0x40] sm:$0xf]
  %v42 = vld [vmem:[%s1 + $0x44] sm:$0xf]
  %v43 = vld [vmem:[%s1 + $0x48] sm:$0xf]
  %v44 = vld [vmem:[%s1 + $0x4c] sm:$0xf]
  %v45 = vld [vmem:[%s1 + $0x50] sm:$0xf]
  %v46 = vld [vmem:[%s1 + $0x54] sm:$0xf]
  %v47 = vld [vmem:[%s1 + $0x58] sm:$0xf]
  %v48 = vld [vmem:[%s1 + $0x5c] sm:$0xf]
  %v53 = vunpack.c.l.b16 %v21
  %v54 = vunpack.c.h.b16 %v21
  %v55 = vunpack.c.l.b16 %v22
  %v56 = vunpack.c.h.b16 %v22
  %v57 = vunpack.c.l.b16 %v23
  %v58 = vunpack.c.h.b16 %v23
  %v59 = vunpack.c.l.b16 %v24
  %v60 = vunpack.c.h.b16 %v24
  %v61 = vpack.c.b16 %v55, %v53
  %v62 = vpack.c.b16 %v56, %v54
  %v63 = vpack.c.b16 %v59, %v57
  %v64 = vpack.c.b16 %v60, %v58
  %v91 = vunpack.c.l.b16 %v25
  %v92 = vunpack.c.l.b16 %v26
  %v93 = vunpack.c.l.b16 %v27
  %v94 = vunpack.c.l.b16 %v28
  %v95 = vunpack.c.l.b16 %v29
  %v96 = vunpack.c.l.b16 %v30
  %v97 = vunpack.c.l.b16 %v31
  %v98 = vunpack.c.l.b16 %v32
  %v99 = vunpack.c.l.b16 %v33
  %v100 = vunpack.c.l.b16 %v34
  %v101 = vunpack.c.l.b16 %v35
  %v102 = vunpack.c.l.b16 %v36
  %v103 = vunpack.c.l.b16 %v37
  %v104 = vunpack.c.l.b16 %v38
  %v105 = vunpack.c.l.b16 %v39
  %v106 = vunpack.c.l.b16 %v40
  %v107 = vunpack.c.l.b16 %v41
  %v108 = vunpack.c.l.b16 %v42
  %v109 = vunpack.c.l.b16 %v43
  %v110 = vunpack.c.l.b16 %v44
  %v111 = vunpack.c.l.b16 %v45
  %v112 = vunpack.c.l.b16 %v46
  %v113 = vunpack.c.l.b16 %v47
  %v114 = vunpack.c.l.b16 %v48
  %v115 = vpack.c.b16 %v92, %v91
  %v116 = vpack.c.b16 %v94, %v93
  %v117 = vpack.c.b16 %v96, %v95
  %v118 = vpack.c.b16 %v98, %v97
  %v119 = vpack.c.b16 %v100, %v99
  %v120 = vpack.c.b16 %v102, %v101
  %v121 = vpack.c.b16 %v104, %v103
  %v122 = vpack.c.b16 %v106, %v105
  %v123 = vpack.c.b16 %v108, %v107
  %v124 = vpack.c.b16 %v110, %v109
  %v125 = vpack.c.b16 %v112, %v111
  %v126 = vpack.c.b16 %v114, %v113
  %vm139 = vcmask 523264
  %v141 = vsel %vm139, %v62, 0
  %v144 = vsel %vm139, %v64, 0
  %146 = vmatprep.subr.bf16.mxu0 0
  %147 = vmatpush1.bf16.msra.mxu0 %v115
  %148 = vmatprep.subr.bf16.mxu0 0
  %149 = vmatpush1.bf16.msra.mxu0 %v116
  %150 = vmatprep.subr.bf16.mxu0 0
  %151 = vmatpush1.bf16.msra.mxu0 %v117
  %152 = vmatprep.subr.bf16.mxu0 0
  %153 = vmatpush1.bf16.msra.mxu0 %v118
  %154 = vmatprep.subr.bf16.mxu0 0
  %155 = vmatpush1.bf16.msra.mxu0 %v119
  %156 = vmatprep.subr.bf16.mxu0 0
  %157 = vmatpush1.bf16.msra.mxu0 %v120
  %158 = vmatprep.subr.bf16.mxu0 0
  %159 = vmatpush1.bf16.msra.mxu0 %v121
  %160 = vmatprep.subr.bf16.mxu0 0
  %161 = vmatpush1.bf16.msra.mxu0 %v122
  %162 = vmatprep.subr.bf16.mxu0 0
  %163 = vmatpush1.bf16.msra.mxu0 %v123
  %164 = vmatprep.subr.bf16.mxu0 0
  %165 = vmatpush1.bf16.msra.mxu0 %v124
  %166 = vmatprep.subr.bf16.mxu0 0
  %167 = vmatpush1.bf16.msra.mxu0 %v125
  %168 = vmatprep.subr.bf16.mxu0 0
  %169 = vmatpush1.bf16.msra.mxu0 %v126
  %170 = vmatprep.subr.bf16.mxu0 0
  %171 = vmatpush1.bf16.msra.mxu0 0
  %172 = vmatprep.subr.bf16.mxu0 0
  %173 = vmatpush1.bf16.msra.mxu0 0
  %174 = vmatprep.subr.bf16.mxu0 0
  %175 = vmatpush1.bf16.msra.mxu0 0
  %176 = vmatprep.subr.bf16.mxu0 0
  %177 = vmatpush1.bf16.msra.mxu0 0
  %178 = vmatprep.mubr.bf16.mxu0 %v141
  %179 = vmatmul.mubr.bf16.gmra.mrb[0].mxu0 %v61
  %v180 = vpop.f32.mrb[0].mxu0
  %v181 = vadd.f32 0.0, %v180
  %v182 = vpop.f32.mrb[0].mxu0
  %v183 = vpop.f32.mrb[0].mxu0
  %v184 = vadd.f32 0.0, %v183
  %v185 = vpop.f32.mrb[0].mxu0
  %186 = vmatprep.mubr.bf16.mxu0 %v144
  %187 = vmatmul.mubr.bf16.gmra.mrb[0].mxu0 %v63
  %v188 = vpop.f32.mrb[0].mxu0
  %v189 = vadd.f32 0.0, %v188
  %v190 = vpop.f32.mrb[0].mxu0
  %v191 = vpop.f32.mrb[0].mxu0
  %v192 = vadd.f32 0.0, %v191
  %v193 = vpop.f32.mrb[0].mxu0
  %194 = vdwg.mxu0
  %v195 = vld [vmem:[%s2] sm:$0x1]
  %v197 = vlaneseq
  %v198 = vshrl.u32 %v197, 7
  %v199 = vsub.s32 0, %v198
  %v200 = vrot.slane %v195, %v199
  %v202 = vmul.f32 %v181, %v200
  %v203 = vmul.f32 %v184, %v200
  %v204 = vmul.f32 %v189, %v200
  %v205 = vmul.f32 %v192, %v200
  %v206 = vld [vmem:[%s3] sm:$0x1]
  %v208 = vlaneseq
  %v209 = vshrl.u32 %v208, 7
  %v210 = vsub.s32 0, %v209
  %v211 = vrot.slane %v206, %v210
  %v213 = vadd.f32 %v202, %v211
  %v214 = vadd.f32 %v203, %v211
  %v215 = vadd.f32 %v204, %v211
  %v216 = vadd.f32 %v205, %v211
  %v217 = vld [vmem:[%s4] sm:$0xf]
  %v218 = vld [vmem:[%s4 + $0x4] sm:$0xf]
  %v219 = vld [vmem:[%s4 + $0x8] sm:$0xf]
  %v220 = vld [vmem:[%s4 + $0xc] sm:$0xf]
  %v221 = vunpack.c.l.bf16 %v217
  %v222 = vunpack.c.l.bf16 %v218
  %v223 = vunpack.c.l.bf16 %v219
  %v224 = vunpack.c.l.bf16 %v220
  %v225 = vadd.f32 %v213, %v221
  %v226 = vadd.f32 %v214, %v222
  %v227 = vadd.f32 %v215, %v223
  %v228 = vadd.f32 %v216, %v224
  %v229 = vmax.f32 %v225, 0.0
  %v230 = vmax.f32 %v226, 0.0
  %v231 = vmax.f32 %v227, 0.0
  %v232 = vmax.f32 %v228, 0.0
  %v233 = vpack.c.bf16 %v230, %v229
  %v234 = vpack.c.bf16 %v232, %v231
  %v237 = vunpack.c.l.b16 %v233
  %v238 = vunpack.c.h.b16 %v233
  %v239 = vunpack.c.l.b16 %v234
  %v240 = vunpack.c.h.b16 %v234
  %v241 = vpack.c.b16 %v237, %v237
  %v242 = vpack.c.b16 %v238, %v238
  %v243 = vpack.c.b16 %v239, %v239
  %v244 = vpack.c.b16 %v240, %v240
  %vm249 = vcmask 519168
  %250 = vst.msk [vmem:[%s5] sm:$0xf] %vm249, %v241
  %251 = vst.msk [vmem:[%s5 + $0x4] sm:$0xf] %vm249, %v242
  %252 = vst.msk [vmem:[%s5 + $0x8] sm:$0xf] %vm249, %v243
  %253 = vst.msk [vmem:[%s5 + $0xc] sm:$0xf] %vm249, %v244
  // Predicated region
  $region22: #{net_forward.64} parent=0 // pred_check
    _
  $region23: #{net_forward.64} parent=0 // pred_check_branch
    %255 = sbr.rel (0) target = $region25
  $region24: #{net_forward.64} parent=0 // pred_region
    _
  $region25: #{net_forward.64} parent=0 // pred_fallthru
    _
  // Predicated region
  $region26: #{net_forward.64} parent=0 // pred_check
    _
  $region27: #{net_forward.64} parent=0 // pred_check_branch
    %257 = sbr.rel (0) target = $region29
  $region28: #{net_forward.64} parent=0 // pred_region
    _
  $region29: #{net_forward.64} parent=0 // pred_fallthru
    _

// kernel: net_forward.82
$region0: #{net_forward.82}
  #allocation0 [shape = 'u32[]', space=smem, size = 0x4, offset = 0x4, fixed_abs, tag = 'smem constant byte address 0x4 - core index']
  #allocation1 [shape = 'u32[144,128]{1,0:T(1,128)}', space=vmem, size = 0x12000, scoped, tag = 'internal scratch']
  %s0 = inlined_call_operand.vmem [shape: bf16[8,384], index: 0, kind: input, shape index: {}]
  %s1 = inlined_call_operand.vmem [shape: bf16[384,128], index: 1, kind: input, shape index: {}]
  %s2 = inlined_call_operand.vmem [shape: f32[1,128], index: 2, kind: input, shape index: {}]
  %s3 = inlined_call_operand.vmem [shape: f32[1,128], index: 3, kind: input, shape index: {}]
  %s4 = inlined_call_operand.vmem [shape: bf16[8,128], index: 4, kind: output, shape index: {}]
  %s5 = sld [smem:[#allocation0]]
  $region26: #{net_forward.82} parent=0
    _
  %s7 = ssub.s32 1, %s5
  %s8 = scalar_select 0, %s7, %s5
  // Predicated region
  $region2: #{net_forward.82} parent=0 // pred_check
    _
  $region3: #{net_forward.82} parent=0 // pred_check_branch
    %10 = sbr.rel (0) target = $region5
  $region4: #{net_forward.82} parent=0 // pred_region
    _
  $region5: #{net_forward.82} parent=0 // pred_fallthru
    _
  // Predicated region
  $region6: #{net_forward.82} parent=0 // pred_check
    _
  $region7: #{net_forward.82} parent=0 // pred_check_branch
    %12 = sbr.rel (0) target = $region9
  $region8: #{net_forward.82} parent=0 // pred_region
    _
  $region9: #{net_forward.82} parent=0 // pred_fallthru
    _
  // Predicated region
  $region10: #{net_forward.82} parent=0 // pred_check
    _
  $region11: #{net_forward.82} parent=0 // pred_check_branch
    %14 = sbr.rel (0) target = $region13
  $region12: #{net_forward.82} parent=0 // pred_region
    _
  $region13: #{net_forward.82} parent=0 // pred_fallthru
    _
  // Predicated region
  $region14: #{net_forward.82} parent=0 // pred_check
    _
  $region15: #{net_forward.82} parent=0 // pred_check_branch
    %16 = sbr.rel (0) target = $region17
  $region16: #{net_forward.82} parent=0 // pred_region
    _
  $region17: #{net_forward.82} parent=0 // pred_fallthru
    _
  %v18 = vld [vmem:[%s0] sm:$0xff]
  %v19 = vld [vmem:[%s0 + $0x8] sm:$0xf]
  %v20 = vld [vmem:[%s1] sm:$0xf]
  %v21 = vld [vmem:[%s1 + $0x4] sm:$0xf]
  %v22 = vld [vmem:[%s1 + $0x8] sm:$0xf]
  %v23 = vld [vmem:[%s1 + $0xc] sm:$0xf]
  %v24 = vld [vmem:[%s1 + $0x10] sm:$0xf]
  %v25 = vld [vmem:[%s1 + $0x14] sm:$0xf]
  %v26 = vld [vmem:[%s1 + $0x18] sm:$0xf]
  %v27 = vld [vmem:[%s1 + $0x1c] sm:$0xf]
  %v28 = vld [vmem:[%s1 + $0x20] sm:$0xf]
  %v29 = vld [vmem:[%s1 + $0x24] sm:$0xf]
  %v30 = vld [vmem:[%s1 + $0x28] sm:$0xf]
  %v31 = vld [vmem:[%s1 + $0x2c] sm:$0xf]
  %v32 = vld [vmem:[%s1 + $0x30] sm:$0xf]
  %v33 = vld [vmem:[%s1 + $0x34] sm:$0xf]
  %v34 = vld [vmem:[%s1 + $0x38] sm:$0xf]
  %v35 = vld [vmem:[%s1 + $0x3c] sm:$0xf]
  %v36 = vld [vmem:[%s1 + $0x40] sm:$0xf]
  %v37 = vld [vmem:[%s1 + $0x44] sm:$0xf]
  %v38 = vld [vmem:[%s1 + $0x48] sm:$0xf]
  %v39 = vld [vmem:[%s1 + $0x4c] sm:$0xf]
  %v40 = vld [vmem:[%s1 + $0x50] sm:$0xf]
  %v41 = vld [vmem:[%s1 + $0x54] sm:$0xf]
  %v42 = vld [vmem:[%s1 + $0x58] sm:$0xf]
  %v43 = vld [vmem:[%s1 + $0x5c] sm:$0xf]
  %v44 = vld [vmem:[%s1 + $0x60] sm:$0xf]
  %v45 = vld [vmem:[%s1 + $0x64] sm:$0xf]
  %v46 = vld [vmem:[%s1 + $0x68] sm:$0xf]
  %v47 = vld [vmem:[%s1 + $0x6c] sm:$0xf]
  %v48 = vld [vmem:[%s1 + $0x70] sm:$0xf]
  %v49 = vld [vmem:[%s1 + $0x74] sm:$0xf]
  %v50 = vld [vmem:[%s1 + $0x78] sm:$0xf]
  %v51 = vld [vmem:[%s1 + $0x7c] sm:$0xf]
  %v52 = vld [vmem:[%s1 + $0x80] sm:$0xf]
  %v53 = vld [vmem:[%s1 + $0x84] sm:$0xf]
  %v54 = vld [vmem:[%s1 + $0x88] sm:$0xf]
  %v55 = vld [vmem:[%s1 + $0x8c] sm:$0xf]
  %v56 = vld [vmem:[%s1 + $0x90] sm:$0xf]
  %v57 = vld [vmem:[%s1 + $0x94] sm:$0xf]
  %v58 = vld [vmem:[%s1 + $0x98] sm:$0xf]
  %v59 = vld [vmem:[%s1 + $0x9c] sm:$0xf]
  %v60 = vld [vmem:[%s1 + $0xa0] sm:$0xf]
  %v61 = vld [vmem:[%s1 + $0xa4] sm:$0xf]
  %v62 = vld [vmem:[%s1 + $0xa8] sm:$0xf]
  %v63 = vld [vmem:[%s1 + $0xac] sm:$0xf]
  %v64 = vld [vmem:[%s1 + $0xb0] sm:$0xf]
  %v65 = vld [vmem:[%s1 + $0xb4] sm:$0xf]
  %v66 = vld [vmem:[%s1 + $0xb8] sm:$0xf]
  %v67 = vld [vmem:[%s1 + $0xbc] sm:$0xf]
  %v70 = vunpack.c.l.b16 %v18
  %v71 = vunpack.c.h.b16 %v18
  %v72 = vunpack.c.l.b16 %v19
  %v73 = vpack.c.b16 %v70, %v70
  %v74 = vpack.c.b16 %v71, %v71
  %v75 = vpack.c.b16 %v72, %v72
  %v127 = vunpack.c.l.b16 %v20
  %v128 = vunpack.c.l.b16 %v21
  %v129 = vunpack.c.l.b16 %v22
  %v130 = vunpack.c.l.b16 %v23
  %v131 = vunpack.c.l.b16 %v24
  %v132 = vunpack.c.l.b16 %v25
  %v133 = vunpack.c.l.b16 %v26
  %v134 = vunpack.c.l.b16 %v27
  %v135 = vunpack.c.l.b16 %v28
  %v136 = vunpack.c.l.b16 %v29
  %v137 = vunpack.c.l.b16 %v30
  %v138 = vunpack.c.l.b16 %v31
  %v139 = vunpack.c.l.b16 %v32
  %v140 = vunpack.c.l.b16 %v33
  %v141 = vunpack.c.l.b16 %v34
  %v142 = vunpack.c.l.b16 %v35
  %v143 = vunpack.c.l.b16 %v36
  %v144 = vunpack.c.l.b16 %v37
  %v145 = vunpack.c.l.b16 %v38
  %v146 = vunpack.c.l.b16 %v39
  %v147 = vunpack.c.l.b16 %v40
  %v148 = vunpack.c.l.b16 %v41
  %v149 = vunpack.c.l.b16 %v42
  %v150 = vunpack.c.l.b16 %v43
  %v151 = vunpack.c.l.b16 %v44
  %v152 = vunpack.c.l.b16 %v45
  %v153 = vunpack.c.l.b16 %v46
  %v154 = vunpack.c.l.b16 %v47
  %v155 = vunpack.c.l.b16 %v48
  %v156 = vunpack.c.l.b16 %v49
  %v157 = vunpack.c.l.b16 %v50
  %v158 = vunpack.c.l.b16 %v51
  %v159 = vunpack.c.l.b16 %v52
  %v160 = vunpack.c.l.b16 %v53
  %v161 = vunpack.c.l.b16 %v54
  %v162 = vunpack.c.l.b16 %v55
  %v163 = vunpack.c.l.b16 %v56
  %v164 = vunpack.c.l.b16 %v57
  %v165 = vunpack.c.l.b16 %v58
  %v166 = vunpack.c.l.b16 %v59
  %v167 = vunpack.c.l.b16 %v60
  %v168 = vunpack.c.l.b16 %v61
  %v169 = vunpack.c.l.b16 %v62
  %v170 = vunpack.c.l.b16 %v63
  %v171 = vunpack.c.l.b16 %v64
  %v172 = vunpack.c.l.b16 %v65
  %v173 = vunpack.c.l.b16 %v66
  %v174 = vunpack.c.l.b16 %v67
  %v175 = vpack.c.b16 %v128, %v127
  %v176 = vpack.c.b16 %v130, %v129
  %v177 = vpack.c.b16 %v132, %v131
  %v178 = vpack.c.b16 %v134, %v133
  %v179 = vpack.c.b16 %v136, %v135
  %v180 = vpack.c.b16 %v138, %v137
  %v181 = vpack.c.b16 %v140, %v139
  %v182 = vpack.c.b16 %v142, %v141
  %v183 = vpack.c.b16 %v144, %v143
  %v184 = vpack.c.b16 %v146, %v145
  %v185 = vpack.c.b16 %v148, %v147
  %v186 = vpack.c.b16 %v150, %v149
  %v187 = vpack.c.b16 %v152, %v151
  %v188 = vpack.c.b16 %v154, %v153
  %v189 = vpack.c.b16 %v156, %v155
  %v190 = vpack.c.b16 %v158, %v157
  %v191 = vpack.c.b16 %v160, %v159
  %v192 = vpack.c.b16 %v162, %v161
  %v193 = vpack.c.b16 %v164, %v163
  %v194 = vpack.c.b16 %v166, %v165
  %v195 = vpack.c.b16 %v168, %v167
  %v196 = vpack.c.b16 %v170, %v169
  %v197 = vpack.c.b16 %v172, %v171
  %v198 = vpack.c.b16 %v174, %v173
  %223 = vmatprep.subr.bf16.mxu0 0
  %224 = vmatpush1.bf16.msra.mxu0 %v175
  %225 = vmatprep.subr.bf16.mxu0 0
  %226 = vmatpush1.bf16.msra.mxu0 %v176
  %227 = vmatprep.subr.bf16.mxu0 0
  %228 = vmatpush1.bf16.msra.mxu0 %v177
  %229 = vmatprep.subr.bf16.mxu0 0
  %230 = vmatpush1.bf16.msra.mxu0 %v178
  %231 = vmatprep.subr.bf16.mxu0 0
  %232 = vmatpush1.bf16.msra.mxu0 %v179
  %233 = vmatprep.subr.bf16.mxu0 0
  %234 = vmatpush1.bf16.msra.mxu0 %v180
  %235 = vmatprep.subr.bf16.mxu0 0
  %236 = vmatpush1.bf16.msra.mxu0 %v181
  %237 = vmatprep.subr.bf16.mxu0 0
  %238 = vmatpush1.bf16.msra.mxu0 %v182
  %239 = vmatprep.subr.bf16.mxu0 0
  %240 = vmatpush1.bf16.msra.mxu0 %v183
  %241 = vmatprep.subr.bf16.mxu0 0
  %242 = vmatpush1.bf16.msra.mxu0 %v184
  %243 = vmatprep.subr.bf16.mxu0 0
  %244 = vmatpush1.bf16.msra.mxu0 %v185
  %245 = vmatprep.subr.bf16.mxu0 0
  %246 = vmatpush1.bf16.msra.mxu0 %v186
  %247 = vmatprep.subr.bf16.mxu0 0
  %248 = vmatpush1.bf16.msra.mxu0 %v187
  %249 = vmatprep.subr.bf16.mxu0 0
  %250 = vmatpush1.bf16.msra.mxu0 %v188
  %251 = vmatprep.subr.bf16.mxu0 0
  %252 = vmatpush1.bf16.msra.mxu0 %v189
  %253 = vmatprep.subr.bf16.mxu0 0
  %254 = vmatpush1.bf16.msra.mxu0 %v190
  %255 = vmatprep.mubr.bf16.mxu0 %v74
  %256 = vmatmul.mubr.bf16.gmra.mrb[0].mxu0 %v73
  %v257 = vpop.f32.mrb[0].mxu0
  %v258 = vadd.f32 0.0, %v257
  %v259 = vpop.f32.mrb[0].mxu0
  %v260 = vpop.f32.mrb[0].mxu0
  %v261 = vpop.f32.mrb[0].mxu0
  %262 = vdwg.mxu0
  %263 = vmatprep.subr.bf16.mxu0 0
  %264 = vmatpush1.bf16.msra.mxu0 %v191
  %265 = vmatprep.subr.bf16.mxu0 0
  %266 = vmatpush1.bf16.msra.mxu0 %v192
  %267 = vmatprep.subr.bf16.mxu0 0
  %268 = vmatpush1.bf16.msra.mxu0 %v193
  %269 = vmatprep.subr.bf16.mxu0 0
  %270 = vmatpush1.bf16.msra.mxu0 %v194
  %271 = vmatprep.subr.bf16.mxu0 0
  %272 = vmatpush1.bf16.msra.mxu0 %v195
  %273 = vmatprep.subr.bf16.mxu0 0
  %274 = vmatpush1.bf16.msra.mxu0 %v196
  %275 = vmatprep.subr.bf16.mxu0 0
  %276 = vmatpush1.bf16.msra.mxu0 %v197
  %277 = vmatprep.subr.bf16.mxu0 0
  %278 = vmatpush1.bf16.msra.mxu0 %v198
  %279 = vmatprep.subr.bf16.mxu0 0
  %280 = vmatpush1.bf16.msra.mxu0 0
  %281 = vmatprep.subr.bf16.mxu0 0
  %282 = vmatpush1.bf16.msra.mxu0 0
  %283 = vmatprep.subr.bf16.mxu0 0
  %284 = vmatpush1.bf16.msra.mxu0 0
  %285 = vmatprep.subr.bf16.mxu0 0
  %286 = vmatpush1.bf16.msra.mxu0 0
  %287 = vmatprep.subr.bf16.mxu0 0
  %288 = vmatpush1.bf16.msra.mxu0 0
  %289 = vmatprep.subr.bf16.mxu0 0
  %290 = vmatpush1.bf16.msra.mxu0 0
  %291 = vmatprep.subr.bf16.mxu0 0
  %292 = vmatpush1.bf16.msra.mxu0 0
  %293 = vmatprep.subr.bf16.mxu0 0
  %294 = vmatpush1.bf16.msra.mxu0 0
  %295 = vmatprep.mubr.bf16.mxu0 0
  %296 = vmatmul.mubr.bf16.gmra.mrb[0].mxu0 %v75
  %v297 = vpop.f32.mrb[0].mxu0
  %v298 = vadd.f32 %v258, %v297
  %v299 = vpop.f32.mrb[0].mxu0
  %v300 = vpop.f32.mrb[0].mxu0
  %v301 = vpop.f32.mrb[0].mxu0
  %302 = vdwg.mxu0
  %v303 = vld [vmem:[%s2] sm:$0x1]
  %v305 = vlaneseq
  %v306 = vshrl.u32 %v305, 7
  %v307 = vsub.s32 0, %v306
  %v308 = vrot.slane %v303, %v307
  %v310 = vmul.f32 %v298, %v308
  %v311 = vld [vmem:[%s3] sm:$0x1]
  %v313 = vlaneseq
  %v314 = vshrl.u32 %v313, 7
  %v315 = vsub.s32 0, %v314
  %v316 = vrot.slane %v311, %v315
  %v318 = vadd.f32 %v310, %v316
  %v319 = vmax.f32 %v318, 0.0
  %v320 = vpack.c.bf16 %v319, %v319
  %321 = vst [vmem:[%s4] sm:$0xf] %v320
  // Predicated region
  $region18: #{net_forward.82} parent=0 // pred_check
    _
  $region19: #{net_forward.82} parent=0 // pred_check_branch
    %323 = sbr.rel (0) target = $region21
  $region20: #{net_forward.82} parent=0 // pred_region
    _
  $region21: #{net_forward.82} parent=0 // pred_fallthru
    _
  // Predicated region
  $region22: #{net_forward.82} parent=0 // pred_check
    _
  $region23: #{net_forward.82} parent=0 // pred_check_branch
    %325 = sbr.rel (0) target = $region25
  $region24: #{net_forward.82} parent=0 // pred_region
    _
  $region25: #{net_forward.82} parent=0 // pred_fallthru
    _

// kernel: net_forward.81
$region0: #{net_forward.81}
  #allocation0 [shape = 'u32[]', space=smem, size = 0x4, offset = 0x4, fixed_abs, tag = 'smem constant byte address 0x4 - core index']
  #allocation1 [shape = 'u32[144,128]{1,0:T(1,128)}', space=vmem, size = 0x12000, scoped, tag = 'internal scratch']
  %s0 = inlined_call_operand.vmem [shape: bf16[8,640], index: 0, kind: input, shape index: {}]
  %s1 = inlined_call_operand.vmem [shape: bf16[640,128], index: 1, kind: input, shape index: {}]
  %s2 = inlined_call_operand.vmem [shape: f32[1,128], index: 2, kind: input, shape index: {}]
  %s3 = inlined_call_operand.vmem [shape: f32[1,128], index: 3, kind: input, shape index: {}]
  %s4 = inlined_call_operand.vmem [shape: bf16[8,128], index: 4, kind: output, shape index: {}]
  %s5 = sld [smem:[#allocation0]]
  $region26: #{net_forward.81} parent=0
    _
  %s7 = ssub.s32 1, %s5
  %s8 = scalar_select 0, %s7, %s5
  // Predicated region
  $region2: #{net_forward.81} parent=0 // pred_check
    _
  $region3: #{net_forward.81} parent=0 // pred_check_branch
    %10 = sbr.rel (0) target = $region5
  $region4: #{net_forward.81} parent=0 // pred_region
    _
  $region5: #{net_forward.81} parent=0 // pred_fallthru
    _
  // Predicated region
  $region6: #{net_forward.81} parent=0 // pred_check
    _
  $region7: #{net_forward.81} parent=0 // pred_check_branch
    %12 = sbr.rel (0) target = $region9
  $region8: #{net_forward.81} parent=0 // pred_region
    _
  $region9: #{net_forward.81} parent=0 // pred_fallthru
    _
  // Predicated region
  $region10: #{net_forward.81} parent=0 // pred_check
    _
  $region11: #{net_forward.81} parent=0 // pred_check_branch
    %14 = sbr.rel (0) target = $region13
  $region12: #{net_forward.81} parent=0 // pred_region
    _
  $region13: #{net_forward.81} parent=0 // pred_fallthru
    _
  // Predicated region
  $region14: #{net_forward.81} parent=0 // pred_check
    _
  $region15: #{net_forward.81} parent=0 // pred_check_branch
    %16 = sbr.rel (0) target = $region17
  $region16: #{net_forward.81} parent=0 // pred_region
    _
  $region17: #{net_forward.81} parent=0 // pred_fallthru
    _
  %v18 = vld [vmem:[%s0] sm:$0xff]
  %v19 = vld [vmem:[%s0 + $0x8] sm:$0xff]
  %v20 = vld [vmem:[%s0 + $0x10] sm:$0xf]
  %v21 = vld [vmem:[%s1] sm:$0xf]
  %v22 = vld [vmem:[%s1 + $0x4] sm:$0xf]
  %v23 = vld [vmem:[%s1 + $0x8] sm:$0xf]
  %v24 = vld [vmem:[%s1 + $0xc] sm:$0xf]
  %v25 = vld [vmem:[%s1 + $0x10] sm:$0xf]
  %v26 = vld [vmem:[%s1 + $0x14] sm:$0xf]
  %v27 = vld [vmem:[%s1 + $0x18] sm:$0xf]
  %v28 = vld [vmem:[%s1 + $0x1c] sm:$0xf]
  %v29 = vld [vmem:[%s1 + $0x20] sm:$0xf]
  %v30 = vld [vmem:[%s1 + $0x24] sm:$0xf]
  %v31 = vld [vmem:[%s1 + $0x28] sm:$0xf]
  %v32 = vld [vmem:[%s1 + $0x2c] sm:$0xf]
  %v33 = vld [vmem:[%s1 + $0x30] sm:$0xf]
  %v34 = vld [vmem:[%s1 + $0x34] sm:$0xf]
  %v35 = vld [vmem:[%s1 + $0x38] sm:$0xf]
  %v36 = vld [vmem:[%s1 + $0x3c] sm:$0xf]
  %v37 = vld [vmem:[%s1 + $0x40] sm:$0xf]
  %v38 = vld [vmem:[%s1 + $0x44] sm:$0xf]
  %v39 = vld [vmem:[%s1 + $0x48] sm:$0xf]
  %v40 = vld [vmem:[%s1 + $0x4c] sm:$0xf]
  %v41 = vld [vmem:[%s1 + $0x50] sm:$0xf]
  %v42 = vld [vmem:[%s1 + $0x54] sm:$0xf]
  %v43 = vld [vmem:[%s1 + $0x58] sm:$0xf]
  %v44 = vld [vmem:[%s1 + $0x5c] sm:$0xf]
  %v45 = vld [vmem:[%s1 + $0x60] sm:$0xf]
  %v46 = vld [vmem:[%s1 + $0x64] sm:$0xf]
  %v47 = vld [vmem:[%s1 + $0x68] sm:$0xf]
  %v48 = vld [vmem:[%s1 + $0x6c] sm:$0xf]
  %v49 = vld [vmem:[%s1 + $0x70] sm:$0xf]
  %v50 = vld [vmem:[%s1 + $0x74] sm:$0xf]
  %v51 = vld [vmem:[%s1 + $0x78] sm:$0xf]
  %v52 = vld [vmem:[%s1 + $0x7c] sm:$0xf]
  %v53 = vld [vmem:[%s1 + $0x80] sm:$0xf]
  %v54 = vld [vmem:[%s1 + $0x84] sm:$0xf]
  %v55 = vld [vmem:[%s1 + $0x88] sm:$0xf]
  %v56 = vld [vmem:[%s1 + $0x8c] sm:$0xf]
  %v57 = vld [vmem:[%s1 + $0x90] sm:$0xf]
  %v58 = vld [vmem:[%s1 + $0x94] sm:$0xf]
  %v59 = vld [vmem:[%s1 + $0x98] sm:$0xf]
  %v60 = vld [vmem:[%s1 + $0x9c] sm:$0xf]
  %v61 = vld [vmem:[%s1 + $0xa0] sm:$0xf]
  %v62 = vld [vmem:[%s1 + $0xa4] sm:$0xf]
  %v63 = vld [vmem:[%s1 + $0xa8] sm:$0xf]
  %v64 = vld [vmem:[%s1 + $0xac] sm:$0xf]
  %v65 = vld [vmem:[%s1 + $0xb0] sm:$0xf]
  %v66 = vld [vmem:[%s1 + $0xb4] sm:$0xf]
  %v67 = vld [vmem:[%s1 + $0xb8] sm:$0xf]
  %v68 = vld [vmem:[%s1 + $0xbc] sm:$0xf]
  %v69 = vld [vmem:[%s1 + $0xc0] sm:$0xf]
  %v70 = vld [vmem:[%s1 + $0xc4] sm:$0xf]
  %v71 = vld [vmem:[%s1 + $0xc8] sm:$0xf]
  %v72 = vld [vmem:[%s1 + $0xcc] sm:$0xf]
  %v73 = vld [vmem:[%s1 + $0xd0] sm:$0xf]
  %v74 = vld [vmem:[%s1 + $0xd4] sm:$0xf]
  %v75 = vld [vmem:[%s1 + $0xd8] sm:$0xf]
  %v76 = vld [vmem:[%s1 + $0xdc] sm:$0xf]
  %v77 = vld [vmem:[%s1 + $0xe0] sm:$0xf]
  %v78 = vld [vmem:[%s1 + $0xe4] sm:$0xf]
  %v79 = vld [vmem:[%s1 + $0xe8] sm:$0xf]
  %v80 = vld [vmem:[%s1 + $0xec] sm:$0xf]
  %v81 = vld [vmem:[%s1 + $0xf0] sm:$0xf]
  %v82 = vld [vmem:[%s1 + $0xf4] sm:$0xf]
  %v83 = vld [vmem:[%s1 + $0xf8] sm:$0xf]
  %v84 = vld [vmem:[%s1 + $0xfc] sm:$0xf]
  %v85 = vld [vmem:[%s1 + $0x100] sm:$0xf]
  %v86 = vld [vmem:[%s1 + $0x104] sm:$0xf]
  %v87 = vld [vmem:[%s1 + $0x108] sm:$0xf]
  %v88 = vld [vmem:[%s1 + $0x10c] sm:$0xf]
  %v89 = vld [vmem:[%s1 + $0x110] sm:$0xf]
  %v90 = vld [vmem:[%s1 + $0x114] sm:$0xf]
  %v91 = vld [vmem:[%s1 + $0x118] sm:$0xf]
  %v92 = vld [vmem:[%s1 + $0x11c] sm:$0xf]
  %v93 = vld [vmem:[%s1 + $0x120] sm:$0xf]
  %v94 = vld [vmem:[%s1 + $0x124] sm:$0xf]
  %v95 = vld [vmem:[%s1 + $0x128] sm:$0xf]
  %v96 = vld [vmem:[%s1 + $0x12c] sm:$0xf]
  %v97 = vld [vmem:[%s1 + $0x130] sm:$0xf]
  %v98 = vld [vmem:[%s1 + $0x134] sm:$0xf]
  %v99 = vld [vmem:[%s1 + $0x138] sm:$0xf]
  %v100 = vld [vmem:[%s1 + $0x13c] sm:$0xf]
  %v104 = vunpack.c.l.b16 %v18
  %v105 = vunpack.c.h.b16 %v18
  %v106 = vunpack.c.l.b16 %v19
  %v107 = vunpack.c.h.b16 %v19
  %v108 = vunpack.c.l.b16 %v20
  %v109 = vpack.c.b16 %v104, %v104
  %v110 = vpack.c.b16 %v105, %v105
  %v111 = vpack.c.b16 %v106, %v106
  %v112 = vpack.c.b16 %v107, %v107
  %v113 = vpack.c.b16 %v108, %v108
  %v199 = vunpack.c.l.b16 %v21
  %v200 = vunpack.c.l.b16 %v22
  %v201 = vunpack.c.l.b16 %v23
  %v202 = vunpack.c.l.b16 %v24
  %v203 = vunpack.c.l.b16 %v25
  %v204 = vunpack.c.l.b16 %v26
  %v205 = vunpack.c.l.b16 %v27
  %v206 = vunpack.c.l.b16 %v28
  %v207 = vunpack.c.l.b16 %v29
  %v208 = vunpack.c.l.b16 %v30
  %v209 = vunpack.c.l.b16 %v31
  %v210 = vunpack.c.l.b16 %v32
  %v211 = vunpack.c.l.b16 %v33
  %v212 = vunpack.c.l.b16 %v34
  %v213 = vunpack.c.l.b16 %v35
  %v214 = vunpack.c.l.b16 %v36
  %v215 = vunpack.c.l.b16 %v37
  %v216 = vunpack.c.l.b16 %v38
  %v217 = vunpack.c.l.b16 %v39
  %v218 = vunpack.c.l.b16 %v40
  %v219 = vunpack.c.l.b16 %v41
  %v220 = vunpack.c.l.b16 %v42
  %v221 = vunpack.c.l.b16 %v43
  %v222 = vunpack.c.l.b16 %v44
  %v223 = vunpack.c.l.b16 %v45
  %v224 = vunpack.c.l.b16 %v46
  %v225 = vunpack.c.l.b16 %v47
  %v226 = vunpack.c.l.b16 %v48
  %v227 = vunpack.c.l.b16 %v49
  %v228 = vunpack.c.l.b16 %v50
  %v229 = vunpack.c.l.b16 %v51
  %v230 = vunpack.c.l.b16 %v52
  %v231 = vunpack.c.l.b16 %v53
  %v232 = vunpack.c.l.b16 %v54
  %v233 = vunpack.c.l.b16 %v55
  %v234 = vunpack.c.l.b16 %v56
  %v235 = vunpack.c.l.b16 %v57
  %v236 = vunpack.c.l.b16 %v58
  %v237 = vunpack.c.l.b16 %v59
  %v238 = vunpack.c.l.b16 %v60
  %v239 = vunpack.c.l.b16 %v61
  %v240 = vunpack.c.l.b16 %v62
  %v241 = vunpack.c.l.b16 %v63
  %v242 = vunpack.c.l.b16 %v64
  %v243 = vunpack.c.l.b16 %v65
  %v244 = vunpack.c.l.b16 %v66
  %v245 = vunpack.c.l.b16 %v67
  %v246 = vunpack.c.l.b16 %v68
  %v247 = vunpack.c.l.b16 %v69
  %v248 = vunpack.c.l.b16 %v70
  %v249 = vunpack.c.l.b16 %v71
  %v250 = vunpack.c.l.b16 %v72
  %v251 = vunpack.c.l.b16 %v73
  %v252 = vunpack.c.l.b16 %v74
  %v253 = vunpack.c.l.b16 %v75
  %v254 = vunpack.c.l.b16 %v76
  %v255 = vunpack.c.l.b16 %v77
  %v256 = vunpack.c.l.b16 %v78
  %v257 = vunpack.c.l.b16 %v79
  %v258 = vunpack.c.l.b16 %v80
  %v259 = vunpack.c.l.b16 %v81
  %v260 = vunpack.c.l.b16 %v82
  %v261 = vunpack.c.l.b16 %v83
  %v262 = vunpack.c.l.b16 %v84
  %v263 = vunpack.c.l.b16 %v85
  %v264 = vunpack.c.l.b16 %v86
  %v265 = vunpack.c.l.b16 %v87
  %v266 = vunpack.c.l.b16 %v88
  %v267 = vunpack.c.l.b16 %v89
  %v268 = vunpack.c.l.b16 %v90
  %v269 = vunpack.c.l.b16 %v91
  %v270 = vunpack.c.l.b16 %v92
  %v271 = vunpack.c.l.b16 %v93
  %v272 = vunpack.c.l.b16 %v94
  %v273 = vunpack.c.l.b16 %v95
  %v274 = vunpack.c.l.b16 %v96
  %v275 = vunpack.c.l.b16 %v97
  %v276 = vunpack.c.l.b16 %v98
  %v277 = vunpack.c.l.b16 %v99
  %v278 = vunpack.c.l.b16 %v100
  %v279 = vpack.c.b16 %v200, %v199
  %v280 = vpack.c.b16 %v202, %v201
  %v281 = vpack.c.b16 %v204, %v203
  %v282 = vpack.c.b16 %v206, %v205
  %v283 = vpack.c.b16 %v208, %v207
  %v284 = vpack.c.b16 %v210, %v209
  %v285 = vpack.c.b16 %v212, %v211
  %v286 = vpack.c.b16 %v214, %v213
  %v287 = vpack.c.b16 %v216, %v215
  %v288 = vpack.c.b16 %v218, %v217
  %v289 = vpack.c.b16 %v220, %v219
  %v290 = vpack.c.b16 %v222, %v221
  %v291 = vpack.c.b16 %v224, %v223
  %v292 = vpack.c.b16 %v226, %v225
  %v293 = vpack.c.b16 %v228, %v227
  %v294 = vpack.c.b16 %v230, %v229
  %v295 = vpack.c.b16 %v232, %v231
  %v296 = vpack.c.b16 %v234, %v233
  %v297 = vpack.c.b16 %v236, %v235
  %v298 = vpack.c.b16 %v238, %v237
  %v299 = vpack.c.b16 %v240, %v239
  %v300 = vpack.c.b16 %v242, %v241
  %v301 = vpack.c.b16 %v244, %v243
  %v302 = vpack.c.b16 %v246, %v245
  %v303 = vpack.c.b16 %v248, %v247
  %v304 = vpack.c.b16 %v250, %v249
  %v305 = vpack.c.b16 %v252, %v251
  %v306 = vpack.c.b16 %v254, %v253
  %v307 = vpack.c.b16 %v256, %v255
  %v308 = vpack.c.b16 %v258, %v257
  %v309 = vpack.c.b16 %v260, %v259
  %v310 = vpack.c.b16 %v262, %v261
  %v311 = vpack.c.b16 %v264, %v263
  %v312 = vpack.c.b16 %v266, %v265
  %v313 = vpack.c.b16 %v268, %v267
  %v314 = vpack.c.b16 %v270, %v269
  %v315 = vpack.c.b16 %v272, %v271
  %v316 = vpack.c.b16 %v274, %v273
  %v317 = vpack.c.b16 %v276, %v275
  %v318 = vpack.c.b16 %v278, %v277
  %359 = vmatprep.subr.bf16.mxu0 0
  %360 = vmatpush1.bf16.msra.mxu0 %v279
  %361 = vmatprep.subr.bf16.mxu0 0
  %362 = vmatpush1.bf16.msra.mxu0 %v280
  %363 = vmatprep.subr.bf16.mxu0 0
  %364 = vmatpush1.bf16.msra.mxu0 %v281
  %365 = vmatprep.subr.bf16.mxu0 0
  %366 = vmatpush1.bf16.msra.mxu0 %v282
  %367 = vmatprep.subr.bf16.mxu0 0
  %368 = vmatpush1.bf16.msra.mxu0 %v283
  %369 = vmatprep.subr.bf16.mxu0 0
  %370 = vmatpush1.bf16.msra.mxu0 %v284
  %371 = vmatprep.subr.bf16.mxu0 0
  %372 = vmatpush1.bf16.msra.mxu0 %v285
  %373 = vmatprep.subr.bf16.mxu0 0
  %374 = vmatpush1.bf16.msra.mxu0 %v286
  %375 = vmatprep.subr.bf16.mxu0 0
  %376 = vmatpush1.bf16.msra.mxu0 %v287
  %377 = vmatprep.subr.bf16.mxu0 0
  %378 = vmatpush1.bf16.msra.mxu0 %v288
  %379 = vmatprep.subr.bf16.mxu0 0
  %380 = vmatpush1.bf16.msra.mxu0 %v289
  %381 = vmatprep.subr.bf16.mxu0 0
  %382 = vmatpush1.bf16.msra.mxu0 %v290
  %383 = vmatprep.subr.bf16.mxu0 0
  %384 = vmatpush1.bf16.msra.mxu0 %v291
  %385 = vmatprep.subr.bf16.mxu0 0
  %386 = vmatpush1.bf16.msra.mxu0 %v292
  %387 = vmatprep.subr.bf16.mxu0 0
  %388 = vmatpush1.bf16.msra.mxu0 %v293
  %389 = vmatprep.subr.bf16.mxu0 0
  %390 = vmatpush1.bf16.msra.mxu0 %v294
  %391 = vmatprep.mubr.bf16.mxu0 %v110
  %392 = vmatmul.mubr.bf16.gmra.mrb[0].mxu0 %v109
  %v393 = vpop.f32.mrb[0].mxu0
  %v394 = vadd.f32 0.0, %v393
  %v395 = vpop.f32.mrb[0].mxu0
  %v396 = vpop.f32.mrb[0].mxu0
  %v397 = vpop.f32.mrb[0].mxu0
  %398 = vdwg.mxu0
  %399 = vmatprep.subr.bf16.mxu0 0
  %400 = vmatpush1.bf16.msra.mxu0 %v295
  %401 = vmatprep.subr.bf16.mxu0 0
  %402 = vmatpush1.bf16.msra.mxu0 %v296
  %403 = vmatprep.subr.bf16.mxu0 0
  %404 = vmatpush1.bf16.msra.mxu0 %v297
  %405 = vmatprep.subr.bf16.mxu0 0
  %406 = vmatpush1.bf16.msra.mxu0 %v298
  %407 = vmatprep.subr.bf16.mxu0 0
  %408 = vmatpush1.bf16.msra.mxu0 %v299
  %409 = vmatprep.subr.bf16.mxu0 0
  %410 = vmatpush1.bf16.msra.mxu0 %v300
  %411 = vmatprep.subr.bf16.mxu0 0
  %412 = vmatpush1.bf16.msra.mxu0 %v301
  %413 = vmatprep.subr.bf16.mxu0 0
  %414 = vmatpush1.bf16.msra.mxu0 %v302
  %415 = vmatprep.subr.bf16.mxu0 0
  %416 = vmatpush1.bf16.msra.mxu0 %v303
  %417 = vmatprep.subr.bf16.mxu0 0
  %418 = vmatpush1.bf16.msra.mxu0 %v304
  %419 = vmatprep.subr.bf16.mxu0 0
  %420 = vmatpush1.bf16.msra.mxu0 %v305
  %421 = vmatprep.subr.bf16.mxu0 0
  %422 = vmatpush1.bf16.msra.mxu0 %v306
  %423 = vmatprep.subr.bf16.mxu0 0
  %424 = vmatpush1.bf16.msra.mxu0 %v307
  %425 = vmatprep.subr.bf16.mxu0 0
  %426 = vmatpush1.bf16.msra.mxu0 %v308
  %427 = vmatprep.subr.bf16.mxu0 0
  %428 = vmatpush1.bf16.msra.mxu0 %v309
  %429 = vmatprep.subr.bf16.mxu0 0
  %430 = vmatpush1.bf16.msra.mxu0 %v310
  %431 = vmatprep.mubr.bf16.mxu0 %v112
  %432 = vmatmul.mubr.bf16.gmra.mrb[0].mxu0 %v111
  %v433 = vpop.f32.mrb[0].mxu0
  %v434 = vadd.f32 %v394, %v433
  %v435 = vpop.f32.mrb[0].mxu0
  %v436 = vpop.f32.mrb[0].mxu0
  %v437 = vpop.f32.mrb[0].mxu0
  %438 = vdwg.mxu0
  %439 = vmatprep.subr.bf16.mxu0 0
  %440 = vmatpush1.bf16.msra.mxu0 %v311
  %441 = vmatprep.subr.bf16.mxu0 0
  %442 = vmatpush1.bf16.msra.mxu0 %v312
  %443 = vmatprep.subr.bf16.mxu0 0
  %444 = vmatpush1.bf16.msra.mxu0 %v313
  %445 = vmatprep.subr.bf16.mxu0 0
  %446 = vmatpush1.bf16.msra.mxu0 %v314
  %447 = vmatprep.subr.bf16.mxu0 0
  %448 = vmatpush1.bf16.msra.mxu0 %v315
  %449 = vmatprep.subr.bf16.mxu0 0
  %450 = vmatpush1.bf16.msra.mxu0 %v316
  %451 = vmatprep.subr.bf16.mxu0 0
  %452 = vmatpush1.bf16.msra.mxu0 %v317
  %453 = vmatprep.subr.bf16.mxu0 0
  %454 = vmatpush1.bf16.msra.mxu0 %v318
  %455 = vmatprep.subr.bf16.mxu0 0
  %456 = vmatpush1.bf16.msra.mxu0 0
  %457 = vmatprep.subr.bf16.mxu0 0
  %458 = vmatpush1.bf16.msra.mxu0 0
  %459 = vmatprep.subr.bf16.mxu0 0
  %460 = vmatpush1.bf16.msra.mxu0 0
  %461 = vmatprep.subr.bf16.mxu0 0
  %462 = vmatpush1.bf16.msra.mxu0 0
  %463 = vmatprep.subr.bf16.mxu0 0
  %464 = vmatpush1.bf16.msra.mxu0 0
  %465 = vmatprep.subr.bf16.mxu0 0
  %466 = vmatpush1.bf16.msra.mxu0 0
  %467 = vmatprep.subr.bf16.mxu0 0
  %468 = vmatpush1.bf16.msra.mxu0 0
  %469 = vmatprep.subr.bf16.mxu0 0
  %470 = vmatpush1.bf16.msra.mxu0 0
  %471 = vmatprep.mubr.bf16.mxu0 0
  %472 = vmatmul.mubr.bf16.gmra.mrb[0].mxu0 %v113
  %v473 = vpop.f32.mrb[0].mxu0
  %v474 = vadd.f32 %v434, %v473
  %v475 = vpop.f32.mrb[0].mxu0
  %v476 = vpop.f32.mrb[0].mxu0
  %v477 = vpop.f32.mrb[0].mxu0
  %478 = vdwg.mxu0
  %v479 = vld [vmem:[%s2] sm:$0x1]
  %v481 = vlaneseq
  %v482 = vshrl.u32 %v481, 7
  %v483 = vsub.s32 0, %v482
  %v484 = vrot.slane %v479, %v483
  %v486 = vmul.f32 %v474, %v484
  %v487 = vld [vmem:[%s3] sm:$0x1]
  %v489 = vlaneseq
  %v490 = vshrl.u32 %v489, 7
  %v491 = vsub.s32 0, %v490
  %v492 = vrot.slane %v487, %v491
  %v494 = vadd.f32 %v486, %v492
  %v495 = vmax.f32 %v494, 0.0
  %v496 = vpack.c.bf16 %v495, %v495
  %497 = vst [vmem:[%s4] sm:$0xf] %v496
  // Predicated region
  $region18: #{net_forward.81} parent=0 // pred_check
    _
  $region19: #{net_forward.81} parent=0 // pred_check_branch
    %499 = sbr.rel (0) target = $region21
  $region20: #{net_forward.81} parent=0 // pred_region
    _
  $region21: #{net_forward.81} parent=0 // pred_fallthru
    _
  // Predicated region
  $region22: #{net_forward.81} parent=0 // pred_check
    _
  $region23: #{net_forward.81} parent=0 // pred_check_branch
    %501 = sbr.rel (0) target = $region25
  $region24: #{net_forward.81} parent=0 // pred_region
    _
  $region25: #{net_forward.81} parent=0 // pred_fallthru
    _

// kernel: net_forward.85
$region0: #{net_forward.85}
  #allocation0 [shape = 'u32[]', space=smem, size = 0x4, offset = 0x4, fixed_abs, tag = 'smem constant byte address 0x4 - core index']
  #allocation1 [shape = 'u32[144,128]{1,0:T(1,128)}', space=vmem, size = 0x12000, scoped, tag = 'internal scratch']
  %s0 = inlined_call_operand.vmem [shape: bf16[8,384], index: 0, kind: input, shape index: {}]
  %s1 = inlined_call_operand.vmem [shape: bf16[384,128], index: 1, kind: input, shape index: {}]
  %s2 = inlined_call_operand.vmem [shape: f32[1,128], index: 2, kind: input, shape index: {}]
  %s3 = inlined_call_operand.vmem [shape: f32[1,128], index: 3, kind: input, shape index: {}]
  %s4 = inlined_call_operand.vmem [shape: bf16[8,128], index: 4, kind: input, shape index: {}]
  %s5 = inlined_call_operand.vmem [shape: bf16[8,128], index: 5, kind: output, shape index: {}]
  %s6 = sld [smem:[#allocation0]]
  $region30: #{net_forward.85} parent=0
    _
  %s8 = ssub.s32 1, %s6
  %s9 = scalar_select 0, %s8, %s6
  // Predicated region
  $region2: #{net_forward.85} parent=0 // pred_check
    _
  $region3: #{net_forward.85} parent=0 // pred_check_branch
    %11 = sbr.rel (0) target = $region5
  $region4: #{net_forward.85} parent=0 // pred_region
    _
  $region5: #{net_forward.85} parent=0 // pred_fallthru
    _
  // Predicated region
  $region6: #{net_forward.85} parent=0 // pred_check
    _
  $region7: #{net_forward.85} parent=0 // pred_check_branch
    %13 = sbr.rel (0) target = $region9
  $region8: #{net_forward.85} parent=0 // pred_region
    _
  $region9: #{net_forward.85} parent=0 // pred_fallthru
    _
  // Predicated region
  $region10: #{net_forward.85} parent=0 // pred_check
    _
  $region11: #{net_forward.85} parent=0 // pred_check_branch
    %15 = sbr.rel (0) target = $region13
  $region12: #{net_forward.85} parent=0 // pred_region
    _
  $region13: #{net_forward.85} parent=0 // pred_fallthru
    _
  // Predicated region
  $region14: #{net_forward.85} parent=0 // pred_check
    _
  $region15: #{net_forward.85} parent=0 // pred_check_branch
    %17 = sbr.rel (0) target = $region17
  $region16: #{net_forward.85} parent=0 // pred_region
    _
  $region17: #{net_forward.85} parent=0 // pred_fallthru
    _
  // Predicated region
  $region18: #{net_forward.85} parent=0 // pred_check
    _
  $region19: #{net_forward.85} parent=0 // pred_check_branch
    %19 = sbr.rel (0) target = $region21
  $region20: #{net_forward.85} parent=0 // pred_region
    _
  $region21: #{net_forward.85} parent=0 // pred_fallthru
    _
  %v21 = vld [vmem:[%s0] sm:$0xff]
  %v22 = vld [vmem:[%s0 + $0x8] sm:$0xf]
  %v23 = vld [vmem:[%s1] sm:$0xf]
  %v24 = vld [vmem:[%s1 + $0x4] sm:$0xf]
  %v25 = vld [vmem:[%s1 + $0x8] sm:$0xf]
  %v26 = vld [vmem:[%s1 + $0xc] sm:$0xf]
  %v27 = vld [vmem:[%s1 + $0x10] sm:$0xf]
  %v28 = vld [vmem:[%s1 + $0x14] sm:$0xf]
  %v29 = vld [vmem:[%s1 + $0x18] sm:$0xf]
  %v30 = vld [vmem:[%s1 + $0x1c] sm:$0xf]
  %v31 = vld [vmem:[%s1 + $0x20] sm:$0xf]
  %v32 = vld [vmem:[%s1 + $0x24] sm:$0xf]
  %v33 = vld [vmem:[%s1 + $0x28] sm:$0xf]
  %v34 = vld [vmem:[%s1 + $0x2c] sm:$0xf]
  %v35 = vld [vmem:[%s1 + $0x30] sm:$0xf]
  %v36 = vld [vmem:[%s1 + $0x34] sm:$0xf]
  %v37 = vld [vmem:[%s1 + $0x38] sm:$0xf]
  %v38 = vld [vmem:[%s1 + $0x3c] sm:$0xf]
  %v39 = vld [vmem:[%s1 + $0x40] sm:$0xf]
  %v40 = vld [vmem:[%s1 + $0x44] sm:$0xf]
  %v41 = vld [vmem:[%s1 + $0x48] sm:$0xf]
  %v42 = vld [vmem:[%s1 + $0x4c] sm:$0xf]
  %v43 = vld [vmem:[%s1 + $0x50] sm:$0xf]
  %v44 = vld [vmem:[%s1 + $0x54] sm:$0xf]
  %v45 = vld [vmem:[%s1 + $0x58] sm:$0xf]
  %v46 = vld [vmem:[%s1 + $0x5c] sm:$0xf]
  %v47 = vld [vmem:[%s1 + $0x60] sm:$0xf]
  %v48 = vld [vmem:[%s1 + $0x64] sm:$0xf]
  %v49 = vld [vmem:[%s1 + $0x68] sm:$0xf]
  %v50 = vld [vmem:[%s1 + $0x6c] sm:$0xf]
  %v51 = vld [vmem:[%s1 + $0x70] sm:$0xf]
  %v52 = vld [vmem:[%s1 + $0x74] sm:$0xf]
  %v53 = vld [vmem:[%s1 + $0x78] sm:$0xf]
  %v54 = vld [vmem:[%s1 + $0x7c] sm:$0xf]
  %v55 = vld [vmem:[%s1 + $0x80] sm:$0xf]
  %v56 = vld [vmem:[%s1 + $0x84] sm:$0xf]
  %v57 = vld [vmem:[%s1 + $0x88] sm:$0xf]
  %v58 = vld [vmem:[%s1 + $0x8c] sm:$0xf]
  %v59 = vld [vmem:[%s1 + $0x90] sm:$0xf]
  %v60 = vld [vmem:[%s1 + $0x94] sm:$0xf]
  %v61 = vld [vmem:[%s1 + $0x98] sm:$0xf]
  %v62 = vld [vmem:[%s1 + $0x9c] sm:$0xf]
  %v63 = vld [vmem:[%s1 + $0xa0] sm:$0xf]
  %v64 = vld [vmem:[%s1 + $0xa4] sm:$0xf]
  %v65 = vld [vmem:[%s1 + $0xa8] sm:$0xf]
  %v66 = vld [vmem:[%s1 + $0xac] sm:$0xf]
  %v67 = vld [vmem:[%s1 + $0xb0] sm:$0xf]
  %v68 = vld [vmem:[%s1 + $0xb4] sm:$0xf]
  %v69 = vld [vmem:[%s1 + $0xb8] sm:$0xf]
  %v70 = vld [vmem:[%s1 + $0xbc] sm:$0xf]
  %v73 = vunpack.c.l.b16 %v21
  %v74 = vunpack.c.h.b16 %v21
  %v75 = vunpack.c.l.b16 %v22
  %v76 = vpack.c.b16 %v73, %v73
  %v77 = vpack.c.b16 %v74, %v74
  %v78 = vpack.c.b16 %v75, %v75
  %v130 = vunpack.c.l.b16 %v23
  %v131 = vunpack.c.l.b16 %v24
  %v132 = vunpack.c.l.b16 %v25
  %v133 = vunpack.c.l.b16 %v26
  %v134 = vunpack.c.l.b16 %v27
  %v135 = vunpack.c.l.b16 %v28
  %v136 = vunpack.c.l.b16 %v29
  %v137 = vunpack.c.l.b16 %v30
  %v138 = vunpack.c.l.b16 %v31
  %v139 = vunpack.c.l.b16 %v32
  %v140 = vunpack.c.l.b16 %v33
  %v141 = vunpack.c.l.b16 %v34
  %v142 = vunpack.c.l.b16 %v35
  %v143 = vunpack.c.l.b16 %v36
  %v144 = vunpack.c.l.b16 %v37
  %v145 = vunpack.c.l.b16 %v38
  %v146 = vunpack.c.l.b16 %v39
  %v147 = vunpack.c.l.b16 %v40
  %v148 = vunpack.c.l.b16 %v41
  %v149 = vunpack.c.l.b16 %v42
  %v150 = vunpack.c.l.b16 %v43
  %v151 = vunpack.c.l.b16 %v44
  %v152 = vunpack.c.l.b16 %v45
  %v153 = vunpack.c.l.b16 %v46
  %v154 = vunpack.c.l.b16 %v47
  %v155 = vunpack.c.l.b16 %v48
  %v156 = vunpack.c.l.b16 %v49
  %v157 = vunpack.c.l.b16 %v50
  %v158 = vunpack.c.l.b16 %v51
  %v159 = vunpack.c.l.b16 %v52
  %v160 = vunpack.c.l.b16 %v53
  %v161 = vunpack.c.l.b16 %v54
  %v162 = vunpack.c.l.b16 %v55
  %v163 = vunpack.c.l.b16 %v56
  %v164 = vunpack.c.l.b16 %v57
  %v165 = vunpack.c.l.b16 %v58
  %v166 = vunpack.c.l.b16 %v59
  %v167 = vunpack.c.l.b16 %v60
  %v168 = vunpack.c.l.b16 %v61
  %v169 = vunpack.c.l.b16 %v62
  %v170 = vunpack.c.l.b16 %v63
  %v171 = vunpack.c.l.b16 %v64
  %v172 = vunpack.c.l.b16 %v65
  %v173 = vunpack.c.l.b16 %v66
  %v174 = vunpack.c.l.b16 %v67
  %v175 = vunpack.c.l.b16 %v68
  %v176 = vunpack.c.l.b16 %v69
  %v177 = vunpack.c.l.b16 %v70
  %v178 = vpack.c.b16 %v131, %v130
  %v179 = vpack.c.b16 %v133, %v132
  %v180 = vpack.c.b16 %v135, %v134
  %v181 = vpack.c.b16 %v137, %v136
  %v182 = vpack.c.b16 %v139, %v138
  %v183 = vpack.c.b16 %v141, %v140
  %v184 = vpack.c.b16 %v143, %v142
  %v185 = vpack.c.b16 %v145, %v144
  %v186 = vpack.c.b16 %v147, %v146
  %v187 = vpack.c.b16 %v149, %v148
  %v188 = vpack.c.b16 %v151, %v150
  %v189 = vpack.c.b16 %v153, %v152
  %v190 = vpack.c.b16 %v155, %v154
  %v191 = vpack.c.b16 %v157, %v156
  %v192 = vpack.c.b16 %v159, %v158
  %v193 = vpack.c.b16 %v161, %v160
  %v194 = vpack.c.b16 %v163, %v162
  %v195 = vpack.c.b16 %v165, %v164
  %v196 = vpack.c.b16 %v167, %v166
  %v197 = vpack.c.b16 %v169, %v168
  %v198 = vpack.c.b16 %v171, %v170
  %v199 = vpack.c.b16 %v173, %v172
  %v200 = vpack.c.b16 %v175, %v174
  %v201 = vpack.c.b16 %v177, %v176
  %226 = vmatprep.subr.bf16.mxu0 0
  %227 = vmatpush1.bf16.msra.mxu0 %v178
  %228 = vmatprep.subr.bf16.mxu0 0
  %229 = vmatpush1.bf16.msra.mxu0 %v179
  %230 = vmatprep.subr.bf16.mxu0 0
  %231 = vmatpush1.bf16.msra.mxu0 %v180
  %232 = vmatprep.subr.bf16.mxu0 0
  %233 = vmatpush1.bf16.msra.mxu0 %v181
  %234 = vmatprep.subr.bf16.mxu0 0
  %235 = vmatpush1.bf16.msra.mxu0 %v182
  %236 = vmatprep.subr.bf16.mxu0 0
  %237 = vmatpush1.bf16.msra.mxu0 %v183
  %238 = vmatprep.subr.bf16.mxu0 0
  %239 = vmatpush1.bf16.msra.mxu0 %v184
  %240 = vmatprep.subr.bf16.mxu0 0
  %241 = vmatpush1.bf16.msra.mxu0 %v185
  %242 = vmatprep.subr.bf16.mxu0 0
  %243 = vmatpush1.bf16.msra.mxu0 %v186
  %244 = vmatprep.subr.bf16.mxu0 0
  %245 = vmatpush1.bf16.msra.mxu0 %v187
  %246 = vmatprep.subr.bf16.mxu0 0
  %247 = vmatpush1.bf16.msra.mxu0 %v188
  %248 = vmatprep.subr.bf16.mxu0 0
  %249 = vmatpush1.bf16.msra.mxu0 %v189
  %250 = vmatprep.subr.bf16.mxu0 0
  %251 = vmatpush1.bf16.msra.mxu0 %v190
  %252 = vmatprep.subr.bf16.mxu0 0
  %253 = vmatpush1.bf16.msra.mxu0 %v191
  %254 = vmatprep.subr.bf16.mxu0 0
  %255 = vmatpush1.bf16.msra.mxu0 %v192
  %256 = vmatprep.subr.bf16.mxu0 0
  %257 = vmatpush1.bf16.msra.mxu0 %v193
  %258 = vmatprep.mubr.bf16.mxu0 %v77
  %259 = vmatmul.mubr.bf16.gmra.mrb[0].mxu0 %v76
  %v260 = vpop.f32.mrb[0].mxu0
  %v261 = vadd.f32 0.0, %v260
  %v262 = vpop.f32.mrb[0].mxu0
  %v263 = vpop.f32.mrb[0].mxu0
  %v264 = vpop.f32.mrb[0].mxu0
  %265 = vdwg.mxu0
  %266 = vmatprep.subr.bf16.mxu0 0
  %267 = vmatpush1.bf16.msra.mxu0 %v194
  %268 = vmatprep.subr.bf16.mxu0 0
  %269 = vmatpush1.bf16.msra.mxu0 %v195
  %270 = vmatprep.subr.bf16.mxu0 0
  %271 = vmatpush1.bf16.msra.mxu0 %v196
  %272 = vmatprep.subr.bf16.mxu0 0
  %273 = vmatpush1.bf16.msra.mxu0 %v197
  %274 = vmatprep.subr.bf16.mxu0 0
  %275 = vmatpush1.bf16.msra.mxu0 %v198
  %276 = vmatprep.subr.bf16.mxu0 0
  %277 = vmatpush1.bf16.msra.mxu0 %v199
  %278 = vmatprep.subr.bf16.mxu0 0
  %279 = vmatpush1.bf16.msra.mxu0 %v200
  %280 = vmatprep.subr.bf16.mxu0 0
  %281 = vmatpush1.bf16.msra.mxu0 %v201
  %282 = vmatprep.subr.bf16.mxu0 0
  %283 = vmatpush1.bf16.msra.mxu0 0
  %284 = vmatprep.subr.bf16.mxu0 0
  %285 = vmatpush1.bf16.msra.mxu0 0
  %286 = vmatprep.subr.bf16.mxu0 0
  %287 = vmatpush1.bf16.msra.mxu0 0
  %288 = vmatprep.subr.bf16.mxu0 0
  %289 = vmatpush1.bf16.msra.mxu0 0
  %290 = vmatprep.subr.bf16.mxu0 0
  %291 = vmatpush1.bf16.msra.mxu0 0
  %292 = vmatprep.subr.bf16.mxu0 0
  %293 = vmatpush1.bf16.msra.mxu0 0
  %294 = vmatprep.subr.bf16.mxu0 0
  %295 = vmatpush1.bf16.msra.mxu0 0
  %296 = vmatprep.subr.bf16.mxu0 0
  %297 = vmatpush1.bf16.msra.mxu0 0
  %298 = vmatprep.mubr.bf16.mxu0 0
  %299 = vmatmul.mubr.bf16.gmra.mrb[0].mxu0 %v78
  %v300 = vpop.f32.mrb[0].mxu0
  %v301 = vadd.f32 %v261, %v300
  %v302 = vpop.f32.mrb[0].mxu0
  %v303 = vpop.f32.mrb[0].mxu0
  %v304 = vpop.f32.mrb[0].mxu0
  %305 = vdwg.mxu0
  %v306 = vld [vmem:[%s2] sm:$0x1]
  %v308 = vlaneseq
  %v309 = vshrl.u32 %v308, 7
  %v310 = vsub.s32 0, %v309
  %v311 = vrot.slane %v306, %v310
  %v313 = vmul.f32 %v301, %v311
  %v314 = vld [vmem:[%s3] sm:$0x1]
  %v316 = vlaneseq
  %v317 = vshrl.u32 %v316, 7
  %v318 = vsub.s32 0, %v317
  %v319 = vrot.slane %v314, %v318
  %v321 = vadd.f32 %v313, %v319
  %v322 = vld [vmem:[%s4] sm:$0xf]
  %v323 = vunpack.c.l.bf16 %v322
  %v324 = vadd.f32 %v321, %v323
  %v325 = vmax.f32 %v324, 0.0
  %v326 = vpack.c.bf16 %v325, %v325
  %327 = vst [vmem:[%s5] sm:$0xf] %v326
  // Predicated region
  $region22: #{net_forward.85} parent=0 // pred_check
    _
  $region23: #{net_forward.85} parent=0 // pred_check_branch
    %329 = sbr.rel (0) target = $region25
  $region24: #{net_forward.85} parent=0 // pred_region
    _
  $region25: #{net_forward.85} parent=0 // pred_fallthru
    _
  // Predicated region
  $region26: #{net_forward.85} parent=0 // pred_check
    _
  $region27: #{net_forward.85} parent=0 // pred_check_branch
    %331 = sbr.rel (0) target = $region29
  $region28: #{net_forward.85} parent=0 // pred_region
    _
  $region29: #{net_forward.85} parent=0 // pred_fallthru
    _

// kernel: net_forward.114
$region0: #{net_forward.114}
  #allocation0 [shape = 'u32[]', space=smem, size = 0x4, offset = 0x4, fixed_abs, tag = 'smem constant byte address 0x4 - core index']
  #allocation1 [shape = 'u32[144,128]{1,0:T(1,128)}', space=vmem, size = 0x12000, scoped, tag = 'internal scratch']
  %s0 = inlined_call_operand.vmem [shape: bf16[8,512], index: 0, kind: input, shape index: {}]
  %s1 = inlined_call_operand.vmem [shape: bf16[512,256], index: 1, kind: input, shape index: {}]
  %s2 = inlined_call_operand.vmem [shape: f32[1,256], index: 2, kind: input, shape index: {}]
  %s3 = inlined_call_operand.vmem [shape: f32[1,256], index: 3, kind: input, shape index: {}]
  %s4 = inlined_call_operand.vmem [shape: bf16[8,256], index: 4, kind: output, shape index: {}]
  %s5 = sld [smem:[#allocation0]]
  $region26: #{net_forward.114} parent=0
    _
  %s7 = ssub.s32 1, %s5
  %s8 = scalar_select 0, %s7, %s5
  // Predicated region
  $region2: #{net_forward.114} parent=0 // pred_check
    _
  $region3: #{net_forward.114} parent=0 // pred_check_branch
    %10 = sbr.rel (0) target = $region5
  $region4: #{net_forward.114} parent=0 // pred_region
    _
  $region5: #{net_forward.114} parent=0 // pred_fallthru
    _
  // Predicated region
  $region6: #{net_forward.114} parent=0 // pred_check
    _
  $region7: #{net_forward.114} parent=0 // pred_check_branch
    %12 = sbr.rel (0) target = $region9
  $region8: #{net_forward.114} parent=0 // pred_region
    _
  $region9: #{net_forward.114} parent=0 // pred_fallthru
    _
  // Predicated region
  $region10: #{net_forward.114} parent=0 // pred_check
    _
  $region11: #{net_forward.114} parent=0 // pred_check_branch
    %14 = sbr.rel (0) target = $region13
  $region12: #{net_forward.114} parent=0 // pred_region
    _
  $region13: #{net_forward.114} parent=0 // pred_fallthru
    _
  // Predicated region
  $region14: #{net_forward.114} parent=0 // pred_check
    _
  $region15: #{net_forward.114} parent=0 // pred_check_branch
    %16 = sbr.rel (0) target = $region17
  $region16: #{net_forward.114} parent=0 // pred_region
    _
  $region17: #{net_forward.114} parent=0 // pred_fallthru
    _
  %v17 = vld [vmem:[%s0] sm:$0xff]
  %v18 = vld [vmem:[%s0 + $0x8] sm:$0xff]
  %v19 = vld [vmem:[%s1] sm:$0xff]
  %v20 = vld [vmem:[%s1 + $0x8] sm:$0xff]
  %v21 = vld [vmem:[%s1 + $0x10] sm:$0xff]
  %v22 = vld [vmem:[%s1 + $0x18] sm:$0xff]
  %v23 = vld [vmem:[%s1 + $0x20] sm:$0xff]
  %v24 = vld [vmem:[%s1 + $0x28] sm:$0xff]
  %v25 = vld [vmem:[%s1 + $0x30] sm:$0xff]
  %v26 = vld [vmem:[%s1 + $0x38] sm:$0xff]
  %v27 = vld [vmem:[%s1 + $0x40] sm:$0xff]
  %v28 = vld [vmem:[%s1 + $0x48] sm:$0xff]
  %v29 = vld [vmem:[%s1 + $0x50] sm:$0xff]
  %v30 = vld [vmem:[%s1 + $0x58] sm:$0xff]
  %v31 = vld [vmem:[%s1 + $0x60] sm:$0xff]
  %v32 = vld [vmem:[%s1 + $0x68] sm:$0xff]
  %v33 = vld [vmem:[%s1 + $0x70] sm:$0xff]
  %v34 = vld [vmem:[%s1 + $0x78] sm:$0xff]
  %v35 = vld [vmem:[%s1 + $0x80] sm:$0xff]
  %v36 = vld [vmem:[%s1 + $0x88] sm:$0xff]
  %v37 = vld [vmem:[%s1 + $0x90] sm:$0xff]
  %v38 = vld [vmem:[%s1 + $0x98] sm:$0xff]
  %v39 = vld [vmem:[%s1 + $0xa0] sm:$0xff]
  %v40 = vld [vmem:[%s1 + $0xa8] sm:$0xff]
  %v41 = vld [vmem:[%s1 + $0xb0] sm:$0xff]
  %v42 = vld [vmem:[%s1 + $0xb8] sm:$0xff]
  %v43 = vld [vmem:[%s1 + $0xc0] sm:$0xff]
  %v44 = vld [vmem:[%s1 + $0xc8] sm:$0xff]
  %v45 = vld [vmem:[%s1 + $0xd0] sm:$0xff]
  %v46 = vld [vmem:[%s1 + $0xd8] sm:$0xff]
  %v47 = vld [vmem:[%s1 + $0xe0] sm:$0xff]
  %v48 = vld [vmem:[%s1 + $0xe8] sm:$0xff]
  %v49 = vld [vmem:[%s1 + $0xf0] sm:$0xff]
  %v50 = vld [vmem:[%s1 + $0xf8] sm:$0xff]
  %v51 = vld [vmem:[%s1 + $0x100] sm:$0xff]
  %v52 = vld [vmem:[%s1 + $0x108] sm:$0xff]
  %v53 = vld [vmem:[%s1 + $0x110] sm:$0xff]
  %v54 = vld [vmem:[%s1 + $0x118] sm:$0xff]
  %v55 = vld [vmem:[%s1 + $0x120] sm:$0xff]
  %v56 = vld [vmem:[%s1 + $0x128] sm:$0xff]
  %v57 = vld [vmem:[%s1 + $0x130] sm:$0xff]
  %v58 = vld [vmem:[%s1 + $0x138] sm:$0xff]
  %v59 = vld [vmem:[%s1 + $0x140] sm:$0xff]
  %v60 = vld [vmem:[%s1 + $0x148] sm:$0xff]
  %v61 = vld [vmem:[%s1 + $0x150] sm:$0xff]
  %v62 = vld [vmem:[%s1 + $0x158] sm:$0xff]
  %v63 = vld [vmem:[%s1 + $0x160] sm:$0xff]
  %v64 = vld [vmem:[%s1 + $0x168] sm:$0xff]
  %v65 = vld [vmem:[%s1 + $0x170] sm:$0xff]
  %v66 = vld [vmem:[%s1 + $0x178] sm:$0xff]
  %v67 = vld [vmem:[%s1 + $0x180] sm:$0xff]
  %v68 = vld [vmem:[%s1 + $0x188] sm:$0xff]
  %v69 = vld [vmem:[%s1 + $0x190] sm:$0xff]
  %v70 = vld [vmem:[%s1 + $0x198] sm:$0xff]
  %v71 = vld [vmem:[%s1 + $0x1a0] sm:$0xff]
  %v72 = vld [vmem:[%s1 + $0x1a8] sm:$0xff]
  %v73 = vld [vmem:[%s1 + $0x1b0] sm:$0xff]
  %v74 = vld [vmem:[%s1 + $0x1b8] sm:$0xff]
  %v75 = vld [vmem:[%s1 + $0x1c0] sm:$0xff]
  %v76 = vld [vmem:[%s1 + $0x1c8] sm:$0xff]
  %v77 = vld [vmem:[%s1 + $0x1d0] sm:$0xff]
  %v78 = vld [vmem:[%s1 + $0x1d8] sm:$0xff]
  %v79 = vld [vmem:[%s1 + $0x1e0] sm:$0xff]
  %v80 = vld [vmem:[%s1 + $0x1e8] sm:$0xff]
  %v81 = vld [vmem:[%s1 + $0x1f0] sm:$0xff]
  %v82 = vld [vmem:[%s1 + $0x1f8] sm:$0xff]
  %v85 = vunpack.c.l.b16 %v17
  %v86 = vunpack.c.h.b16 %v17
  %v87 = vunpack.c.l.b16 %v18
  %v88 = vunpack.c.h.b16 %v18
  %v89 = vpack.c.b16 %v85, %v85
  %v90 = vpack.c.b16 %v86, %v86
  %v91 = vpack.c.b16 %v87, %v87
  %v92 = vpack.c.b16 %v88, %v88
  %v161 = vunpack.c.l.b16 %v19
  %v162 = vunpack.c.h.b16 %v19
  %v163 = vunpack.c.l.b16 %v20
  %v164 = vunpack.c.h.b16 %v20
  %v165 = vunpack.c.l.b16 %v21
  %v166 = vunpack.c.h.b16 %v21
  %v167 = vunpack.c.l.b16 %v22
  %v168 = vunpack.c.h.b16 %v22
  %v169 = vunpack.c.l.b16 %v23
  %v170 = vunpack.c.h.b16 %v23
  %v171 = vunpack.c.l.b16 %v24
  %v172 = vunpack.c.h.b16 %v24
  %v173 = vunpack.c.l.b16 %v25
  %v174 = vunpack.c.h.b16 %v25
  %v175 = vunpack.c.l.b16 %v26
  %v176 = vunpack.c.h.b16 %v26
  %v177 = vunpack.c.l.b16 %v27
  %v178 = vunpack.c.h.b16 %v27
  %v179 = vunpack.c.l.b16 %v28
  %v180 = vunpack.c.h.b16 %v28
  %v181 = vunpack.c.l.b16 %v29
  %v182 = vunpack.c.h.b16 %v29
  %v183 = vunpack.c.l.b16 %v30
  %v184 = vunpack.c.h.b16 %v30
  %v185 = vunpack.c.l.b16 %v31
  %v186 = vunpack.c.h.b16 %v31
  %v187 = vunpack.c.l.b16 %v32
  %v188 = vunpack.c.h.b16 %v32
  %v189 = vunpack.c.l.b16 %v33
  %v190 = vunpack.c.h.b16 %v33
  %v191 = vunpack.c.l.b16 %v34
  %v192 = vunpack.c.h.b16 %v34
  %v193 = vunpack.c.l.b16 %v35
  %v194 = vunpack.c.h.b16 %v35
  %v195 = vunpack.c.l.b16 %v36
  %v196 = vunpack.c.h.b16 %v36
  %v197 = vunpack.c.l.b16 %v37
  %v198 = vunpack.c.h.b16 %v37
  %v199 = vunpack.c.l.b16 %v38
  %v200 = vunpack.c.h.b16 %v38
  %v201 = vunpack.c.l.b16 %v39
  %v202 = vunpack.c.h.b16 %v39
  %v203 = vunpack.c.l.b16 %v40
  %v204 = vunpack.c.h.b16 %v40
  %v205 = vunpack.c.l.b16 %v41
  %v206 = vunpack.c.h.b16 %v41
  %v207 = vunpack.c.l.b16 %v42
  %v208 = vunpack.c.h.b16 %v42
  %v209 = vunpack.c.l.b16 %v43
  %v210 = vunpack.c.h.b16 %v43
  %v211 = vunpack.c.l.b16 %v44
  %v212 = vunpack.c.h.b16 %v44
  %v213 = vunpack.c.l.b16 %v45
  %v214 = vunpack.c.h.b16 %v45
  %v215 = vunpack.c.l.b16 %v46
  %v216 = vunpack.c.h.b16 %v46
  %v217 = vunpack.c.l.b16 %v47
  %v218 = vunpack.c.h.b16 %v47
  %v219 = vunpack.c.l.b16 %v48
  %v220 = vunpack.c.h.b16 %v48
  %v221 = vunpack.c.l.b16 %v49
  %v222 = vunpack.c.h.b16 %v49
  %v223 = vunpack.c.l.b16 %v50
  %v224 = vunpack.c.h.b16 %v50
  %v225 = vunpack.c.l.b16 %v51
  %v226 = vunpack.c.h.b16 %v51
  %v227 = vunpack.c.l.b16 %v52
  %v228 = vunpack.c.h.b16 %v52
  %v229 = vunpack.c.l.b16 %v53
  %v230 = vunpack.c.h.b16 %v53
  %v231 = vunpack.c.l.b16 %v54
  %v232 = vunpack.c.h.b16 %v54
  %v233 = vunpack.c.l.b16 %v55
  %v234 = vunpack.c.h.b16 %v55
  %v235 = vunpack.c.l.b16 %v56
  %v236 = vunpack.c.h.b16 %v56
  %v237 = vunpack.c.l.b16 %v57
  %v238 = vunpack.c.h.b16 %v57
  %v239 = vunpack.c.l.b16 %v58
  %v240 = vunpack.c.h.b16 %v58
  %v241 = vunpack.c.l.b16 %v59
  %v242 = vunpack.c.h.b16 %v59
  %v243 = vunpack.c.l.b16 %v60
  %v244 = vunpack.c.h.b16 %v60
  %v245 = vunpack.c.l.b16 %v61
  %v246 = vunpack.c.h.b16 %v61
  %v247 = vunpack.c.l.b16 %v62
  %v248 = vunpack.c.h.b16 %v62
  %v249 = vunpack.c.l.b16 %v63
  %v250 = vunpack.c.h.b16 %v63
  %v251 = vunpack.c.l.b16 %v64
  %v252 = vunpack.c.h.b16 %v64
  %v253 = vunpack.c.l.b16 %v65
  %v254 = vunpack.c.h.b16 %v65
  %v255 = vunpack.c.l.b16 %v66
  %v256 = vunpack.c.h.b16 %v66
  %v257 = vunpack.c.l.b16 %v67
  %v258 = vunpack.c.h.b16 %v67
  %v259 = vunpack.c.l.b16 %v68
  %v260 = vunpack.c.h.b16 %v68
  %v261 = vunpack.c.l.b16 %v69
  %v262 = vunpack.c.h.b16 %v69
  %v263 = vunpack.c.l.b16 %v70
  %v264 = vunpack.c.h.b16 %v70
  %v265 = vunpack.c.l.b16 %v71
  %v266 = vunpack.c.h.b16 %v71
  %v267 = vunpack.c.l.b16 %v72
  %v268 = vunpack.c.h.b16 %v72
  %v269 = vunpack.c.l.b16 %v73
  %v270 = vunpack.c.h.b16 %v73
  %v271 = vunpack.c.l.b16 %v74
  %v272 = vunpack.c.h.b16 %v74
  %v273 = vunpack.c.l.b16 %v75
  %v274 = vunpack.c.h.b16 %v75
  %v275 = vunpack.c.l.b16 %v76
  %v276 = vunpack.c.h.b16 %v76
  %v277 = vunpack.c.l.b16 %v77
  %v278 = vunpack.c.h.b16 %v77
  %v279 = vunpack.c.l.b16 %v78
  %v280 = vunpack.c.h.b16 %v78
  %v281 = vunpack.c.l.b16 %v79
  %v282 = vunpack.c.h.b16 %v79
  %v283 = vunpack.c.l.b16 %v80
  %v284 = vunpack.c.h.b16 %v80
  %v285 = vunpack.c.l.b16 %v81
  %v286 = vunpack.c.h.b16 %v81
  %v287 = vunpack.c.l.b16 %v82
  %v288 = vunpack.c.h.b16 %v82
  %v289 = vpack.c.b16 %v163, %v161
  %v290 = vpack.c.b16 %v164, %v162
  %v291 = vpack.c.b16 %v167, %v165
  %v292 = vpack.c.b16 %v168, %v166
  %v293 = vpack.c.b16 %v171, %v169
  %v294 = vpack.c.b16 %v172, %v170
  %v295 = vpack.c.b16 %v175, %v173
  %v296 = vpack.c.b16 %v176, %v174
  %v297 = vpack.c.b16 %v179, %v177
  %v298 = vpack.c.b16 %v180, %v178
  %v299 = vpack.c.b16 %v183, %v181
  %v300 = vpack.c.b16 %v184, %v182
  %v301 = vpack.c.b16 %v187, %v185
  %v302 = vpack.c.b16 %v188, %v186
  %v303 = vpack.c.b16 %v191, %v189
  %v304 = vpack.c.b16 %v192, %v190
  %v305 = vpack.c.b16 %v195, %v193
  %v306 = vpack.c.b16 %v196, %v194
  %v307 = vpack.c.b16 %v199, %v197
  %v308 = vpack.c.b16 %v200, %v198
  %v309 = vpack.c.b16 %v203, %v201
  %v310 = vpack.c.b16 %v204, %v202
  %v311 = vpack.c.b16 %v207, %v205
  %v312 = vpack.c.b16 %v208, %v206
  %v313 = vpack.c.b16 %v211, %v209
  %v314 = vpack.c.b16 %v212, %v210
  %v315 = vpack.c.b16 %v215, %v213
  %v316 = vpack.c.b16 %v216, %v214
  %v317 = vpack.c.b16 %v219, %v217
  %v318 = vpack.c.b16 %v220, %v218
  %v319 = vpack.c.b16 %v223, %v221
  %v320 = vpack.c.b16 %v224, %v222
  %v321 = vpack.c.b16 %v227, %v225
  %v322 = vpack.c.b16 %v228, %v226
  %v323 = vpack.c.b16 %v231, %v229
  %v324 = vpack.c.b16 %v232, %v230
  %v325 = vpack.c.b16 %v235, %v233
  %v326 = vpack.c.b16 %v236, %v234
  %v327 = vpack.c.b16 %v239, %v237
  %v328 = vpack.c.b16 %v240, %v238
  %v329 = vpack.c.b16 %v243, %v241
  %v330 = vpack.c.b16 %v244, %v242
  %v331 = vpack.c.b16 %v247, %v245
  %v332 = vpack.c.b16 %v248, %v246
  %v333 = vpack.c.b16 %v251, %v249
  %v334 = vpack.c.b16 %v252, %v250
  %v335 = vpack.c.b16 %v255, %v253
  %v336 = vpack.c.b16 %v256, %v254
  %v337 = vpack.c.b16 %v259, %v257
  %v338 = vpack.c.b16 %v260, %v258
  %v339 = vpack.c.b16 %v263, %v261
  %v340 = vpack.c.b16 %v264, %v262
  %v341 = vpack.c.b16 %v267, %v265
  %v342 = vpack.c.b16 %v268, %v266
  %v343 = vpack.c.b16 %v271, %v269
  %v344 = vpack.c.b16 %v272, %v270
  %v345 = vpack.c.b16 %v275, %v273
  %v346 = vpack.c.b16 %v276, %v274
  %v347 = vpack.c.b16 %v279, %v277
  %v348 = vpack.c.b16 %v280, %v278
  %v349 = vpack.c.b16 %v283, %v281
  %v350 = vpack.c.b16 %v284, %v282
  %v351 = vpack.c.b16 %v287, %v285
  %v352 = vpack.c.b16 %v288, %v286
  %417 = vmatprep.subr.bf16.mxu0 %v290
  %418 = vmatpush1.bf16.msra.mxu0 %v289
  %419 = vmatprep.subr.bf16.mxu0 %v292
  %420 = vmatpush1.bf16.msra.mxu0 %v291
  %421 = vmatprep.subr.bf16.mxu0 %v294
  %422 = vmatpush1.bf16.msra.mxu0 %v293
  %423 = vmatprep.subr.bf16.mxu0 %v296
  %424 = vmatpush1.bf16.msra.mxu0 %v295
  %425 = vmatprep.subr.bf16.mxu0 %v298
  %426 = vmatpush1.bf16.msra.mxu0 %v297
  %427 = vmatprep.subr.bf16.mxu0 %v300
  %428 = vmatpush1.bf16.msra.mxu0 %v299
  %429 = vmatprep.subr.bf16.mxu0 %v302
  %430 = vmatpush1.bf16.msra.mxu0 %v301
  %431 = vmatprep.subr.bf16.mxu0 %v304
  %432 = vmatpush1.bf16.msra.mxu0 %v303
  %433 = vmatprep.subr.bf16.mxu0 %v306
  %434 = vmatpush1.bf16.msra.mxu0 %v305
  %435 = vmatprep.subr.bf16.mxu0 %v308
  %436 = vmatpush1.bf16.msra.mxu0 %v307
  %437 = vmatprep.subr.bf16.mxu0 %v310
  %438 = vmatpush1.bf16.msra.mxu0 %v309
  %439 = vmatprep.subr.bf16.mxu0 %v312
  %440 = vmatpush1.bf16.msra.mxu0 %v311
  %441 = vmatprep.subr.bf16.mxu0 %v314
  %442 = vmatpush1.bf16.msra.mxu0 %v313
  %443 = vmatprep.subr.bf16.mxu0 %v316
  %444 = vmatpush1.bf16.msra.mxu0 %v315
  %445 = vmatprep.subr.bf16.mxu0 %v318
  %446 = vmatpush1.bf16.msra.mxu0 %v317
  %447 = vmatprep.subr.bf16.mxu0 %v320
  %448 = vmatpush1.bf16.msra.mxu0 %v319
  %449 = vmatprep.mubr.bf16.mxu0 %v90
  %450 = vmatmul.mubr.bf16.gmra.mrb[0].mxu0 %v89
  %v451 = vpop.f32.mrb[0].mxu0
  %v452 = vadd.f32 0.0, %v451
  %v453 = vpop.f32.mrb[0].mxu0
  %v454 = vadd.f32 0.0, %v453
  %v455 = vpop.f32.mrb[0].mxu0
  %v456 = vpop.f32.mrb[0].mxu0
  %457 = vdwg.mxu0
  %458 = vmatprep.subr.bf16.mxu0 %v322
  %459 = vmatpush1.bf16.msra.mxu0 %v321
  %460 = vmatprep.subr.bf16.mxu0 %v324
  %461 = vmatpush1.bf16.msra.mxu0 %v323
  %462 = vmatprep.subr.bf16.mxu0 %v326
  %463 = vmatpush1.bf16.msra.mxu0 %v325
  %464 = vmatprep.subr.bf16.mxu0 %v328
  %465 = vmatpush1.bf16.msra.mxu0 %v327
  %466 = vmatprep.subr.bf16.mxu0 %v330
  %467 = vmatpush1.bf16.msra.mxu0 %v329
  %468 = vmatprep.subr.bf16.mxu0 %v332
  %469 = vmatpush1.bf16.msra.mxu0 %v331
  %470 = vmatprep.subr.bf16.mxu0 %v334
  %471 = vmatpush1.bf16.msra.mxu0 %v333
  %472 = vmatprep.subr.bf16.mxu0 %v336
  %473 = vmatpush1.bf16.msra.mxu0 %v335
  %474 = vmatprep.subr.bf16.mxu0 %v338
  %475 = vmatpush1.bf16.msra.mxu0 %v337
  %476 = vmatprep.subr.bf16.mxu0 %v340
  %477 = vmatpush1.bf16.msra.mxu0 %v339
  %478 = vmatprep.subr.bf16.mxu0 %v342
  %479 = vmatpush1.bf16.msra.mxu0 %v341
  %480 = vmatprep.subr.bf16.mxu0 %v344
  %481 = vmatpush1.bf16.msra.mxu0 %v343
  %482 = vmatprep.subr.bf16.mxu0 %v346
  %483 = vmatpush1.bf16.msra.mxu0 %v345
  %484 = vmatprep.subr.bf16.mxu0 %v348
  %485 = vmatpush1.bf16.msra.mxu0 %v347
  %486 = vmatprep.subr.bf16.mxu0 %v350
  %487 = vmatpush1.bf16.msra.mxu0 %v349
  %488 = vmatprep.subr.bf16.mxu0 %v352
  %489 = vmatpush1.bf16.msra.mxu0 %v351
  %490 = vmatprep.mubr.bf16.mxu0 %v92
  %491 = vmatmul.mubr.bf16.gmra.mrb[0].mxu0 %v91
  %v492 = vpop.f32.mrb[0].mxu0
  %v493 = vadd.f32 %v452, %v492
  %v494 = vpop.f32.mrb[0].mxu0
  %v495 = vadd.f32 %v454, %v494
  %v496 = vpop.f32.mrb[0].mxu0
  %v497 = vpop.f32.mrb[0].mxu0
  %498 = vdwg.mxu0
  %v499 = vld [vmem:[%s2] sm:$0x3]
  %v501 = vlaneseq
  %v502 = vshrl.u32 %v501, 7
  %v503 = vsub.s32 0, %v502
  %v504 = vrot.slane %v499, %v503
  %v505 = vlaneseq
  %v506 = vshrl.u32 %v505, 7
  %v507 = vsub.s32 1, %v506
  %v508 = vrot.slane %v499, %v507
  %v511 = vmul.f32 %v493, %v504
  %v512 = vmul.f32 %v495, %v508
  %v513 = vld [vmem:[%s3] sm:$0x3]
  %v515 = vlaneseq
  %v516 = vshrl.u32 %v515, 7
  %v517 = vsub.s32 0, %v516
  %v518 = vrot.slane %v513, %v517
  %v519 = vlaneseq
  %v520 = vshrl.u32 %v519, 7
  %v521 = vsub.s32 1, %v520
  %v522 = vrot.slane %v513, %v521
  %v525 = vadd.f32 %v511, %v518
  %v526 = vadd.f32 %v512, %v522
  %v527 = vmax.f32 %v525, 0.0
  %v528 = vmax.f32 %v526, 0.0
  %v529 = vpack.c.bf16 %v527, %v527
  %v530 = vpack.c.bf16 %v528, %v528
  %v533 = vunpack.c.l.b16 %v529
  %v534 = vunpack.c.l.b16 %v530
  %v535 = vpack.c.b16 %v534, %v533
  %537 = vst [vmem:[%s4] sm:$0xff] %v535
  // Predicated region
  $region18: #{net_forward.114} parent=0 // pred_check
    _
  $region19: #{net_forward.114} parent=0 // pred_check_branch
    %539 = sbr.rel (0) target = $region21
  $region20: #{net_forward.114} parent=0 // pred_region
    _
  $region21: #{net_forward.114} parent=0 // pred_fallthru
    _
  // Predicated region
  $region22: #{net_forward.114} parent=0 // pred_check
    _
  $region23: #{net_forward.114} parent=0 // pred_check_branch
    %541 = sbr.rel (0) target = $region25
  $region24: #{net_forward.114} parent=0 // pred_region
    _
  $region25: #{net_forward.114} parent=0 // pred_fallthru
    _

// kernel: net_forward.116
$region0: #{net_forward.116}
  #allocation0 [shape = 'u32[]', space=smem, size = 0x4, offset = 0x4, fixed_abs, tag = 'smem constant byte address 0x4 - core index']
  #allocation1 [shape = 'u32[144,128]{1,0:T(1,128)}', space=vmem, size = 0x12000, scoped, tag = 'internal scratch']
  %s0 = inlined_call_operand.vmem [shape: bf16[32,256], index: 0, kind: input, shape index: {}]
  %s1 = inlined_call_operand.vmem [shape: bf16[256,64], index: 1, kind: input, shape index: {}]
  %s2 = inlined_call_operand.vmem [shape: f32[1,64], index: 2, kind: input, shape index: {}]
  %s3 = inlined_call_operand.vmem [shape: f32[1,64], index: 3, kind: input, shape index: {}]
  %s4 = inlined_call_operand.vmem [shape: bf16[32,64], index: 4, kind: output, shape index: {}]
  %s5 = sld [smem:[#allocation0]]
  $region26: #{net_forward.116} parent=0
    _
  %s7 = ssub.s32 1, %s5
  %s8 = scalar_select 0, %s7, %s5
  // Predicated region
  $region2: #{net_forward.116} parent=0 // pred_check
    _
  $region3: #{net_forward.116} parent=0 // pred_check_branch
    %10 = sbr.rel (0) target = $region5
  $region4: #{net_forward.116} parent=0 // pred_region
    _
  $region5: #{net_forward.116} parent=0 // pred_fallthru
    _
  // Predicated region
  $region6: #{net_forward.116} parent=0 // pred_check
    _
  $region7: #{net_forward.116} parent=0 // pred_check_branch
    %12 = sbr.rel (0) target = $region9
  $region8: #{net_forward.116} parent=0 // pred_region
    _
  $region9: #{net_forward.116} parent=0 // pred_fallthru
    _
  // Predicated region
  $region10: #{net_forward.116} parent=0 // pred_check
    _
  $region11: #{net_forward.116} parent=0 // pred_check_branch
    %14 = sbr.rel (0) target = $region13
  $region12: #{net_forward.116} parent=0 // pred_region
    _
  $region13: #{net_forward.116} parent=0 // pred_fallthru
    _
  // Predicated region
  $region14: #{net_forward.116} parent=0 // pred_check
    _
  $region15: #{net_forward.116} parent=0 // pred_check_branch
    %16 = sbr.rel (0) target = $region17
  $region16: #{net_forward.116} parent=0 // pred_region
    _
  $region17: #{net_forward.116} parent=0 // pred_fallthru
    _
  %v18 = vld [vmem:[%s0] sm:$0xff]
  %v19 = vld [vmem:[%s0 + $0x8] sm:$0xff]
  %v20 = vld [vmem:[%s0 + $0x10] sm:$0xff]
  %v21 = vld [vmem:[%s0 + $0x18] sm:$0xff]
  %v22 = vld [vmem:[%s1] sm:$0xf]
  %v23 = vld [vmem:[%s1 + $0x4] sm:$0xf]
  %v24 = vld [vmem:[%s1 + $0x8] sm:$0xf]
  %v25 = vld [vmem:[%s1 + $0xc] sm:$0xf]
  %v26 = vld [vmem:[%s1 + $0x10] sm:$0xf]
  %v27 = vld [vmem:[%s1 + $0x14] sm:$0xf]
  %v28 = vld [vmem:[%s1 + $0x18] sm:$0xf]
  %v29 = vld [vmem:[%s1 + $0x1c] sm:$0xf]
  %v30 = vld [vmem:[%s1 + $0x20] sm:$0xf]
  %v31 = vld [vmem:[%s1 + $0x24] sm:$0xf]
  %v32 = vld [vmem:[%s1 + $0x28] sm:$0xf]
  %v33 = vld [vmem:[%s1 + $0x2c] sm:$0xf]
  %v34 = vld [vmem:[%s1 + $0x30] sm:$0xf]
  %v35 = vld [vmem:[%s1 + $0x34] sm:$0xf]
  %v36 = vld [vmem:[%s1 + $0x38] sm:$0xf]
  %v37 = vld [vmem:[%s1 + $0x3c] sm:$0xf]
  %v38 = vld [vmem:[%s1 + $0x40] sm:$0xf]
  %v39 = vld [vmem:[%s1 + $0x44] sm:$0xf]
  %v40 = vld [vmem:[%s1 + $0x48] sm:$0xf]
  %v41 = vld [vmem:[%s1 + $0x4c] sm:$0xf]
  %v42 = vld [vmem:[%s1 + $0x50] sm:$0xf]
  %v43 = vld [vmem:[%s1 + $0x54] sm:$0xf]
  %v44 = vld [vmem:[%s1 + $0x58] sm:$0xf]
  %v45 = vld [vmem:[%s1 + $0x5c] sm:$0xf]
  %v46 = vld [vmem:[%s1 + $0x60] sm:$0xf]
  %v47 = vld [vmem:[%s1 + $0x64] sm:$0xf]
  %v48 = vld [vmem:[%s1 + $0x68] sm:$0xf]
  %v49 = vld [vmem:[%s1 + $0x6c] sm:$0xf]
  %v50 = vld [vmem:[%s1 + $0x70] sm:$0xf]
  %v51 = vld [vmem:[%s1 + $0x74] sm:$0xf]
  %v52 = vld [vmem:[%s1 + $0x78] sm:$0xf]
  %v53 = vld [vmem:[%s1 + $0x7c] sm:$0xf]
  %v58 = vunpack.c.l.b16 %v18
  %v59 = vunpack.c.h.b16 %v18
  %v60 = vunpack.c.l.b16 %v19
  %v61 = vunpack.c.h.b16 %v19
  %v62 = vunpack.c.l.b16 %v20
  %v63 = vunpack.c.h.b16 %v20
  %v64 = vunpack.c.l.b16 %v21
  %v65 = vunpack.c.h.b16 %v21
  %v66 = vpack.c.b16 %v60, %v58
  %v67 = vpack.c.b16 %v61, %v59
  %v68 = vpack.c.b16 %v64, %v62
  %v69 = vpack.c.b16 %v65, %v63
  %v106 = vunpack.c.l.b16 %v22
  %v107 = vunpack.c.l.b16 %v23
  %v108 = vunpack.c.l.b16 %v24
  %v109 = vunpack.c.l.b16 %v25
  %v110 = vunpack.c.l.b16 %v26
  %v111 = vunpack.c.l.b16 %v27
  %v112 = vunpack.c.l.b16 %v28
  %v113 = vunpack.c.l.b16 %v29
  %v114 = vunpack.c.l.b16 %v30
  %v115 = vunpack.c.l.b16 %v31
  %v116 = vunpack.c.l.b16 %v32
  %v117 = vunpack.c.l.b16 %v33
  %v118 = vunpack.c.l.b16 %v34
  %v119 = vunpack.c.l.b16 %v35
  %v120 = vunpack.c.l.b16 %v36
  %v121 = vunpack.c.l.b16 %v37
  %v122 = vunpack.c.l.b16 %v38
  %v123 = vunpack.c.l.b16 %v39
  %v124 = vunpack.c.l.b16 %v40
  %v125 = vunpack.c.l.b16 %v41
  %v126 = vunpack.c.l.b16 %v42
  %v127 = vunpack.c.l.b16 %v43
  %v128 = vunpack.c.l.b16 %v44
  %v129 = vunpack.c.l.b16 %v45
  %v130 = vunpack.c.l.b16 %v46
  %v131 = vunpack.c.l.b16 %v47
  %v132 = vunpack.c.l.b16 %v48
  %v133 = vunpack.c.l.b16 %v49
  %v134 = vunpack.c.l.b16 %v50
  %v135 = vunpack.c.l.b16 %v51
  %v136 = vunpack.c.l.b16 %v52
  %v137 = vunpack.c.l.b16 %v53
  %v138 = vpack.c.b16 %v107, %v106
  %v139 = vpack.c.b16 %v109, %v108
  %v140 = vpack.c.b16 %v111, %v110
  %v141 = vpack.c.b16 %v113, %v112
  %v142 = vpack.c.b16 %v115, %v114
  %v143 = vpack.c.b16 %v117, %v116
  %v144 = vpack.c.b16 %v119, %v118
  %v145 = vpack.c.b16 %v121, %v120
  %v146 = vpack.c.b16 %v123, %v122
  %v147 = vpack.c.b16 %v125, %v124
  %v148 = vpack.c.b16 %v127, %v126
  %v149 = vpack.c.b16 %v129, %v128
  %v150 = vpack.c.b16 %v131, %v130
  %v151 = vpack.c.b16 %v133, %v132
  %v152 = vpack.c.b16 %v135, %v134
  %v153 = vpack.c.b16 %v137, %v136
  %170 = vmatprep.subr.bf16.mxu0 0
  %171 = vmatpush1.bf16.msra.mxu0 %v138
  %172 = vmatprep.subr.bf16.mxu0 0
  %173 = vmatpush1.bf16.msra.mxu0 %v139
  %174 = vmatprep.subr.bf16.mxu0 0
  %175 = vmatpush1.bf16.msra.mxu0 %v140
  %176 = vmatprep.subr.bf16.mxu0 0
  %177 = vmatpush1.bf16.msra.mxu0 %v141
  %178 = vmatprep.subr.bf16.mxu0 0
  %179 = vmatpush1.bf16.msra.mxu0 %v142
  %180 = vmatprep.subr.bf16.mxu0 0
  %181 = vmatpush1.bf16.msra.mxu0 %v143
  %182 = vmatprep.subr.bf16.mxu0 0
  %183 = vmatpush1.bf16.msra.mxu0 %v144
  %184 = vmatprep.subr.bf16.mxu0 0
  %185 = vmatpush1.bf16.msra.mxu0 %v145
  %186 = vmatprep.subr.bf16.mxu0 0
  %187 = vmatpush1.bf16.msra.mxu0 %v146
  %188 = vmatprep.subr.bf16.mxu0 0
  %189 = vmatpush1.bf16.msra.mxu0 %v147
  %190 = vmatprep.subr.bf16.mxu0 0
  %191 = vmatpush1.bf16.msra.mxu0 %v148
  %192 = vmatprep.subr.bf16.mxu0 0
  %193 = vmatpush1.bf16.msra.mxu0 %v149
  %194 = vmatprep.subr.bf16.mxu0 0
  %195 = vmatpush1.bf16.msra.mxu0 %v150
  %196 = vmatprep.subr.bf16.mxu0 0
  %197 = vmatpush1.bf16.msra.mxu0 %v151
  %198 = vmatprep.subr.bf16.mxu0 0
  %199 = vmatpush1.bf16.msra.mxu0 %v152
  %200 = vmatprep.subr.bf16.mxu0 0
  %201 = vmatpush1.bf16.msra.mxu0 %v153
  %202 = vmatprep.mubr.bf16.mxu0 %v67
  %203 = vmatmul.mubr.bf16.gmra.mrb[0].mxu0 %v66
  %v204 = vpop.f32.mrb[0].mxu0
  %v205 = vadd.f32 0.0, %v204
  %v206 = vpop.f32.mrb[0].mxu0
  %v207 = vpop.f32.mrb[0].mxu0
  %v208 = vadd.f32 0.0, %v207
  %v209 = vpop.f32.mrb[0].mxu0
  %210 = vmatprep.mubr.bf16.mxu0 %v69
  %211 = vmatmul.mubr.bf16.gmra.mrb[0].mxu0 %v68
  %v212 = vpop.f32.mrb[0].mxu0
  %v213 = vadd.f32 0.0, %v212
  %v214 = vpop.f32.mrb[0].mxu0
  %v215 = vpop.f32.mrb[0].mxu0
  %v216 = vadd.f32 0.0, %v215
  %v217 = vpop.f32.mrb[0].mxu0
  %218 = vdwg.mxu0
  %v219 = vld [vmem:[%s2] sm:$0x1]
  %v221 = vlaneseq
  %v222 = vshrl.u32 %v221, 7
  %v223 = vsub.s32 0, %v222
  %v224 = vrot.slane %v219, %v223
  %v226 = vmul.f32 %v205, %v224
  %v227 = vmul.f32 %v208, %v224
  %v228 = vmul.f32 %v213, %v224
  %v229 = vmul.f32 %v216, %v224
  %v230 = vld [vmem:[%s3] sm:$0x1]
  %v232 = vlaneseq
  %v233 = vshrl.u32 %v232, 7
  %v234 = vsub.s32 0, %v233
  %v235 = vrot.slane %v230, %v234
  %v237 = vadd.f32 %v226, %v235
  %v238 = vadd.f32 %v227, %v235
  %v239 = vadd.f32 %v228, %v235
  %v240 = vadd.f32 %v229, %v235
  %v241 = vmax.f32 %v237, 0.0
  %v242 = vmax.f32 %v238, 0.0
  %v243 = vmax.f32 %v239, 0.0
  %v244 = vmax.f32 %v240, 0.0
  %v245 = vpack.c.bf16 %v242, %v241
  %v246 = vpack.c.bf16 %v244, %v243
  %v249 = vunpack.c.l.b16 %v245
  %v250 = vunpack.c.h.b16 %v245
  %v251 = vunpack.c.l.b16 %v246
  %v252 = vunpack.c.h.b16 %v246
  %v253 = vpack.c.b16 %v249, %v249
  %v254 = vpack.c.b16 %v250, %v250
  %v255 = vpack.c.b16 %v251, %v251
  %v256 = vpack.c.b16 %v252, %v252
  %vm261 = vcmask 519168
  %262 = vst.msk [vmem:[%s4] sm:$0xf] %vm261, %v253
  %263 = vst.msk [vmem:[%s4 + $0x4] sm:$0xf] %vm261, %v254
  %264 = vst.msk [vmem:[%s4 + $0x8] sm:$0xf] %vm261, %v255
  %265 = vst.msk [vmem:[%s4 + $0xc] sm:$0xf] %vm261, %v256
  // Predicated region
  $region18: #{net_forward.116} parent=0 // pred_check
    _
  $region19: #{net_forward.116} parent=0 // pred_check_branch
    %267 = sbr.rel (0) target = $region21
  $region20: #{net_forward.116} parent=0 // pred_region
    _
  $region21: #{net_forward.116} parent=0 // pred_fallthru
    _
  // Predicated region
  $region22: #{net_forward.116} parent=0 // pred_check
    _
  $region23: #{net_forward.116} parent=0 // pred_check_branch
    %269 = sbr.rel (0) target = $region25
  $region24: #{net_forward.116} parent=0 // pred_region
    _
  $region25: #{net_forward.116} parent=0 // pred_fallthru
    _

// kernel: net_forward.115
$region0: #{net_forward.115}
  #allocation0 [shape = 'u32[]', space=smem, size = 0x4, offset = 0x4, fixed_abs, tag = 'smem constant byte address 0x4 - core index']
  #allocation1 [shape = 'u32[144,128]{1,0:T(1,128)}', space=vmem, size = 0x12000, scoped, tag = 'internal scratch']
  %s0 = inlined_call_operand.vmem [shape: bf16[32,576], index: 0, kind: input, shape index: {}]
  %s1 = inlined_call_operand.vmem [shape: bf16[576,64], index: 1, kind: input, shape index: {}]
  %s2 = inlined_call_operand.vmem [shape: f32[1,64], index: 2, kind: input, shape index: {}]
  %s3 = inlined_call_operand.vmem [shape: f32[1,64], index: 3, kind: input, shape index: {}]
  %s4 = inlined_call_operand.vmem [shape: bf16[32,64], index: 4, kind: output, shape index: {}]
  %s5 = sld [smem:[#allocation0]]
  $region26: #{net_forward.115} parent=0
    _
  %s7 = ssub.s32 1, %s5
  %s8 = scalar_select 0, %s7, %s5
  // Predicated region
  $region2: #{net_forward.115} parent=0 // pred_check
    _
  $region3: #{net_forward.115} parent=0 // pred_check_branch
    %10 = sbr.rel (0) target = $region5
  $region4: #{net_forward.115} parent=0 // pred_region
    _
  $region5: #{net_forward.115} parent=0 // pred_fallthru
    _
  // Predicated region
  $region6: #{net_forward.115} parent=0 // pred_check
    _
  $region7: #{net_forward.115} parent=0 // pred_check_branch
    %12 = sbr.rel (0) target = $region9
  $region8: #{net_forward.115} parent=0 // pred_region
    _
  $region9: #{net_forward.115} parent=0 // pred_fallthru
    _
  // Predicated region
  $region10: #{net_forward.115} parent=0 // pred_check
    _
  $region11: #{net_forward.115} parent=0 // pred_check_branch
    %14 = sbr.rel (0) target = $region13
  $region12: #{net_forward.115} parent=0 // pred_region
    _
  $region13: #{net_forward.115} parent=0 // pred_fallthru
    _
  // Predicated region
  $region14: #{net_forward.115} parent=0 // pred_check
    _
  $region15: #{net_forward.115} parent=0 // pred_check_branch
    %16 = sbr.rel (0) target = $region17
  $region16: #{net_forward.115} parent=0 // pred_region
    _
  $region17: #{net_forward.115} parent=0 // pred_fallthru
    _
  %v18 = vld [vmem:[%s0] sm:$0xff]
  %v19 = vld [vmem:[%s0 + $0x8] sm:$0xff]
  %v20 = vld [vmem:[%s0 + $0x10] sm:$0xf]
  %v21 = vld [vmem:[%s0 + $0x14] sm:$0xff]
  %v22 = vld [vmem:[%s0 + $0x1c] sm:$0xff]
  %v23 = vld [vmem:[%s0 + $0x24] sm:$0xf]
  %v24 = vld [vmem:[%s0 + $0x28] sm:$0xff]
  %v25 = vld [vmem:[%s0 + $0x30] sm:$0xff]
  %v26 = vld [vmem:[%s0 + $0x38] sm:$0xf]
  %v27 = vld [vmem:[%s0 + $0x3c] sm:$0xff]
  %v28 = vld [vmem:[%s0 + $0x44] sm:$0xff]
  %v29 = vld [vmem:[%s0 + $0x4c] sm:$0xf]
  %v30 = vld [vmem:[%s1] sm:$0xf]
  %v31 = vld [vmem:[%s1 + $0x4] sm:$0xf]
  %v32 = vld [vmem:[%s1 + $0x8] sm:$0xf]
  %v33 = vld [vmem:[%s1 + $0xc] sm:$0xf]
  %v34 = vld [vmem:[%s1 + $0x10] sm:$0xf]
  %v35 = vld [vmem:[%s1 + $0x14] sm:$0xf]
  %v36 = vld [vmem:[%s1 + $0x18] sm:$0xf]
  %v37 = vld [vmem:[%s1 + $0x1c] sm:$0xf]
  %v38 = vld [vmem:[%s1 + $0x20] sm:$0xf]
  %v39 = vld [vmem:[%s1 + $0x24] sm:$0xf]
  %v40 = vld [vmem:[%s1 + $0x28] sm:$0xf]
  %v41 = vld [vmem:[%s1 + $0x2c] sm:$0xf]
  %v42 = vld [vmem:[%s1 + $0x30] sm:$0xf]
  %v43 = vld [vmem:[%s1 + $0x34] sm:$0xf]
  %v44 = vld [vmem:[%s1 + $0x38] sm:$0xf]
  %v45 = vld [vmem:[%s1 + $0x3c] sm:$0xf]
  %v46 = vld [vmem:[%s1 + $0x40] sm:$0xf]
  %v47 = vld [vmem:[%s1 + $0x44] sm:$0xf]
  %v48 = vld [vmem:[%s1 + $0x48] sm:$0xf]
  %v49 = vld [vmem:[%s1 + $0x4c] sm:$0xf]
  %v50 = vld [vmem:[%s1 + $0x50] sm:$0xf]
  %v51 = vld [vmem:[%s1 + $0x54] sm:$0xf]
  %v52 = vld [vmem:[%s1 + $0x58] sm:$0xf]
  %v53 = vld [vmem:[%s1 + $0x5c] sm:$0xf]
  %v54 = vld [vmem:[%s1 + $0x60] sm:$0xf]
  %v55 = vld [vmem:[%s1 + $0x64] sm:$0xf]
  %v56 = vld [vmem:[%s1 + $0x68] sm:$0xf]
  %v57 = vld [vmem:[%s1 + $0x6c] sm:$0xf]
  %v58 = vld [vmem:[%s1 + $0x70] sm:$0xf]
  %v59 = vld [vmem:[%s1 + $0x74] sm:$0xf]
  %v60 = vld [vmem:[%s1 + $0x78] sm:$0xf]
  %v61 = vld [vmem:[%s1 + $0x7c] sm:$0xf]
  %v62 = vld [vmem:[%s1 + $0x80] sm:$0xf]
  %v63 = vld [vmem:[%s1 + $0x84] sm:$0xf]
  %v64 = vld [vmem:[%s1 + $0x88] sm:$0xf]
  %v65 = vld [vmem:[%s1 + $0x8c] sm:$0xf]
  %v66 = vld [vmem:[%s1 + $0x90] sm:$0xf]
  %v67 = vld [vmem:[%s1 + $0x94] sm:$0xf]
  %v68 = vld [vmem:[%s1 + $0x98] sm:$0xf]
  %v69 = vld [vmem:[%s1 + $0x9c] sm:$0xf]
  %v70 = vld [vmem:[%s1 + $0xa0] sm:$0xf]
  %v71 = vld [vmem:[%s1 + $0xa4] sm:$0xf]
  %v72 = vld [vmem:[%s1 + $0xa8] sm:$0xf]
  %v73 = vld [vmem:[%s1 + $0xac] sm:$0xf]
  %v74 = vld [vmem:[%s1 + $0xb0] sm:$0xf]
  %v75 = vld [vmem:[%s1 + $0xb4] sm:$0xf]
  %v76 = vld [vmem:[%s1 + $0xb8] sm:$0xf]
  %v77 = vld [vmem:[%s1 + $0xbc] sm:$0xf]
  %v78 = vld [vmem:[%s1 + $0xc0] sm:$0xf]
  %v79 = vld [vmem:[%s1 + $0xc4] sm:$0xf]
  %v80 = vld [vmem:[%s1 + $0xc8] sm:$0xf]
  %v81 = vld [vmem:[%s1 + $0xcc] sm:$0xf]
  %v82 = vld [vmem:[%s1 + $0xd0] sm:$0xf]
  %v83 = vld [vmem:[%s1 + $0xd4] sm:$0xf]
  %v84 = vld [vmem:[%s1 + $0xd8] sm:$0xf]
  %v85 = vld [vmem:[%s1 + $0xdc] sm:$0xf]
  %v86 = vld [vmem:[%s1 + $0xe0] sm:$0xf]
  %v87 = vld [vmem:[%s1 + $0xe4] sm:$0xf]
  %v88 = vld [vmem:[%s1 + $0xe8] sm:$0xf]
  %v89 = vld [vmem:[%s1 + $0xec] sm:$0xf]
  %v90 = vld [vmem:[%s1 + $0xf0] sm:$0xf]
  %v91 = vld [vmem:[%s1 + $0xf4] sm:$0xf]
  %v92 = vld [vmem:[%s1 + $0xf8] sm:$0xf]
  %v93 = vld [vmem:[%s1 + $0xfc] sm:$0xf]
  %v94 = vld [vmem:[%s1 + $0x100] sm:$0xf]
  %v95 = vld [vmem:[%s1 + $0x104] sm:$0xf]
  %v96 = vld [vmem:[%s1 + $0x108] sm:$0xf]
  %v97 = vld [vmem:[%s1 + $0x10c] sm:$0xf]
  %v98 = vld [vmem:[%s1 + $0x110] sm:$0xf]
  %v99 = vld [vmem:[%s1 + $0x114] sm:$0xf]
  %v100 = vld [vmem:[%s1 + $0x118] sm:$0xf]
  %v101 = vld [vmem:[%s1 + $0x11c] sm:$0xf]
  %v114 = vunpack.c.l.b16 %v18
  %v115 = vunpack.c.h.b16 %v18
  %v116 = vunpack.c.l.b16 %v19
  %v117 = vunpack.c.h.b16 %v19
  %v118 = vunpack.c.l.b16 %v20
  %v119 = vunpack.c.l.b16 %v21
  %v120 = vunpack.c.h.b16 %v21
  %v121 = vunpack.c.l.b16 %v22
  %v122 = vunpack.c.h.b16 %v22
  %v123 = vunpack.c.l.b16 %v23
  %v124 = vunpack.c.l.b16 %v24
  %v125 = vunpack.c.h.b16 %v24
  %v126 = vunpack.c.l.b16 %v25
  %v127 = vunpack.c.h.b16 %v25
  %v128 = vunpack.c.l.b16 %v26
  %v129 = vunpack.c.l.b16 %v27
  %v130 = vunpack.c.h.b16 %v27
  %v131 = vunpack.c.l.b16 %v28
  %v132 = vunpack.c.h.b16 %v28
  %v133 = vunpack.c.l.b16 %v29
  %v134 = vpack.c.b16 %v119, %v114
  %v135 = vpack.c.b16 %v120, %v115
  %v136 = vpack.c.b16 %v121, %v116
  %v137 = vpack.c.b16 %v122, %v117
  %v138 = vpack.c.b16 %v123, %v118
  %v139 = vpack.c.b16 %v129, %v124
  %v140 = vpack.c.b16 %v130, %v125
  %v141 = vpack.c.b16 %v131, %v126
  %v142 = vpack.c.b16 %v132, %v127
  %v143 = vpack.c.b16 %v133, %v128
  %v224 = vunpack.c.l.b16 %v30
  %v225 = vunpack.c.l.b16 %v31
  %v226 = vunpack.c.l.b16 %v32
  %v227 = vunpack.c.l.b16 %v33
  %v228 = vunpack.c.l.b16 %v34
  %v229 = vunpack.c.l.b16 %v35
  %v230 = vunpack.c.l.b16 %v36
  %v231 = vunpack.c.l.b16 %v37
  %v232 = vunpack.c.l.b16 %v38
  %v233 = vunpack.c.l.b16 %v39
  %v234 = vunpack.c.l.b16 %v40
  %v235 = vunpack.c.l.b16 %v41
  %v236 = vunpack.c.l.b16 %v42
  %v237 = vunpack.c.l.b16 %v43
  %v238 = vunpack.c.l.b16 %v44
  %v239 = vunpack.c.l.b16 %v45
  %v240 = vunpack.c.l.b16 %v46
  %v241 = vunpack.c.l.b16 %v47
  %v242 = vunpack.c.l.b16 %v48
  %v243 = vunpack.c.l.b16 %v49
  %v244 = vunpack.c.l.b16 %v50
  %v245 = vunpack.c.l.b16 %v51
  %v246 = vunpack.c.l.b16 %v52
  %v247 = vunpack.c.l.b16 %v53
  %v248 = vunpack.c.l.b16 %v54
  %v249 = vunpack.c.l.b16 %v55
  %v250 = vunpack.c.l.b16 %v56
  %v251 = vunpack.c.l.b16 %v57
  %v252 = vunpack.c.l.b16 %v58
  %v253 = vunpack.c.l.b16 %v59
  %v254 = vunpack.c.l.b16 %v60
  %v255 = vunpack.c.l.b16 %v61
  %v256 = vunpack.c.l.b16 %v62
  %v257 = vunpack.c.l.b16 %v63
  %v258 = vunpack.c.l.b16 %v64
  %v259 = vunpack.c.l.b16 %v65
  %v260 = vunpack.c.l.b16 %v66
  %v261 = vunpack.c.l.b16 %v67
  %v262 = vunpack.c.l.b16 %v68
  %v263 = vunpack.c.l.b16 %v69
  %v264 = vunpack.c.l.b16 %v70
  %v265 = vunpack.c.l.b16 %v71
  %v266 = vunpack.c.l.b16 %v72
  %v267 = vunpack.c.l.b16 %v73
  %v268 = vunpack.c.l.b16 %v74
  %v269 = vunpack.c.l.b16 %v75
  %v270 = vunpack.c.l.b16 %v76
  %v271 = vunpack.c.l.b16 %v77
  %v272 = vunpack.c.l.b16 %v78
  %v273 = vunpack.c.l.b16 %v79
  %v274 = vunpack.c.l.b16 %v80
  %v275 = vunpack.c.l.b16 %v81
  %v276 = vunpack.c.l.b16 %v82
  %v277 = vunpack.c.l.b16 %v83
  %v278 = vunpack.c.l.b16 %v84
  %v279 = vunpack.c.l.b16 %v85
  %v280 = vunpack.c.l.b16 %v86
  %v281 = vunpack.c.l.b16 %v87
  %v282 = vunpack.c.l.b16 %v88
  %v283 = vunpack.c.l.b16 %v89
  %v284 = vunpack.c.l.b16 %v90
  %v285 = vunpack.c.l.b16 %v91
  %v286 = vunpack.c.l.b16 %v92
  %v287 = vunpack.c.l.b16 %v93
  %v288 = vunpack.c.l.b16 %v94
  %v289 = vunpack.c.l.b16 %v95
  %v290 = vunpack.c.l.b16 %v96
  %v291 = vunpack.c.l.b16 %v97
  %v292 = vunpack.c.l.b16 %v98
  %v293 = vunpack.c.l.b16 %v99
  %v294 = vunpack.c.l.b16 %v100
  %v295 = vunpack.c.l.b16 %v101
  %v296 = vpack.c.b16 %v225, %v224
  %v297 = vpack.c.b16 %v227, %v226
  %v298 = vpack.c.b16 %v229, %v228
  %v299 = vpack.c.b16 %v231, %v230
  %v300 = vpack.c.b16 %v233, %v232
  %v301 = vpack.c.b16 %v235, %v234
  %v302 = vpack.c.b16 %v237, %v236
  %v303 = vpack.c.b16 %v239, %v238
  %v304 = vpack.c.b16 %v241, %v240
  %v305 = vpack.c.b16 %v243, %v242
  %v306 = vpack.c.b16 %v245, %v244
  %v307 = vpack.c.b16 %v247, %v246
  %v308 = vpack.c.b16 %v249, %v248
  %v309 = vpack.c.b16 %v251, %v250
  %v310 = vpack.c.b16 %v253, %v252
  %v311 = vpack.c.b16 %v255, %v254
  %v312 = vpack.c.b16 %v257, %v256
  %v313 = vpack.c.b16 %v259, %v258
  %v314 = vpack.c.b16 %v261, %v260
  %v315 = vpack.c.b16 %v263, %v262
  %v316 = vpack.c.b16 %v265, %v264
  %v317 = vpack.c.b16 %v267, %v266
  %v318 = vpack.c.b16 %v269, %v268
  %v319 = vpack.c.b16 %v271, %v270
  %v320 = vpack.c.b16 %v273, %v272
  %v321 = vpack.c.b16 %v275, %v274
  %v322 = vpack.c.b16 %v277, %v276
  %v323 = vpack.c.b16 %v279, %v278
  %v324 = vpack.c.b16 %v281, %v280
  %v325 = vpack.c.b16 %v283, %v282
  %v326 = vpack.c.b16 %v285, %v284
  %v327 = vpack.c.b16 %v287, %v286
  %v328 = vpack.c.b16 %v289, %v288
  %v329 = vpack.c.b16 %v291, %v290
  %v330 = vpack.c.b16 %v293, %v292
  %v331 = vpack.c.b16 %v295, %v294
  %vm368 = vcmask 523264
  %v370 = vsel %vm368, %v138, 0
  %v373 = vsel %vm368, %v143, 0
  %375 = vmatprep.subr.bf16.mxu0 0
  %376 = vmatpush1.bf16.msra.mxu0 %v296
  %377 = vmatprep.subr.bf16.mxu0 0
  %378 = vmatpush1.bf16.msra.mxu0 %v297
  %379 = vmatprep.subr.bf16.mxu0 0
  %380 = vmatpush1.bf16.msra.mxu0 %v298
  %381 = vmatprep.subr.bf16.mxu0 0
  %382 = vmatpush1.bf16.msra.mxu0 %v299
  %383 = vmatprep.subr.bf16.mxu0 0
  %384 = vmatpush1.bf16.msra.mxu0 %v300
  %385 = vmatprep.subr.bf16.mxu0 0
  %386 = vmatpush1.bf16.msra.mxu0 %v301
  %387 = vmatprep.subr.bf16.mxu0 0
  %388 = vmatpush1.bf16.msra.mxu0 %v302
  %389 = vmatprep.subr.bf16.mxu0 0
  %390 = vmatpush1.bf16.msra.mxu0 %v303
  %391 = vmatprep.subr.bf16.mxu0 0
  %392 = vmatpush1.bf16.msra.mxu0 %v304
  %393 = vmatprep.subr.bf16.mxu0 0
  %394 = vmatpush1.bf16.msra.mxu0 %v305
  %395 = vmatprep.subr.bf16.mxu0 0
  %396 = vmatpush1.bf16.msra.mxu0 %v306
  %397 = vmatprep.subr.bf16.mxu0 0
  %398 = vmatpush1.bf16.msra.mxu0 %v307
  %399 = vmatprep.subr.bf16.mxu0 0
  %400 = vmatpush1.bf16.msra.mxu0 %v308
  %401 = vmatprep.subr.bf16.mxu0 0
  %402 = vmatpush1.bf16.msra.mxu0 %v309
  %403 = vmatprep.subr.bf16.mxu0 0
  %404 = vmatpush1.bf16.msra.mxu0 %v310
  %405 = vmatprep.subr.bf16.mxu0 0
  %406 = vmatpush1.bf16.msra.mxu0 %v311
  %407 = vmatprep.mubr.bf16.mxu0 %v135
  %408 = vmatmul.mubr.bf16.gmra.mrb[0].mxu0 %v134
  %v409 = vpop.f32.mrb[0].mxu0
  %v410 = vadd.f32 0.0, %v409
  %v411 = vpop.f32.mrb[0].mxu0
  %v412 = vpop.f32.mrb[0].mxu0
  %v413 = vadd.f32 0.0, %v412
  %v414 = vpop.f32.mrb[0].mxu0
  %415 = vmatprep.mubr.bf16.mxu0 %v140
  %416 = vmatmul.mubr.bf16.gmra.mrb[0].mxu0 %v139
  %v417 = vpop.f32.mrb[0].mxu0
  %v418 = vadd.f32 0.0, %v417
  %v419 = vpop.f32.mrb[0].mxu0
  %v420 = vpop.f32.mrb[0].mxu0
  %v421 = vadd.f32 0.0, %v420
  %v422 = vpop.f32.mrb[0].mxu0
  %423 = vdwg.mxu0
  %424 = vmatprep.subr.bf16.mxu0 0
  %425 = vmatpush1.bf16.msra.mxu0 %v312
  %426 = vmatprep.subr.bf16.mxu0 0
  %427 = vmatpush1.bf16.msra.mxu0 %v313
  %428 = vmatprep.subr.bf16.mxu0 0
  %429 = vmatpush1.bf16.msra.mxu0 %v314
  %430 = vmatprep.subr.bf16.mxu0 0
  %431 = vmatpush1.bf16.msra.mxu0 %v315
  %432 = vmatprep.subr.bf16.mxu0 0
  %433 = vmatpush1.bf16.msra.mxu0 %v316
  %434 = vmatprep.subr.bf16.mxu0 0
  %435 = vmatpush1.bf16.msra.mxu0 %v317
  %436 = vmatprep.subr.bf16.mxu0 0
  %437 = vmatpush1.bf16.msra.mxu0 %v318
  %438 = vmatprep.subr.bf16.mxu0 0
  %439 = vmatpush1.bf16.msra.mxu0 %v319
  %440 = vmatprep.subr.bf16.mxu0 0
  %441 = vmatpush1.bf16.msra.mxu0 %v320
  %442 = vmatprep.subr.bf16.mxu0 0
  %443 = vmatpush1.bf16.msra.mxu0 %v321
  %444 = vmatprep.subr.bf16.mxu0 0
  %445 = vmatpush1.bf16.msra.mxu0 %v322
  %446 = vmatprep.subr.bf16.mxu0 0
  %447 = vmatpush1.bf16.msra.mxu0 %v323
  %448 = vmatprep.subr.bf16.mxu0 0
  %449 = vmatpush1.bf16.msra.mxu0 %v324
  %450 = vmatprep.subr.bf16.mxu0 0
  %451 = vmatpush1.bf16.msra.mxu0 %v325
  %452 = vmatprep.subr.bf16.mxu0 0
  %453 = vmatpush1.bf16.msra.mxu0 %v326
  %454 = vmatprep.subr.bf16.mxu0 0
  %455 = vmatpush1.bf16.msra.mxu0 %v327
  %456 = vmatprep.mubr.bf16.mxu0 %v137
  %457 = vmatmul.mubr.bf16.gmra.mrb[0].mxu0 %v136
  %v458 = vpop.f32.mrb[0].mxu0
  %v459 = vadd.f32 %v410, %v458
  %v460 = vpop.f32.mrb[0].mxu0
  %v461 = vpop.f32.mrb[0].mxu0
  %v462 = vadd.f32 %v413, %v461
  %v463 = vpop.f32.mrb[0].mxu0
  %464 = vmatprep.mubr.bf16.mxu0 %v142
  %465 = vmatmul.mubr.bf16.gmra.mrb[0].mxu0 %v141
  %v466 = vpop.f32.mrb[0].mxu0
  %v467 = vadd.f32 %v418, %v466
  %v468 = vpop.f32.mrb[0].mxu0
  %v469 = vpop.f32.mrb[0].mxu0
  %v470 = vadd.f32 %v421, %v469
  %v471 = vpop.f32.mrb[0].mxu0
  %472 = vdwg.mxu0
  %473 = vmatprep.subr.bf16.mxu0 0
  %474 = vmatpush1.bf16.msra.mxu0 %v328
  %475 = vmatprep.subr.bf16.mxu0 0
  %476 = vmatpush1.bf16.msra.mxu0 %v329
  %477 = vmatprep.subr.bf16.mxu0 0
  %478 = vmatpush1.bf16.msra.mxu0 %v330
  %479 = vmatprep.subr.bf16.mxu0 0
  %480 = vmatpush1.bf16.msra.mxu0 %v331
  %481 = vmatprep.subr.bf16.mxu0 0
  %482 = vmatpush1.bf16.msra.mxu0 0
  %483 = vmatprep.subr.bf16.mxu0 0
  %484 = vmatpush1.bf16.msra.mxu0 0
  %485 = vmatprep.subr.bf16.mxu0 0
  %486 = vmatpush1.bf16.msra.mxu0 0
  %487 = vmatprep.subr.bf16.mxu0 0
  %488 = vmatpush1.bf16.msra.mxu0 0
  %489 = vmatprep.subr.bf16.mxu0 0
  %490 = vmatpush1.bf16.msra.mxu0 0
  %491 = vmatprep.subr.bf16.mxu0 0
  %492 = vmatpush1.bf16.msra.mxu0 0
  %493 = vmatprep.subr.bf16.mxu0 0
  %494 = vmatpush1.bf16.msra.mxu0 0
  %495 = vmatprep.subr.bf16.mxu0 0
  %496 = vmatpush1.bf16.msra.mxu0 0
  %497 = vmatprep.subr.bf16.mxu0 0
  %498 = vmatpush1.bf16.msra.mxu0 0
  %499 = vmatprep.subr.bf16.mxu0 0
  %500 = vmatpush1.bf16.msra.mxu0 0
  %501 = vmatprep.subr.bf16.mxu0 0
  %502 = vmatpush1.bf16.msra.mxu0 0
  %503 = vmatprep.subr.bf16.mxu0 0
  %504 = vmatpush1.bf16.msra.mxu0 0
  %505 = vmatprep.mubr.bf16.mxu0 0
  %506 = vmatmul.mubr.bf16.gmra.mrb[0].mxu0 %v370
  %v507 = vpop.f32.mrb[0].mxu0
  %v508 = vadd.f32 %v459, %v507
  %v509 = vpop.f32.mrb[0].mxu0
  %v510 = vpop.f32.mrb[0].mxu0
  %v511 = vadd.f32 %v462, %v510
  %v512 = vpop.f32.mrb[0].mxu0
  %513 = vmatprep.mubr.bf16.mxu0 0
  %514 = vmatmul.mubr.bf16.gmra.mrb[0].mxu0 %v373
  %v515 = vpop.f32.mrb[0].mxu0
  %v516 = vadd.f32 %v467, %v515
  %v517 = vpop.f32.mrb[0].mxu0
  %v518 = vpop.f32.mrb[0].mxu0
  %v519 = vadd.f32 %v470, %v518
  %v520 = vpop.f32.mrb[0].mxu0
  %521 = vdwg.mxu0
  %v522 = vld [vmem:[%s2] sm:$0x1]
  %v524 = vlaneseq
  %v525 = vshrl.u32 %v524, 7
  %v526 = vsub.s32 0, %v525
  %v527 = vrot.slane %v522, %v526
  %v529 = vmul.f32 %v508, %v527
  %v530 = vmul.f32 %v511, %v527
  %v531 = vmul.f32 %v516, %v527
  %v532 = vmul.f32 %v519, %v527
  %v533 = vld [vmem:[%s3] sm:$0x1]
  %v535 = vlaneseq
  %v536 = vshrl.u32 %v535, 7
  %v537 = vsub.s32 0, %v536
  %v538 = vrot.slane %v533, %v537
  %v540 = vadd.f32 %v529, %v538
  %v541 = vadd.f32 %v530, %v538
  %v542 = vadd.f32 %v531, %v538
  %v543 = vadd.f32 %v532, %v538
  %v544 = vmax.f32 %v540, 0.0
  %v545 = vmax.f32 %v541, 0.0
  %v546 = vmax.f32 %v542, 0.0
  %v547 = vmax.f32 %v543, 0.0
  %v548 = vpack.c.bf16 %v545, %v544
  %v549 = vpack.c.bf16 %v547, %v546
  %v552 = vunpack.c.l.b16 %v548
  %v553 = vunpack.c.h.b16 %v548
  %v554 = vunpack.c.l.b16 %v549
  %v555 = vunpack.c.h.b16 %v549
  %v556 = vpack.c.b16 %v552, %v552
  %v557 = vpack.c.b16 %v553, %v553
  %v558 = vpack.c.b16 %v554, %v554
  %v559 = vpack.c.b16 %v555, %v555
  %vm564 = vcmask 519168
  %565 = vst.msk [vmem:[%s4] sm:$0xf] %vm564, %v556
  %566 = vst.msk [vmem:[%s4 + $0x4] sm:$0xf] %vm564, %v557
  %567 = vst.msk [vmem:[%s4 + $0x8] sm:$0xf] %vm564, %v558
  %568 = vst.msk [vmem:[%s4 + $0xc] sm:$0xf] %vm564, %v559
  // Predicated region
  $region18: #{net_forward.115} parent=0 // pred_check
    _
  $region19: #{net_forward.115} parent=0 // pred_check_branch
    %570 = sbr.rel (0) target = $region21
  $region20: #{net_forward.115} parent=0 // pred_region
    _
  $region21: #{net_forward.115} parent=0 // pred_fallthru
    _
  // Predicated region
  $region22: #{net_forward.115} parent=0 // pred_check
    _
  $region23: #{net_forward.115} parent=0 // pred_check_branch
    %572 = sbr.rel (0) target = $region25
  $region24: #{net_forward.115} parent=0 // pred_region
    _
  $region25: #{net_forward.115} parent=0 // pred_fallthru
    _

// kernel: net_forward.117
$region0: #{net_forward.117}
  #allocation0 [shape = 'u32[]', space=smem, size = 0x4, offset = 0x4, fixed_abs, tag = 'smem constant byte address 0x4 - core index']
  #allocation1 [shape = 'u32[144,128]{1,0:T(1,128)}', space=vmem, size = 0x12000, scoped, tag = 'internal scratch']
  %s0 = inlined_call_operand.vmem [shape: bf16[128,144], index: 0, kind: input, shape index: {}]
  %s1 = inlined_call_operand.vmem [shape: bf16[144,16], index: 1, kind: input, shape index: {}]
  %s2 = inlined_call_operand.vmem [shape: f32[1,16], index: 2, kind: input, shape index: {}]
  %s3 = inlined_call_operand.vmem [shape: f32[1,16], index: 3, kind: input, shape index: {}]
  %s4 = inlined_call_operand.vmem [shape: bf16[16,4], index: 4, kind: input, shape index: {}]
  %s5 = inlined_call_operand.vmem [shape: f32[1,4], index: 5, kind: input, shape index: {}]
  %s6 = inlined_call_operand.vmem [shape: f32[128,4], index: 6, kind: output, shape index: {}]
  %s7 = sld [smem:[#allocation0]]
  $region34: #{net_forward.117} parent=0
    _
  %s9 = ssub.s32 1, %s7
  %s10 = scalar_select 0, %s9, %s7
  // Predicated region
  $region2: #{net_forward.117} parent=0 // pred_check
    _
  $region3: #{net_forward.117} parent=0 // pred_check_branch
    %12 = sbr.rel (0) target = $region5
  $region4: #{net_forward.117} parent=0 // pred_region
    _
  $region5: #{net_forward.117} parent=0 // pred_fallthru
    _
  // Predicated region
  $region6: #{net_forward.117} parent=0 // pred_check
    _
  $region7: #{net_forward.117} parent=0 // pred_check_branch
    %14 = sbr.rel (0) target = $region9
  $region8: #{net_forward.117} parent=0 // pred_region
    _
  $region9: #{net_forward.117} parent=0 // pred_fallthru
    _
  // Predicated region
  $region10: #{net_forward.117} parent=0 // pred_check
    _
  $region11: #{net_forward.117} parent=0 // pred_check_branch
    %16 = sbr.rel (0) target = $region13
  $region12: #{net_forward.117} parent=0 // pred_region
    _
  $region13: #{net_forward.117} parent=0 // pred_fallthru
    _
  // Predicated region
  $region14: #{net_forward.117} parent=0 // pred_check
    _
  $region15: #{net_forward.117} parent=0 // pred_check_branch
    %18 = sbr.rel (0) target = $region17
  $region16: #{net_forward.117} parent=0 // pred_region
    _
  $region17: #{net_forward.117} parent=0 // pred_fallthru
    _
  // Predicated region
  $region18: #{net_forward.117} parent=0 // pred_check
    _
  $region19: #{net_forward.117} parent=0 // pred_check_branch
    %20 = sbr.rel (0) target = $region21
  $region20: #{net_forward.117} parent=0 // pred_region
    _
  $region21: #{net_forward.117} parent=0 // pred_fallthru
    _
  // Predicated region
  $region22: #{net_forward.117} parent=0 // pred_check
    _
  $region23: #{net_forward.117} parent=0 // pred_check_branch
    %22 = sbr.rel (0) target = $region25
  $region24: #{net_forward.117} parent=0 // pred_region
    _
  $region25: #{net_forward.117} parent=0 // pred_fallthru
    _
  %v24 = vld [vmem:[%s0] sm:$0xff]
  %v25 = vld [vmem:[%s0 + $0x8] sm:$0xff]
  %v26 = vld [vmem:[%s0 + $0x10] sm:$0xff]
  %v27 = vld [vmem:[%s0 + $0x18] sm:$0xff]
  %v28 = vld [vmem:[%s0 + $0x20] sm:$0xff]
  %v29 = vld [vmem:[%s0 + $0x28] sm:$0xff]
  %v30 = vld [vmem:[%s0 + $0x30] sm:$0xff]
  %v31 = vld [vmem:[%s0 + $0x38] sm:$0xff]
  %v32 = vld [vmem:[%s0 + $0x40] sm:$0xff]
  %v33 = vld [vmem:[%s0 + $0x48] sm:$0xff]
  %v34 = vld [vmem:[%s0 + $0x50] sm:$0xff]
  %v35 = vld [vmem:[%s0 + $0x58] sm:$0xff]
  %v36 = vld [vmem:[%s0 + $0x60] sm:$0xff]
  %v37 = vld [vmem:[%s0 + $0x68] sm:$0xff]
  %v38 = vld [vmem:[%s0 + $0x70] sm:$0xff]
  %v39 = vld [vmem:[%s0 + $0x78] sm:$0xff]
  %v40 = vld [vmem:[%s1] sm:$0xf]
  %v41 = vld [vmem:[%s1 + $0x4] sm:$0xf]
  %v42 = vld [vmem:[%s1 + $0x8] sm:$0xf]
  %v43 = vld [vmem:[%s1 + $0xc] sm:$0xf]
  %v44 = vld [vmem:[%s1 + $0x10] sm:$0xf]
  %v45 = vld [vmem:[%s1 + $0x14] sm:$0xf]
  %v46 = vld [vmem:[%s1 + $0x18] sm:$0xf]
  %v47 = vld [vmem:[%s1 + $0x1c] sm:$0xf]
  %v48 = vld [vmem:[%s1 + $0x20] sm:$0xf]
  %v49 = vld [vmem:[%s1 + $0x24] sm:$0xf]
  %v50 = vld [vmem:[%s1 + $0x28] sm:$0xf]
  %v51 = vld [vmem:[%s1 + $0x2c] sm:$0xf]
  %v52 = vld [vmem:[%s1 + $0x30] sm:$0xf]
  %v53 = vld [vmem:[%s1 + $0x34] sm:$0xf]
  %v54 = vld [vmem:[%s1 + $0x38] sm:$0xf]
  %v55 = vld [vmem:[%s1 + $0x3c] sm:$0xf]
  %v56 = vld [vmem:[%s1 + $0x40] sm:$0xf]
  %v57 = vld [vmem:[%s1 + $0x44] sm:$0xf]
  %v74 = vunpack.c.l.b16 %v24
  %v75 = vunpack.c.h.b16 %v24
  %v76 = vunpack.c.l.b16 %v25
  %v77 = vunpack.c.h.b16 %v25
  %v78 = vunpack.c.l.b16 %v26
  %v79 = vunpack.c.h.b16 %v26
  %v80 = vunpack.c.l.b16 %v27
  %v81 = vunpack.c.h.b16 %v27
  %v82 = vunpack.c.l.b16 %v28
  %v83 = vunpack.c.h.b16 %v28
  %v84 = vunpack.c.l.b16 %v29
  %v85 = vunpack.c.h.b16 %v29
  %v86 = vunpack.c.l.b16 %v30
  %v87 = vunpack.c.h.b16 %v30
  %v88 = vunpack.c.l.b16 %v31
  %v89 = vunpack.c.h.b16 %v31
  %v90 = vunpack.c.l.b16 %v32
  %v91 = vunpack.c.h.b16 %v32
  %v92 = vunpack.c.l.b16 %v33
  %v93 = vunpack.c.h.b16 %v33
  %v94 = vunpack.c.l.b16 %v34
  %v95 = vunpack.c.h.b16 %v34
  %v96 = vunpack.c.l.b16 %v35
  %v97 = vunpack.c.h.b16 %v35
  %v98 = vunpack.c.l.b16 %v36
  %v99 = vunpack.c.h.b16 %v36
  %v100 = vunpack.c.l.b16 %v37
  %v101 = vunpack.c.h.b16 %v37
  %v102 = vunpack.c.l.b16 %v38
  %v103 = vunpack.c.h.b16 %v38
  %v104 = vunpack.c.l.b16 %v39
  %v105 = vunpack.c.h.b16 %v39
  %v106 = vpack.c.b16 %v76, %v74
  %v107 = vpack.c.b16 %v77, %v75
  %v108 = vpack.c.b16 %v80, %v78
  %v109 = vpack.c.b16 %v81, %v79
  %v110 = vpack.c.b16 %v84, %v82
  %v111 = vpack.c.b16 %v85, %v83
  %v112 = vpack.c.b16 %v88, %v86
  %v113 = vpack.c.b16 %v89, %v87
  %v114 = vpack.c.b16 %v92, %v90
  %v115 = vpack.c.b16 %v93, %v91
  %v116 = vpack.c.b16 %v96, %v94
  %v117 = vpack.c.b16 %v97, %v95
  %v118 = vpack.c.b16 %v100, %v98
  %v119 = vpack.c.b16 %v101, %v99
  %v120 = vpack.c.b16 %v104, %v102
  %v121 = vpack.c.b16 %v105, %v103
  %v148 = vunpack.c.l.b16 %v40
  %v149 = vunpack.c.l.b16 %v41
  %v150 = vunpack.c.l.b16 %v42
  %v151 = vunpack.c.l.b16 %v43
  %v152 = vunpack.c.l.b16 %v44
  %v153 = vunpack.c.l.b16 %v45
  %v154 = vunpack.c.l.b16 %v46
  %v155 = vunpack.c.l.b16 %v47
  %v156 = vunpack.c.l.b16 %v48
  %v157 = vunpack.c.l.b16 %v49
  %v158 = vunpack.c.l.b16 %v50
  %v159 = vunpack.c.l.b16 %v51
  %v160 = vunpack.c.l.b16 %v52
  %v161 = vunpack.c.l.b16 %v53
  %v162 = vunpack.c.l.b16 %v54
  %v163 = vunpack.c.l.b16 %v55
  %v164 = vunpack.c.l.b16 %v56
  %v165 = vunpack.c.l.b16 %v57
  %v166 = vpack.c.b16 %v149, %v148
  %v167 = vpack.c.b16 %v151, %v150
  %v168 = vpack.c.b16 %v153, %v152
  %v169 = vpack.c.b16 %v155, %v154
  %v170 = vpack.c.b16 %v157, %v156
  %v171 = vpack.c.b16 %v159, %v158
  %v172 = vpack.c.b16 %v161, %v160
  %v173 = vpack.c.b16 %v163, %v162
  %v174 = vpack.c.b16 %v165, %v164
  %vm184 = vcmask 130048
  %v186 = vsel %vm184, %v107, 0
  %v189 = vsel %vm184, %v109, 0
  %v192 = vsel %vm184, %v111, 0
  %v195 = vsel %vm184, %v113, 0
  %v198 = vsel %vm184, %v115, 0
  %v201 = vsel %vm184, %v117, 0
  %v204 = vsel %vm184, %v119, 0
  %v207 = vsel %vm184, %v121, 0
  %209 = vmatprep.subr.bf16.mxu0 0
  %210 = vmatpush1.bf16.msra.mxu0 %v166
  %211 = vmatprep.subr.bf16.mxu0 0
  %212 = vmatpush1.bf16.msra.mxu0 %v167
  %213 = vmatprep.subr.bf16.mxu0 0
  %214 = vmatpush1.bf16.msra.mxu0 %v168
  %215 = vmatprep.subr.bf16.mxu0 0
  %216 = vmatpush1.bf16.msra.mxu0 %v169
  %217 = vmatprep.subr.bf16.mxu0 0
  %218 = vmatpush1.bf16.msra.mxu0 %v170
  %219 = vmatprep.subr.bf16.mxu0 0
  %220 = vmatpush1.bf16.msra.mxu0 %v171
  %221 = vmatprep.subr.bf16.mxu0 0
  %222 = vmatpush1.bf16.msra.mxu0 %v172
  %223 = vmatprep.subr.bf16.mxu0 0
  %224 = vmatpush1.bf16.msra.mxu0 %v173
  %225 = vmatprep.subr.bf16.mxu0 0
  %226 = vmatpush1.bf16.msra.mxu0 %v174
  %227 = vmatprep.subr.bf16.mxu0 0
  %228 = vmatpush1.bf16.msra.mxu0 0
  %229 = vmatprep.subr.bf16.mxu0 0
  %230 = vmatpush1.bf16.msra.mxu0 0
  %231 = vmatprep.subr.bf16.mxu0 0
  %232 = vmatpush1.bf16.msra.mxu0 0
  %233 = vmatprep.subr.bf16.mxu0 0
  %234 = vmatpush1.bf16.msra.mxu0 0
  %235 = vmatprep.subr.bf16.mxu0 0
  %236 = vmatpush1.bf16.msra.mxu0 0
  %237 = vmatprep.subr.bf16.mxu0 0
  %238 = vmatpush1.bf16.msra.mxu0 0
  %239 = vmatprep.subr.bf16.mxu0 0
  %240 = vmatpush1.bf16.msra.mxu0 0
  %241 = vmatprep.mubr.bf16.mxu0 %v186
  %242 = vmatmul.mubr.bf16.gmra.mrb[0].mxu0 %v106
  %v243 = vpop.f32.mrb[0].mxu0
  %v244 = vadd.f32 0.0, %v243
  %v245 = vpop.f32.mrb[0].mxu0
  %v246 = vpop.f32.mrb[0].mxu0
  %v247 = vadd.f32 0.0, %v246
  %v248 = vpop.f32.mrb[0].mxu0
  %249 = vmatprep.mubr.bf16.mxu0 %v189
  %250 = vmatmul.mubr.bf16.gmra.mrb[0].mxu0 %v108
  %v251 = vpop.f32.mrb[0].mxu0
  %v252 = vadd.f32 0.0, %v251
  %v253 = vpop.f32.mrb[0].mxu0
  %v254 = vpop.f32.mrb[0].mxu0
  %v255 = vadd.f32 0.0, %v254
  %v256 = vpop.f32.mrb[0].mxu0
  %257 = vmatprep.mubr.bf16.mxu0 %v192
  %258 = vmatmul.mubr.bf16.gmra.mrb[0].mxu0 %v110
  %v259 = vpop.f32.mrb[0].mxu0
  %v260 = vadd.f32 0.0, %v259
  %v261 = vpop.f32.mrb[0].mxu0
  %v262 = vpop.f32.mrb[0].mxu0
  %v263 = vadd.f32 0.0, %v262
  %v264 = vpop.f32.mrb[0].mxu0
  %265 = vmatprep.mubr.bf16.mxu0 %v195
  %266 = vmatmul.mubr.bf16.gmra.mrb[0].mxu0 %v112
  %v267 = vpop.f32.mrb[0].mxu0
  %v268 = vadd.f32 0.0, %v267
  %v269 = vpop.f32.mrb[0].mxu0
  %v270 = vpop.f32.mrb[0].mxu0
  %v271 = vadd.f32 0.0, %v270
  %v272 = vpop.f32.mrb[0].mxu0
  %273 = vmatprep.mubr.bf16.mxu0 %v198
  %274 = vmatmul.mubr.bf16.gmra.mrb[0].mxu0 %v114
  %v275 = vpop.f32.mrb[0].mxu0
  %v276 = vadd.f32 0.0, %v275
  %v277 = vpop.f32.mrb[0].mxu0
  %v278 = vpop.f32.mrb[0].mxu0
  %v279 = vadd.f32 0.0, %v278
  %v280 = vpop.f32.mrb[0].mxu0
  %281 = vmatprep.mubr.bf16.mxu0 %v201
  %282 = vmatmul.mubr.bf16.gmra.mrb[0].mxu0 %v116
  %v283 = vpop.f32.mrb[0].mxu0
  %v284 = vadd.f32 0.0, %v283
  %v285 = vpop.f32.mrb[0].mxu0
  %v286 = vpop.f32.mrb[0].mxu0
  %v287 = vadd.f32 0.0, %v286
  %v288 = vpop.f32.mrb[0].mxu0
  %289 = vmatprep.mubr.bf16.mxu0 %v204
  %290 = vmatmul.mubr.bf16.gmra.mrb[0].mxu0 %v118
  %v291 = vpop.f32.mrb[0].mxu0
  %v292 = vadd.f32 0.0, %v291
  %v293 = vpop.f32.mrb[0].mxu0
  %v294 = vpop.f32.mrb[0].mxu0
  %v295 = vadd.f32 0.0, %v294
  %v296 = vpop.f32.mrb[0].mxu0
  %297 = vmatprep.mubr.bf16.mxu0 %v207
  %298 = vmatmul.mubr.bf16.gmra.mrb[0].mxu0 %v120
  %v299 = vpop.f32.mrb[0].mxu0
  %v300 = vadd.f32 0.0, %v299
  %v301 = vpop.f32.mrb[0].mxu0
  %v302 = vpop.f32.mrb[0].mxu0
  %v303 = vadd.f32 0.0, %v302
  %v304 = vpop.f32.mrb[0].mxu0
  %305 = vdwg.mxu0
  %v306 = vld [vmem:[%s2] sm:$0x1]
  %v308 = vlaneseq
  %v309 = vshrl.u32 %v308, 7
  %v310 = vsub.s32 0, %v309
  %v311 = vrot.slane %v306, %v310
  %v313 = vmul.f32 %v244, %v311
  %v314 = vmul.f32 %v247, %v311
  %v315 = vmul.f32 %v252, %v311
  %v316 = vmul.f32 %v255, %v311
  %v317 = vmul.f32 %v260, %v311
  %v318 = vmul.f32 %v263, %v311
  %v319 = vmul.f32 %v268, %v311
  %v320 = vmul.f32 %v271, %v311
  %v321 = vmul.f32 %v276, %v311
  %v322 = vmul.f32 %v279, %v311
  %v323 = vmul.f32 %v284, %v311
  %v324 = vmul.f32 %v287, %v311
  %v325 = vmul.f32 %v292, %v311
  %v326 = vmul.f32 %v295, %v311
  %v327 = vmul.f32 %v300, %v311
  %v328 = vmul.f32 %v303, %v311
  %v329 = vld [vmem:[%s3] sm:$0x1]
  %v331 = vlaneseq
  %v332 = vshrl.u32 %v331, 7
  %v333 = vsub.s32 0, %v332
  %v334 = vrot.slane %v329, %v333
  %v336 = vadd.f32 %v313, %v334
  %v337 = vadd.f32 %v314, %v334
  %v338 = vadd.f32 %v315, %v334
  %v339 = vadd.f32 %v316, %v334
  %v340 = vadd.f32 %v317, %v334
  %v341 = vadd.f32 %v318, %v334
  %v342 = vadd.f32 %v319, %v334
  %v343 = vadd.f32 %v320, %v334
  %v344 = vadd.f32 %v321, %v334
  %v345 = vadd.f32 %v322, %v334
  %v346 = vadd.f32 %v323, %v334
  %v347 = vadd.f32 %v324, %v334
  %v348 = vadd.f32 %v325, %v334
  %v349 = vadd.f32 %v326, %v334
  %v350 = vadd.f32 %v327, %v334
  %v351 = vadd.f32 %v328, %v334
  %v352 = vmax.f32 %v336, 0.0
  %v353 = vmax.f32 %v337, 0.0
  %v354 = vmax.f32 %v338, 0.0
  %v355 = vmax.f32 %v339, 0.0
  %v356 = vmax.f32 %v340, 0.0
  %v357 = vmax.f32 %v341, 0.0
  %v358 = vmax.f32 %v342, 0.0
  %v359 = vmax.f32 %v343, 0.0
  %v360 = vmax.f32 %v344, 0.0
  %v361 = vmax.f32 %v345, 0.0
  %v362 = vmax.f32 %v346, 0.0
  %v363 = vmax.f32 %v347, 0.0
  %v364 = vmax.f32 %v348, 0.0
  %v365 = vmax.f32 %v349, 0.0
  %v366 = vmax.f32 %v350, 0.0
  %v367 = vmax.f32 %v351, 0.0
  %v368 = vpack.c.bf16 %v353, %v352
  %v369 = vpack.c.bf16 %v355, %v354
  %v370 = vpack.c.bf16 %v357, %v356
  %v371 = vpack.c.bf16 %v359, %v358
  %v372 = vpack.c.bf16 %v361, %v360
  %v373 = vpack.c.bf16 %v363, %v362
  %v374 = vpack.c.bf16 %v365, %v364
  %v375 = vpack.c.bf16 %v367, %v366
  %v376 = vld [vmem:[%s4] sm:$0xf]
  %v377 = vld [vmem:[%s4 + $0x4] sm:$0xf]
  %v378 = vld [vmem:[%s5] sm:$0x1]
  %v380 = vlaneseq
  %v381 = vshrl.u32 %v380, 7
  %v382 = vsub.s32 0, %v381
  %v383 = vrot.slane %v378, %v382
  %v387 = vunpack.c.l.b16 %v376
  %v388 = vunpack.c.l.b16 %v377
  %v389 = vpack.c.b16 %v388, %v387
  %v392 = vsel %vm184, %v368, 0
  %v395 = vsel %vm184, %v369, 0
  %v398 = vsel %vm184, %v370, 0
  %v401 = vsel %vm184, %v371, 0
  %v404 = vsel %vm184, %v372, 0
  %v407 = vsel %vm184, %v373, 0
  %v410 = vsel %vm184, %v374, 0
  %v413 = vsel %vm184, %v375, 0
  %415 = vmatprep.subr.bf16.mxu0 0
  %416 = vmatpush1.bf16.msra.mxu0 %v389
  %417 = vmatprep.subr.bf16.mxu0 0
  %418 = vmatpush1.bf16.msra.mxu0 0
  %419 = vmatprep.subr.bf16.mxu0 0
  %420 = vmatpush1.bf16.msra.mxu0 0
  %421 = vmatprep.subr.bf16.mxu0 0
  %422 = vmatpush1.bf16.msra.mxu0 0
  %423 = vmatprep.subr.bf16.mxu0 0
  %424 = vmatpush1.bf16.msra.mxu0 0
  %425 = vmatprep.subr.bf16.mxu0 0
  %426 = vmatpush1.bf16.msra.mxu0 0
  %427 = vmatprep.subr.bf16.mxu0 0
  %428 = vmatpush1.bf16.msra.mxu0 0
  %429 = vmatprep.subr.bf16.mxu0 0
  %430 = vmatpush1.bf16.msra.mxu0 0
  %431 = vmatprep.subr.bf16.mxu0 0
  %432 = vmatpush1.bf16.msra.mxu0 0
  %433 = vmatprep.subr.bf16.mxu0 0
  %434 = vmatpush1.bf16.msra.mxu0 0
  %435 = vmatprep.subr.bf16.mxu0 0
  %436 = vmatpush1.bf16.msra.mxu0 0
  %437 = vmatprep.subr.bf16.mxu0 0
  %438 = vmatpush1.bf16.msra.mxu0 0
  %439 = vmatprep.subr.bf16.mxu0 0
  %440 = vmatpush1.bf16.msra.mxu0 0
  %441 = vmatprep.subr.bf16.mxu0 0
  %442 = vmatpush1.bf16.msra.mxu0 0
  %443 = vmatprep.subr.bf16.mxu0 0
  %444 = vmatpush1.bf16.msra.mxu0 0
  %445 = vmatprep.subr.bf16.mxu0 0
  %446 = vmatpush1.bf16.msra.mxu0 0
  %447 = vmatprep.mubr.bf16.mxu0 0
  %448 = vmatmul.mubr.bf16.gmra.mrb[0].mxu0 %v392
  %v449 = vpop.f32.mrb[0].mxu0
  %v450 = vadd.f32 %v383, %v449
  %v451 = vpop.f32.mrb[0].mxu0
  %v452 = vpop.f32.mrb[0].mxu0
  %v453 = vadd.f32 %v383, %v452
  %v454 = vpop.f32.mrb[0].mxu0
  %455 = vmatprep.mubr.bf16.mxu0 0
  %456 = vmatmul.mubr.bf16.gmra.mrb[0].mxu0 %v395
  %v457 = vpop.f32.mrb[0].mxu0
  %v458 = vadd.f32 %v383, %v457
  %v459 = vpop.f32.mrb[0].mxu0
  %v460 = vpop.f32.mrb[0].mxu0
  %v461 = vadd.f32 %v383, %v460
  %v462 = vpop.f32.mrb[0].mxu0
  %463 = vmatprep.mubr.bf16.mxu0 0
  %464 = vmatmul.mubr.bf16.gmra.mrb[0].mxu0 %v398
  %v465 = vpop.f32.mrb[0].mxu0
  %v466 = vadd.f32 %v383, %v465
  %v467 = vpop.f32.mrb[0].mxu0
  %v468 = vpop.f32.mrb[0].mxu0
  %v469 = vadd.f32 %v383, %v468
  %v470 = vpop.f32.mrb[0].mxu0
  %471 = vmatprep.mubr.bf16.mxu0 0
  %472 = vmatmul.mubr.bf16.gmra.mrb[0].mxu0 %v401
  %v473 = vpop.f32.mrb[0].mxu0
  %v474 = vadd.f32 %v383, %v473
  %v475 = vpop.f32.mrb[0].mxu0
  %v476 = vpop.f32.mrb[0].mxu0
  %v477 = vadd.f32 %v383, %v476
  %v478 = vpop.f32.mrb[0].mxu0
  %479 = vmatprep.mubr.bf16.mxu0 0
  %480 = vmatmul.mubr.bf16.gmra.mrb[0].mxu0 %v404
  %v481 = vpop.f32.mrb[0].mxu0
  %v482 = vadd.f32 %v383, %v481
  %v483 = vpop.f32.mrb[0].mxu0
  %v484 = vpop.f32.mrb[0].mxu0
  %v485 = vadd.f32 %v383, %v484
  %v486 = vpop.f32.mrb[0].mxu0
  %487 = vmatprep.mubr.bf16.mxu0 0
  %488 = vmatmul.mubr.bf16.gmra.mrb[0].mxu0 %v407
  %v489 = vpop.f32.mrb[0].mxu0
  %v490 = vadd.f32 %v383, %v489
  %v491 = vpop.f32.mrb[0].mxu0
  %v492 = vpop.f32.mrb[0].mxu0
  %v493 = vadd.f32 %v383, %v492
  %v494 = vpop.f32.mrb[0].mxu0
  %495 = vmatprep.mubr.bf16.mxu0 0
  %496 = vmatmul.mubr.bf16.gmra.mrb[0].mxu0 %v410
  %v497 = vpop.f32.mrb[0].mxu0
  %v498 = vadd.f32 %v383, %v497
  %v499 = vpop.f32.mrb[0].mxu0
  %v500 = vpop.f32.mrb[0].mxu0
  %v501 = vadd.f32 %v383, %v500
  %v502 = vpop.f32.mrb[0].mxu0
  %503 = vmatprep.mubr.bf16.mxu0 0
  %504 = vmatmul.mubr.bf16.gmra.mrb[0].mxu0 %v413
  %v505 = vpop.f32.mrb[0].mxu0
  %v506 = vadd.f32 %v383, %v505
  %v507 = vpop.f32.mrb[0].mxu0
  %v508 = vpop.f32.mrb[0].mxu0
  %v509 = vadd.f32 %v383, %v508
  %v510 = vpop.f32.mrb[0].mxu0
  %511 = vdwg.mxu0
  %vm512 = vcmask 31744
  %513 = vst.msk [vmem:[%s6] sm:$0xff] %vm512, %v450
  %514 = vst.msk [vmem:[%s6 + $0x8] sm:$0xff] %vm512, %v453
  %515 = vst.msk [vmem:[%s6 + $0x10] sm:$0xff] %vm512, %v458
  %516 = vst.msk [vmem:[%s6 + $0x18] sm:$0xff] %vm512, %v461
  %517 = vst.msk [vmem:[%s6 + $0x20] sm:$0xff] %vm512, %v466
  %518 = vst.msk [vmem:[%s6 + $0x28] sm:$0xff] %vm512, %v469
  %519 = vst.msk [vmem:[%s6 + $0x30] sm:$0xff] %vm512, %v474
  %520 = vst.msk [vmem:[%s6 + $0x38] sm:$0xff] %vm512, %v477
  %521 = vst.msk [vmem:[%s6 + $0x40] sm:$0xff] %vm512, %v482
  %522 = vst.msk [vmem:[%s6 + $0x48] sm:$0xff] %vm512, %v485
  %523 = vst.msk [vmem:[%s6 + $0x50] sm:$0xff] %vm512, %v490
  %524 = vst.msk [vmem:[%s6 + $0x58] sm:$0xff] %vm512, %v493
  %525 = vst.msk [vmem:[%s6 + $0x60] sm:$0xff] %vm512, %v498
  %526 = vst.msk [vmem:[%s6 + $0x68] sm:$0xff] %vm512, %v501
  %527 = vst.msk [vmem:[%s6 + $0x70] sm:$0xff] %vm512, %v506
  %528 = vst.msk [vmem:[%s6 + $0x78] sm:$0xff] %vm512, %v509
  // Predicated region
  $region26: #{net_forward.117} parent=0 // pred_check
    _
  $region27: #{net_forward.117} parent=0 // pred_check_branch
    %530 = sbr.rel (0) target = $region29
  $region28: #{net_forward.117} parent=0 // pred_region
    _
  $region29: #{net_forward.117} parent=0 // pred_fallthru
    _
  // Predicated region
  $region30: #{net_forward.117} parent=0 // pred_check
    _
  $region31: #{net_forward.117} parent=0 // pred_check_branch
    %532 = sbr.rel (0) target = $region33
  $region32: #{net_forward.117} parent=0 // pred_region
    _
  $region33: #{net_forward.117} parent=0 // pred_fallthru
    _

</llo_original>
